<compile_context>
chip_gen: v6e
topology: v6e:2x2x1
jax: 0.10.0
libtpu: 0.0.40
codegen_flags: <defaults>
</compile_context>

<pallas_src>
import functools

import jax
import jax.numpy as jnp
from jax.experimental import pallas as pl
from jax.experimental.pallas import tpu as pltpu


# ---------------------------------------------------------------------------
# Kernel
# ---------------------------------------------------------------------------
def ddpm_sample_kernel(coeffs_ref,   # SMEM (3*T,): [c_xt, c_eps, sigma] per t
                       x0_ref,       # VMEM (1, C, tile_hw): initial x_T tile
                       noise_ref,    # VMEM (t_chunk, 1, C, tile_hw): bf16 noise chunk
                       b1t_ref,      # VMEM (t_chunk, HIDDEN, 1): b1 + time embedding
                       w1t_ref,      # VMEM (HIDDEN, C)
                       w2t_ref,      # VMEM (C, HIDDEN)
                       b2_ref,       # VMEM (C, 1)
                       out_ref,      # VMEM (1, C, tile_hw): resident carried x_t
                       *, t_total, t_chunk):
    s = pl.program_id(2)                    # time-chunk index (innermost, "arbitrary")
    num_chunks = pl.num_programs(2)
    t_hi = t_total - 1 - s * t_chunk        # highest timestep handled by this chunk

    @pl.when(s == 0)
    def _():
        out_ref[0] = x0_ref[0]

    x = out_ref[0]                          # (C, tile_hw), resident across chunks
    w1t = w1t_ref[...]
    w2t = w2t_ref[...]
    b2 = b2_ref[...]

    # Statically unrolled reverse-time steps within the chunk (t_chunk <= 8).
    for j in range(t_chunk):
        lt = t_chunk - 1 - j                # static local index into chunk blocks
        t = t_hi - j                        # dynamic global timestep (SMEM scalars only)

        # model(x_t, t): per-pixel MLP == two 1x1 convs + additive time embedding.
        h = jnp.dot(w1t, x, preferred_element_type=jnp.float32)
        h = h + b1t_ref[lt]                 # (HIDDEN, 1) lane-broadcast, static index
        h = h * jax.nn.sigmoid(h)           # SiLU
        eps = jnp.dot(w2t, h, preferred_element_type=jnp.float32) + b2

        c_xt = coeffs_ref[3 * t]
        c_eps = coeffs_ref[3 * t + 1]
        sigma = coeffs_ref[3 * t + 2]

        nz = noise_ref[lt, 0].astype(jnp.float32)   # bf16 -> f32 (noise[t=0] is zero)
        # accelerated posterior mean + sigma * noise
        x = c_xt * x - c_eps * eps + sigma * nz

    @pl.when(s < num_chunks - 1)
    def _():
        out_ref[0] = x

    @pl.when(s == num_chunks - 1)
    def _():
        # x_0.clip(-1, 1) * 0.5 + 0.5, folded into the single final store
        out_ref[0] = jnp.clip(x, -1.0, 1.0) * 0.5 + 0.5


# ---------------------------------------------------------------------------
# Sizing helpers (padded-VMEM aware)
# ---------------------------------------------------------------------------
def _round_up(v, m):
    return ((v + m - 1) // m) * m


def _pick_t_chunk(t_total, max_chunk=8):
    # keep the unroll small; larger T would use more chunks, not a longer unroll
    for c in range(min(t_total, max_chunk), 0, -1):
        if t_total % c == 0:
            return c
    return 1


def _vmem_capacity_bytes():
    try:
        return int(pltpu.get_tpu_info().vmem_capacity_bytes)
    except Exception:
        return 64 << 20   # conservative fallback (v7x per-core size)


def _padded_vmem_bytes(c, hidden, tile_hw, t_chunk, noise_itemsize):
    """Double-buffered, sublane/lane-padded working-set estimate."""
    lanes = _round_up(tile_hw, 128)
    c_f32 = _round_up(c, 8)
    h_f32 = _round_up(hidden, 8)
    c_nz = _round_up(c, max(8, 32 // noise_itemsize))       # bf16 packs 2 rows/sublane
    nz = 2 * t_chunk * c_nz * lanes * noise_itemsize        # noise chunk (x2 buffers)
    x0 = 2 * c_f32 * lanes * 4
    out = 2 * c_f32 * lanes * 4
    b1t = 2 * t_chunk * h_f32 * 128 * 4
    params = 2 * (h_f32 * 128 + 2 * c_f32 * 128) * 4        # w1t, w2t, b2
    act = 4 * h_f32 * lanes * 4                             # h / eps temporaries headroom
    return nz + x0 + out + b1t + params + act


def _pick_tile_hw(hw, c, hidden, t_chunk, noise_itemsize, cap_bytes):
    """Largest legal lane tile of H*W that fits a conservative VMEM budget."""
    budget = int(cap_bytes * 0.4)
    cands = [hw]
    d = (hw // 128) * 128
    while d >= 128:
        if d != hw and hw % d == 0:
            cands.append(d)
        d -= 128
    for thw in cands:
        if _padded_vmem_bytes(c, hidden, thw, t_chunk, noise_itemsize) <= budget:
            return thw
    return cands[-1]


# ---------------------------------------------------------------------------
# Wrapper
# ---------------------------------------------------------------------------
def ddpm_sample(x_nchw, noise_tbchw, coeffs, temb, w1, b1, w2, b2,
                *, tile_hw=None, t_chunk=None):
    B, C, H, W = x_nchw.shape
    HW = H * W
    T = coeffs.shape[0]
    hidden = w1.shape[1]

    if t_chunk is None:
        t_chunk = _pick_t_chunk(T)
    assert T % t_chunk == 0, "t_chunk must divide T"
    num_chunks = T // t_chunk

    noise_isz = jnp.dtype(noise_tbchw.dtype).itemsize
    cap = _vmem_capacity_bytes()

    if tile_hw is None:
        tile_hw = _pick_tile_hw(HW, C, hidden, t_chunk, noise_isz, cap)
    assert tile_hw == HW or (HW % tile_hw == 0 and tile_hw % 128 == 0), \
        "tile_hw must be H*W or a lane-aligned divisor of H*W"
    n_hw = HW // tile_hw

    # Free reshapes only (bitcasts) -- no HBM transpose passes.
    x_flat = x_nchw.reshape(B, C, HW)
    noise_flat = noise_tbchw.reshape(T, B, C, HW)           # keep caller dtype (bf16)

    coeffs_flat = coeffs.reshape(-1)                         # (3*T,) interleaved
    b1t = (temb + b1).reshape(T, hidden, 1)                  # combined bias + time emb
    w1t = jnp.transpose(w1)                                  # (hidden, C)   -- tiny
    w2t = jnp.transpose(w2)                                  # (C, hidden)   -- tiny
    b2c = b2.reshape(C, 1)

    kernel = functools.partial(ddpm_sample_kernel, t_total=T, t_chunk=t_chunk)

    est = _padded_vmem_bytes(C, hidden, tile_hw, t_chunk, noise_isz)
    # ~102 MiB cap on v5e/v6e (128 MiB physical), ~51 MiB on v7x (64 MiB/TC).
    vmem_limit = int(min(max(3 * est, 32 << 20), int(cap * 0.8)))

    out_flat = pl.pallas_call(
        kernel,
        out_shape=jax.ShapeDtypeStruct((B, C, HW), jnp.float32),
        grid=(B, n_hw, num_chunks),
        in_specs=[
            pl.BlockSpec(memory_space=pltpu.MemorySpace.SMEM),               # coeffs
            pl.BlockSpec((1, C, tile_hw), lambda b, n, s: (b, 0, n)),        # x_T
            pl.BlockSpec((t_chunk, 1, C, tile_hw),
                         lambda b, n, s: (num_chunks - 1 - s, b, 0, n)),     # noise chunk
            pl.BlockSpec((t_chunk, hidden, 1),
                         lambda b, n, s: (num_chunks - 1 - s, 0, 0)),        # b1 + temb
            pl.BlockSpec((hidden, C), lambda b, n, s: (0, 0)),               # w1^T
            pl.BlockSpec((C, hidden), lambda b, n, s: (0, 0)),               # w2^T
            pl.BlockSpec((C, 1), lambda b, n, s: (0, 0)),                    # b2
        ],
        out_specs=pl.BlockSpec((1, C, tile_hw), lambda b, n, s: (b, 0, n)),
        compiler_params=pltpu.CompilerParams(
            dimension_semantics=("parallel", "parallel", "arbitrary"),
            vmem_limit_bytes=vmem_limit),
    )(coeffs_flat, x_flat, noise_flat, b1t, w1t, w2t, b2c)

    return out_flat.reshape(B, C, H, W)


# ---------------------------------------------------------------------------
# Pure-JAX reference (same math, same bf16-quantized noise)
# ---------------------------------------------------------------------------
def reference_sample(x_nchw, noise_tbchw, coeffs, temb, w1, b1, w2, b2):
    B, C, H, W = x_nchw.shape
    T = coeffs.shape[0]
    x = jnp.transpose(x_nchw, (0, 2, 3, 1)).reshape(-1, C)
    for i in reversed(range(T)):
        nz = jnp.transpose(noise_tbchw[i].astype(jnp.float32),
                           (0, 2, 3, 1)).reshape(-1, C)
        h = x @ w1 + b1 + temb[i:i + 1]
        h = h * jax.nn.sigmoid(h)
        eps = h @ w2 + b2
        x = coeffs[i, 0] * x - coeffs[i, 1] * eps + coeffs[i, 2] * nz
    x = jnp.clip(x, -1.0, 1.0) * 0.5 + 0.5
    return jnp.transpose(x.reshape(B, H, W, C), (0, 3, 1, 2))


def make_ddpm_coefficients(T):
    """DDPMSampler(accelerate=True) per-step coefficients, packed (T, 3)."""
    betas = jnp.linspace(1e-4, 2e-2, T, dtype=jnp.float32)
    alphas = 1.0 - betas
    alphas_cumprod = jnp.cumprod(alphas)
    alphas_cumprod_prev = jnp.concatenate(
        [jnp.ones((1,), jnp.float32), alphas_cumprod[:-1]])
    variance = (1.0 - alphas) * (1.0 - alphas_cumprod_prev) / (1.0 - alphas_cumprod)
    sigma = jnp.sqrt(variance)
    coeff_xt = jnp.sqrt(1.0 / alphas)
    coeff_eps = (1.0 - alphas) / (jnp.sqrt(1.0 - alphas_cumprod) * jnp.sqrt(alphas))
    return jnp.stack([coeff_xt, coeff_eps, sigma], axis=-1).astype(jnp.float32)


if __name__ == "__main__":
    # Small shapes consistent with the module's forward: x is an NCHW image batch.
    B, C, Hs, Ws = 2, 4, 16, 16
    T = 8          # number of diffusion timesteps
    HIDDEN = 32    # hidden width of the synthetic noise-prediction model

    key = jax.random.PRNGKey(0)
    k_x, k_noise, k_w1, k_b1, k_w2, k_b2, k_temb = jax.random.split(key, 7)

    x = jax.random.normal(k_x, (B, C, Hs, Ws), dtype=jnp.float32)

    # Per-step Gaussian noise in image layout (T, B, C, H, W); timestep 0 uses zero
    # noise (matches `noise = randn_like(x_t) if time_step > 0 else 0.0`).
    # Stored in bf16: halves the dominant HBM stream; upcast in-kernel.
    noise = jax.random.normal(k_noise, (T, B, C, Hs, Ws), dtype=jnp.float32)
    noise = noise.at[0].set(0.0).astype(jnp.bfloat16)

    # Deterministic synthetic model parameters (per-pixel MLP == 1x1 convs).
    w1 = 0.1 * jax.random.normal(k_w1, (C, HIDDEN), dtype=jnp.float32)
    b1 = 0.1 * jax.random.normal(k_b1, (1, HIDDEN), dtype=jnp.float32)
    w2 = 0.1 * jax.random.normal(k_w2, (HIDDEN, C), dtype=jnp.float32)
    b2 = 0.1 * jax.random.normal(k_b2, (1, C), dtype=jnp.float32)
    temb = 0.1 * jax.random.normal(k_temb, (T, HIDDEN), dtype=jnp.float32)

    coeffs = make_ddpm_coefficients(T)

    sample_fn = jax.jit(ddpm_sample)
    out = jax.block_until_ready(sample_fn(x, noise, coeffs, temb, w1, b1, w2, b2))

    ref = reference_sample(x, noise, coeffs, temb, w1, b1, w2, b2)
    assert out.shape == (B, C, Hs, Ws)
    assert bool(jnp.all(jnp.isfinite(out)))
    assert bool(jnp.allclose(out, ref, atol=5e-3, rtol=5e-3)), "mismatch vs reference"

    print("KERNEL_OK")
</pallas_src>

<mosaic_0001>
module attributes {stable_mosaic.version = 11 : i64} {
  func.func @ddpm_sample_kernel(%arg0: i32, %arg1: i32, %arg2: i32, %arg3: memref<24xf32, #tpu.memory_space<smem>>, %arg4: memref<1x4x256xf32, #tpu.memory_space<vmem>>, %arg5: memref<8x1x4x256xbf16, #tpu.memory_space<vmem>>, %arg6: memref<8x32x1xf32, #tpu.memory_space<vmem>>, %arg7: memref<32x4xf32, #tpu.memory_space<vmem>>, %arg8: memref<4x32xf32, #tpu.memory_space<vmem>>, %arg9: memref<4x1xf32, #tpu.memory_space<vmem>>, %arg10: memref<1x4x256xf32, #tpu.memory_space<vmem>>) attributes {dimension_semantics = [#tpu.dimension_semantics<parallel>, #tpu.dimension_semantics<parallel>, #tpu.dimension_semantics<arbitrary>], iteration_bounds = array<i64: 2, 1, 1>, scalar_prefetch = 0 : i64, scratch_operands = 0 : i64, tpu.core_type = #tpu.core_type<tc>, window_params = [{transform_indices = @transform_0, window_bounds = array<i64: 24>}, {transform_indices = @transform_1, window_bounds = array<i64: 1, 4, 256>}, {transform_indices = @transform_2, window_bounds = array<i64: 8, 1, 4, 256>}, {transform_indices = @transform_3, window_bounds = array<i64: 8, 32, 1>}, {pipeline_mode = #tpu.pipeline_mode<synchronous>, transform_indices = @transform_4, window_bounds = array<i64: 32, 4>}, {pipeline_mode = #tpu.pipeline_mode<synchronous>, transform_indices = @transform_5, window_bounds = array<i64: 4, 32>}, {pipeline_mode = #tpu.pipeline_mode<synchronous>, transform_indices = @transform_6, window_bounds = array<i64: 4, 1>}, {transform_indices = @transform_7, window_bounds = array<i64: 1, 4, 256>}]} {
    %c8_i32 = arith.constant 8 : i32
    %0 = arith.muli %arg2, %c8_i32 : i32
    %c7_i32 = arith.constant 7 : i32
    %1 = arith.subi %c7_i32, %0 : i32
    %c0_i32 = arith.constant 0 : i32
    %2 = arith.cmpi eq, %arg2, %c0_i32 : i32
    %3 = arith.extui %2 : i1 to i32
    %c0_i32_0 = arith.constant 0 : i32
    %4 = arith.cmpi ne, %3, %c0_i32_0 : i32
    scf.if %4 {
      %c0_127 = arith.constant 0 : index
      %c0_128 = arith.constant 0 : index
      %c0_129 = arith.constant 0 : index
      %312 = vector.load %arg4[%c0_127, %c0_128, %c0_129] : memref<1x4x256xf32, #tpu.memory_space<vmem>>, vector<1x4x256xf32>
      %313 = vector.shape_cast %312 : vector<1x4x256xf32> to vector<4x256xf32>
      %c0_130 = arith.constant 0 : index
      %c0_131 = arith.constant 0 : index
      %c0_132 = arith.constant 0 : index
      %314 = vector.load %arg10[%c0_130, %c0_131, %c0_132] : memref<1x4x256xf32, #tpu.memory_space<vmem>>, vector<1x4x256xf32>
      %315 = vector.shape_cast %314 : vector<1x4x256xf32> to vector<4x256xf32>
      %316 = vector.shape_cast %313 : vector<4x256xf32> to vector<1x4x256xf32>
      tpu.vector_store %arg10[%c0_130, %c0_131, %c0_132], %316 {strides = array<i32>} : memref<1x4x256xf32, #tpu.memory_space<vmem>>, vector<1x4x256xf32>,
    } else {
    }
    %c0 = arith.constant 0 : index
    %c0_1 = arith.constant 0 : index
    %c0_2 = arith.constant 0 : index
    %5 = vector.load %arg10[%c0, %c0_1, %c0_2] : memref<1x4x256xf32, #tpu.memory_space<vmem>>, vector<1x4x256xf32>
    %6 = vector.shape_cast %5 : vector<1x4x256xf32> to vector<4x256xf32>
    %c0_3 = arith.constant 0 : index
    %c0_4 = arith.constant 0 : index
    %7 = vector.load %arg7[%c0_3, %c0_4] : memref<32x4xf32, #tpu.memory_space<vmem>>, vector<32x4xf32>
    %c0_5 = arith.constant 0 : index
    %c0_6 = arith.constant 0 : index
    %8 = vector.load %arg8[%c0_5, %c0_6] : memref<4x32xf32, #tpu.memory_space<vmem>>, vector<4x32xf32>
    %c0_7 = arith.constant 0 : index
    %c0_8 = arith.constant 0 : index
    %9 = vector.load %arg9[%c0_7, %c0_8] : memref<4x1xf32, #tpu.memory_space<vmem>>, vector<4x1xf32>
    %c0_i32_9 = arith.constant 0 : i32
    %10 = arith.subi %1, %c0_i32_9 : i32
    %cst = arith.constant dense<0.000000e+00> : vector<32x256xf32>
    %11 = tpu.matmul %7, %6, %cst {dimension_numbers = #tpu.dot_dimension_numbers<[1], [0], [0], [1], [0, 0, 1, 1], [], []>} : vector<32x4xf32>, vector<4x256xf32>, vector<32x256xf32> -> vector<32x256xf32>
    %c7 = arith.constant 7 : index
    %c0_10 = arith.constant 0 : index
    %c0_11 = arith.constant 0 : index
    %12 = vector.load %arg6[%c7, %c0_10, %c0_11] : memref<8x32x1xf32, #tpu.memory_space<vmem>>, vector<1x32x1xf32>
    %13 = vector.shape_cast %12 : vector<1x32x1xf32> to vector<32x1xf32>
    %14 = vector.broadcast %13 : vector<32x1xf32> to vector<32x256xf32>
    %15 = arith.addf %11, %14 : vector<32x256xf32>
    %16 = arith.negf %15 : vector<32x256xf32>
    %17 = math.exp %16 : vector<32x256xf32>
    %cst_12 = arith.constant 1.000000e+00 : f32
    %18 = vector.broadcast %cst_12 : f32 to vector<32x256xf32>
    %19 = arith.addf %18, %17 : vector<32x256xf32>
    %20 = arith.divf %18, %19 : vector<32x256xf32>
    %21 = arith.mulf %15, %20 : vector<32x256xf32>
    %cst_13 = arith.constant dense<0.000000e+00> : vector<4x256xf32>
    %22 = tpu.matmul %8, %21, %cst_13 {dimension_numbers = #tpu.dot_dimension_numbers<[1], [0], [0], [1], [0, 0, 1, 1], [], []>} : vector<4x32xf32>, vector<32x256xf32>, vector<4x256xf32> -> vector<4x256xf32>
    %23 = vector.broadcast %9 : vector<4x1xf32> to vector<4x256xf32>
    %24 = arith.addf %22, %23 : vector<4x256xf32>
    %c3_i32 = arith.constant 3 : i32
    %25 = arith.muli %c3_i32, %10 : i32
    %26 = arith.index_cast %25 : i32 to index
    %27 = memref.load %arg3[%26] : memref<24xf32, #tpu.memory_space<smem>>
    %c3_i32_14 = arith.constant 3 : i32
    %28 = arith.muli %c3_i32_14, %10 : i32
    %c1_i32 = arith.constant 1 : i32
    %29 = arith.addi %28, %c1_i32 : i32
    %30 = arith.index_cast %29 : i32 to index
    %31 = memref.load %arg3[%30] : memref<24xf32, #tpu.memory_space<smem>>
    %c3_i32_15 = arith.constant 3 : i32
    %32 = arith.muli %c3_i32_15, %10 : i32
    %c2_i32 = arith.constant 2 : i32
    %33 = arith.addi %32, %c2_i32 : i32
    %34 = arith.index_cast %33 : i32 to index
    %35 = memref.load %arg3[%34] : memref<24xf32, #tpu.memory_space<smem>>
    %c7_16 = arith.constant 7 : index
    %c0_17 = arith.constant 0 : index
    %c0_18 = arith.constant 0 : index
    %c0_19 = arith.constant 0 : index
    %36 = vector.load %arg5[%c7_16, %c0_17, %c0_18, %c0_19] : memref<8x1x4x256xbf16, #tpu.memory_space<vmem>>, vector<1x1x4x256xbf16>
    %37 = vector.shape_cast %36 : vector<1x1x4x256xbf16> to vector<4x256xbf16>
    %38 = arith.extf %37 : vector<4x256xbf16> to vector<4x256xf32>
    %39 = vector.broadcast %27 : f32 to vector<4x256xf32>
    %40 = arith.mulf %39, %6 : vector<4x256xf32>
    %41 = vector.broadcast %31 : f32 to vector<4x256xf32>
    %42 = arith.mulf %41, %24 : vector<4x256xf32>
    %43 = arith.subf %40, %42 : vector<4x256xf32>
    %44 = vector.broadcast %35 : f32 to vector<4x256xf32>
    %45 = arith.mulf %44, %38 : vector<4x256xf32>
    %46 = arith.addf %43, %45 : vector<4x256xf32>
    %c1_i32_20 = arith.constant 1 : i32
    %47 = arith.subi %1, %c1_i32_20 : i32
    %cst_21 = arith.constant dense<0.000000e+00> : vector<32x256xf32>
    %48 = tpu.matmul %7, %46, %cst_21 {dimension_numbers = #tpu.dot_dimension_numbers<[1], [0], [0], [1], [0, 0, 1, 1], [], []>} : vector<32x4xf32>, vector<4x256xf32>, vector<32x256xf32> -> vector<32x256xf32>
    %c6 = arith.constant 6 : index
    %c0_22 = arith.constant 0 : index
    %c0_23 = arith.constant 0 : index
    %49 = vector.load %arg6[%c6, %c0_22, %c0_23] : memref<8x32x1xf32, #tpu.memory_space<vmem>>, vector<1x32x1xf32>
    %50 = vector.shape_cast %49 : vector<1x32x1xf32> to vector<32x1xf32>
    %51 = vector.broadcast %50 : vector<32x1xf32> to vector<32x256xf32>
    %52 = arith.addf %48, %51 : vector<32x256xf32>
    %53 = arith.negf %52 : vector<32x256xf32>
    %54 = math.exp %53 : vector<32x256xf32>
    %cst_24 = arith.constant 1.000000e+00 : f32
    %55 = vector.broadcast %cst_24 : f32 to vector<32x256xf32>
    %56 = arith.addf %55, %54 : vector<32x256xf32>
    %57 = arith.divf %55, %56 : vector<32x256xf32>
    %58 = arith.mulf %52, %57 : vector<32x256xf32>
    %cst_25 = arith.constant dense<0.000000e+00> : vector<4x256xf32>
    %59 = tpu.matmul %8, %58, %cst_25 {dimension_numbers = #tpu.dot_dimension_numbers<[1], [0], [0], [1], [0, 0, 1, 1], [], []>} : vector<4x32xf32>, vector<32x256xf32>, vector<4x256xf32> -> vector<4x256xf32>
    %60 = vector.broadcast %9 : vector<4x1xf32> to vector<4x256xf32>
    %61 = arith.addf %59, %60 : vector<4x256xf32>
    %c3_i32_26 = arith.constant 3 : i32
    %62 = arith.muli %c3_i32_26, %47 : i32
    %63 = arith.index_cast %62 : i32 to index
    %64 = memref.load %arg3[%63] : memref<24xf32, #tpu.memory_space<smem>>
    %c3_i32_27 = arith.constant 3 : i32
    %65 = arith.muli %c3_i32_27, %47 : i32
    %c1_i32_28 = arith.constant 1 : i32
    %66 = arith.addi %65, %c1_i32_28 : i32
    %67 = arith.index_cast %66 : i32 to index
    %68 = memref.load %arg3[%67] : memref<24xf32, #tpu.memory_space<smem>>
    %c3_i32_29 = arith.constant 3 : i32
    %69 = arith.muli %c3_i32_29, %47 : i32
    %c2_i32_30 = arith.constant 2 : i32
    %70 = arith.addi %69, %c2_i32_30 : i32
    %71 = arith.index_cast %70 : i32 to index
    %72 = memref.load %arg3[%71] : memref<24xf32, #tpu.memory_space<smem>>
    %c6_31 = arith.constant 6 : index
    %c0_32 = arith.constant 0 : index
    %c0_33 = arith.constant 0 : index
    %c0_34 = arith.constant 0 : index
    %73 = vector.load %arg5[%c6_31, %c0_32, %c0_33, %c0_34] : memref<8x1x4x256xbf16, #tpu.memory_space<vmem>>, vector<1x1x4x256xbf16>
    %74 = vector.shape_cast %73 : vector<1x1x4x256xbf16> to vector<4x256xbf16>
    %75 = arith.extf %74 : vector<4x256xbf16> to vector<4x256xf32>
    %76 = vector.broadcast %64 : f32 to vector<4x256xf32>
    %77 = arith.mulf %76, %46 : vector<4x256xf32>
    %78 = vector.broadcast %68 : f32 to vector<4x256xf32>
    %79 = arith.mulf %78, %61 : vector<4x256xf32>
    %80 = arith.subf %77, %79 : vector<4x256xf32>
    %81 = vector.broadcast %72 : f32 to vector<4x256xf32>
    %82 = arith.mulf %81, %75 : vector<4x256xf32>
    %83 = arith.addf %80, %82 : vector<4x256xf32>
    %c2_i32_35 = arith.constant 2 : i32
    %84 = arith.subi %1, %c2_i32_35 : i32
    %cst_36 = arith.constant dense<0.000000e+00> : vector<32x256xf32>
    %85 = tpu.matmul %7, %83, %cst_36 {dimension_numbers = #tpu.dot_dimension_numbers<[1], [0], [0], [1], [0, 0, 1, 1], [], []>} : vector<32x4xf32>, vector<4x256xf32>, vector<32x256xf32> -> vector<32x256xf32>
    %c5 = arith.constant 5 : index
    %c0_37 = arith.constant 0 : index
    %c0_38 = arith.constant 0 : index
    %86 = vector.load %arg6[%c5, %c0_37, %c0_38] : memref<8x32x1xf32, #tpu.memory_space<vmem>>, vector<1x32x1xf32>
    %87 = vector.shape_cast %86 : vector<1x32x1xf32> to vector<32x1xf32>
    %88 = vector.broadcast %87 : vector<32x1xf32> to vector<32x256xf32>
    %89 = arith.addf %85, %88 : vector<32x256xf32>
    %90 = arith.negf %89 : vector<32x256xf32>
    %91 = math.exp %90 : vector<32x256xf32>
    %cst_39 = arith.constant 1.000000e+00 : f32
    %92 = vector.broadcast %cst_39 : f32 to vector<32x256xf32>
    %93 = arith.addf %92, %91 : vector<32x256xf32>
    %94 = arith.divf %92, %93 : vector<32x256xf32>
    %95 = arith.mulf %89, %94 : vector<32x256xf32>
    %cst_40 = arith.constant dense<0.000000e+00> : vector<4x256xf32>
    %96 = tpu.matmul %8, %95, %cst_40 {dimension_numbers = #tpu.dot_dimension_numbers<[1], [0], [0], [1], [0, 0, 1, 1], [], []>} : vector<4x32xf32>, vector<32x256xf32>, vector<4x256xf32> -> vector<4x256xf32>
    %97 = vector.broadcast %9 : vector<4x1xf32> to vector<4x256xf32>
    %98 = arith.addf %96, %97 : vector<4x256xf32>
    %c3_i32_41 = arith.constant 3 : i32
    %99 = arith.muli %c3_i32_41, %84 : i32
    %100 = arith.index_cast %99 : i32 to index
    %101 = memref.load %arg3[%100] : memref<24xf32, #tpu.memory_space<smem>>
    %c3_i32_42 = arith.constant 3 : i32
    %102 = arith.muli %c3_i32_42, %84 : i32
    %c1_i32_43 = arith.constant 1 : i32
    %103 = arith.addi %102, %c1_i32_43 : i32
    %104 = arith.index_cast %103 : i32 to index
    %105 = memref.load %arg3[%104] : memref<24xf32, #tpu.memory_space<smem>>
    %c3_i32_44 = arith.constant 3 : i32
    %106 = arith.muli %c3_i32_44, %84 : i32
    %c2_i32_45 = arith.constant 2 : i32
    %107 = arith.addi %106, %c2_i32_45 : i32
    %108 = arith.index_cast %107 : i32 to index
    %109 = memref.load %arg3[%108] : memref<24xf32, #tpu.memory_space<smem>>
    %c5_46 = arith.constant 5 : index
    %c0_47 = arith.constant 0 : index
    %c0_48 = arith.constant 0 : index
    %c0_49 = arith.constant 0 : index
    %110 = vector.load %arg5[%c5_46, %c0_47, %c0_48, %c0_49] : memref<8x1x4x256xbf16, #tpu.memory_space<vmem>>, vector<1x1x4x256xbf16>
    %111 = vector.shape_cast %110 : vector<1x1x4x256xbf16> to vector<4x256xbf16>
    %112 = arith.extf %111 : vector<4x256xbf16> to vector<4x256xf32>
    %113 = vector.broadcast %101 : f32 to vector<4x256xf32>
    %114 = arith.mulf %113, %83 : vector<4x256xf32>
    %115 = vector.broadcast %105 : f32 to vector<4x256xf32>
    %116 = arith.mulf %115, %98 : vector<4x256xf32>
    %117 = arith.subf %114, %116 : vector<4x256xf32>
    %118 = vector.broadcast %109 : f32 to vector<4x256xf32>
    %119 = arith.mulf %118, %112 : vector<4x256xf32>
    %120 = arith.addf %117, %119 : vector<4x256xf32>
    %c3_i32_50 = arith.constant 3 : i32
    %121 = arith.subi %1, %c3_i32_50 : i32
    %cst_51 = arith.constant dense<0.000000e+00> : vector<32x256xf32>
    %122 = tpu.matmul %7, %120, %cst_51 {dimension_numbers = #tpu.dot_dimension_numbers<[1], [0], [0], [1], [0, 0, 1, 1], [], []>} : vector<32x4xf32>, vector<4x256xf32>, vector<32x256xf32> -> vector<32x256xf32>
    %c4 = arith.constant 4 : index
    %c0_52 = arith.constant 0 : index
    %c0_53 = arith.constant 0 : index
    %123 = vector.load %arg6[%c4, %c0_52, %c0_53] : memref<8x32x1xf32, #tpu.memory_space<vmem>>, vector<1x32x1xf32>
    %124 = vector.shape_cast %123 : vector<1x32x1xf32> to vector<32x1xf32>
    %125 = vector.broadcast %124 : vector<32x1xf32> to vector<32x256xf32>
    %126 = arith.addf %122, %125 : vector<32x256xf32>
    %127 = arith.negf %126 : vector<32x256xf32>
    %128 = math.exp %127 : vector<32x256xf32>
    %cst_54 = arith.constant 1.000000e+00 : f32
    %129 = vector.broadcast %cst_54 : f32 to vector<32x256xf32>
    %130 = arith.addf %129, %128 : vector<32x256xf32>
    %131 = arith.divf %129, %130 : vector<32x256xf32>
    %132 = arith.mulf %126, %131 : vector<32x256xf32>
    %cst_55 = arith.constant dense<0.000000e+00> : vector<4x256xf32>
    %133 = tpu.matmul %8, %132, %cst_55 {dimension_numbers = #tpu.dot_dimension_numbers<[1], [0], [0], [1], [0, 0, 1, 1], [], []>} : vector<4x32xf32>, vector<32x256xf32>, vector<4x256xf32> -> vector<4x256xf32>
    %134 = vector.broadcast %9 : vector<4x1xf32> to vector<4x256xf32>
    %135 = arith.addf %133, %134 : vector<4x256xf32>
    %c3_i32_56 = arith.constant 3 : i32
    %136 = arith.muli %c3_i32_56, %121 : i32
    %137 = arith.index_cast %136 : i32 to index
    %138 = memref.load %arg3[%137] : memref<24xf32, #tpu.memory_space<smem>>
    %c3_i32_57 = arith.constant 3 : i32
    %139 = arith.muli %c3_i32_57, %121 : i32
    %c1_i32_58 = arith.constant 1 : i32
    %140 = arith.addi %139, %c1_i32_58 : i32
    %141 = arith.index_cast %140 : i32 to index
    %142 = memref.load %arg3[%141] : memref<24xf32, #tpu.memory_space<smem>>
    %c3_i32_59 = arith.constant 3 : i32
    %143 = arith.muli %c3_i32_59, %121 : i32
    %c2_i32_60 = arith.constant 2 : i32
    %144 = arith.addi %143, %c2_i32_60 : i32
    %145 = arith.index_cast %144 : i32 to index
    %146 = memref.load %arg3[%145] : memref<24xf32, #tpu.memory_space<smem>>
    %c4_61 = arith.constant 4 : index
    %c0_62 = arith.constant 0 : index
    %c0_63 = arith.constant 0 : index
    %c0_64 = arith.constant 0 : index
    %147 = vector.load %arg5[%c4_61, %c0_62, %c0_63, %c0_64] : memref<8x1x4x256xbf16, #tpu.memory_space<vmem>>, vector<1x1x4x256xbf16>
    %148 = vector.shape_cast %147 : vector<1x1x4x256xbf16> to vector<4x256xbf16>
    %149 = arith.extf %148 : vector<4x256xbf16> to vector<4x256xf32>
    %150 = vector.broadcast %138 : f32 to vector<4x256xf32>
    %151 = arith.mulf %150, %120 : vector<4x256xf32>
    %152 = vector.broadcast %142 : f32 to vector<4x256xf32>
    %153 = arith.mulf %152, %135 : vector<4x256xf32>
    %154 = arith.subf %151, %153 : vector<4x256xf32>
    %155 = vector.broadcast %146 : f32 to vector<4x256xf32>
    %156 = arith.mulf %155, %149 : vector<4x256xf32>
    %157 = arith.addf %154, %156 : vector<4x256xf32>
    %c4_i32 = arith.constant 4 : i32
    %158 = arith.subi %1, %c4_i32 : i32
    %cst_65 = arith.constant dense<0.000000e+00> : vector<32x256xf32>
    %159 = tpu.matmul %7, %157, %cst_65 {dimension_numbers = #tpu.dot_dimension_numbers<[1], [0], [0], [1], [0, 0, 1, 1], [], []>} : vector<32x4xf32>, vector<4x256xf32>, vector<32x256xf32> -> vector<32x256xf32>
    %c3 = arith.constant 3 : index
    %c0_66 = arith.constant 0 : index
    %c0_67 = arith.constant 0 : index
    %160 = vector.load %arg6[%c3, %c0_66, %c0_67] : memref<8x32x1xf32, #tpu.memory_space<vmem>>, vector<1x32x1xf32>
    %161 = vector.shape_cast %160 : vector<1x32x1xf32> to vector<32x1xf32>
    %162 = vector.broadcast %161 : vector<32x1xf32> to vector<32x256xf32>
    %163 = arith.addf %159, %162 : vector<32x256xf32>
    %164 = arith.negf %163 : vector<32x256xf32>
    %165 = math.exp %164 : vector<32x256xf32>
    %cst_68 = arith.constant 1.000000e+00 : f32
    %166 = vector.broadcast %cst_68 : f32 to vector<32x256xf32>
    %167 = arith.addf %166, %165 : vector<32x256xf32>
    %168 = arith.divf %166, %167 : vector<32x256xf32>
    %169 = arith.mulf %163, %168 : vector<32x256xf32>
    %cst_69 = arith.constant dense<0.000000e+00> : vector<4x256xf32>
    %170 = tpu.matmul %8, %169, %cst_69 {dimension_numbers = #tpu.dot_dimension_numbers<[1], [0], [0], [1], [0, 0, 1, 1], [], []>} : vector<4x32xf32>, vector<32x256xf32>, vector<4x256xf32> -> vector<4x256xf32>
    %171 = vector.broadcast %9 : vector<4x1xf32> to vector<4x256xf32>
    %172 = arith.addf %170, %171 : vector<4x256xf32>
    %c3_i32_70 = arith.constant 3 : i32
    %173 = arith.muli %c3_i32_70, %158 : i32
    %174 = arith.index_cast %173 : i32 to index
    %175 = memref.load %arg3[%174] : memref<24xf32, #tpu.memory_space<smem>>
    %c3_i32_71 = arith.constant 3 : i32
    %176 = arith.muli %c3_i32_71, %158 : i32
    %c1_i32_72 = arith.constant 1 : i32
    %177 = arith.addi %176, %c1_i32_72 : i32
    %178 = arith.index_cast %177 : i32 to index
    %179 = memref.load %arg3[%178] : memref<24xf32, #tpu.memory_space<smem>>
    %c3_i32_73 = arith.constant 3 : i32
    %180 = arith.muli %c3_i32_73, %158 : i32
    %c2_i32_74 = arith.constant 2 : i32
    %181 = arith.addi %180, %c2_i32_74 : i32
    %182 = arith.index_cast %181 : i32 to index
    %183 = memref.load %arg3[%182] : memref<24xf32, #tpu.memory_space<smem>>
    %c3_75 = arith.constant 3 : index
    %c0_76 = arith.constant 0 : index
    %c0_77 = arith.constant 0 : index
    %c0_78 = arith.constant 0 : index
    %184 = vector.load %arg5[%c3_75, %c0_76, %c0_77, %c0_78] : memref<8x1x4x256xbf16, #tpu.memory_space<vmem>>, vector<1x1x4x256xbf16>
    %185 = vector.shape_cast %184 : vector<1x1x4x256xbf16> to vector<4x256xbf16>
    %186 = arith.extf %185 : vector<4x256xbf16> to vector<4x256xf32>
    %187 = vector.broadcast %175 : f32 to vector<4x256xf32>
    %188 = arith.mulf %187, %157 : vector<4x256xf32>
    %189 = vector.broadcast %179 : f32 to vector<4x256xf32>
    %190 = arith.mulf %189, %172 : vector<4x256xf32>
    %191 = arith.subf %188, %190 : vector<4x256xf32>
    %192 = vector.broadcast %183 : f32 to vector<4x256xf32>
    %193 = arith.mulf %192, %186 : vector<4x256xf32>
    %194 = arith.addf %191, %193 : vector<4x256xf32>
    %c5_i32 = arith.constant 5 : i32
    %195 = arith.subi %1, %c5_i32 : i32
    %cst_79 = arith.constant dense<0.000000e+00> : vector<32x256xf32>
    %196 = tpu.matmul %7, %194, %cst_79 {dimension_numbers = #tpu.dot_dimension_numbers<[1], [0], [0], [1], [0, 0, 1, 1], [], []>} : vector<32x4xf32>, vector<4x256xf32>, vector<32x256xf32> -> vector<32x256xf32>
    %c2 = arith.constant 2 : index
    %c0_80 = arith.constant 0 : index
    %c0_81 = arith.constant 0 : index
    %197 = vector.load %arg6[%c2, %c0_80, %c0_81] : memref<8x32x1xf32, #tpu.memory_space<vmem>>, vector<1x32x1xf32>
    %198 = vector.shape_cast %197 : vector<1x32x1xf32> to vector<32x1xf32>
    %199 = vector.broadcast %198 : vector<32x1xf32> to vector<32x256xf32>
    %200 = arith.addf %196, %199 : vector<32x256xf32>
    %201 = arith.negf %200 : vector<32x256xf32>
    %202 = math.exp %201 : vector<32x256xf32>
    %cst_82 = arith.constant 1.000000e+00 : f32
    %203 = vector.broadcast %cst_82 : f32 to vector<32x256xf32>
    %204 = arith.addf %203, %202 : vector<32x256xf32>
    %205 = arith.divf %203, %204 : vector<32x256xf32>
    %206 = arith.mulf %200, %205 : vector<32x256xf32>
    %cst_83 = arith.constant dense<0.000000e+00> : vector<4x256xf32>
    %207 = tpu.matmul %8, %206, %cst_83 {dimension_numbers = #tpu.dot_dimension_numbers<[1], [0], [0], [1], [0, 0, 1, 1], [], []>} : vector<4x32xf32>, vector<32x256xf32>, vector<4x256xf32> -> vector<4x256xf32>
    %208 = vector.broadcast %9 : vector<4x1xf32> to vector<4x256xf32>
    %209 = arith.addf %207, %208 : vector<4x256xf32>
    %c3_i32_84 = arith.constant 3 : i32
    %210 = arith.muli %c3_i32_84, %195 : i32
    %211 = arith.index_cast %210 : i32 to index
    %212 = memref.load %arg3[%211] : memref<24xf32, #tpu.memory_space<smem>>
    %c3_i32_85 = arith.constant 3 : i32
    %213 = arith.muli %c3_i32_85, %195 : i32
    %c1_i32_86 = arith.constant 1 : i32
    %214 = arith.addi %213, %c1_i32_86 : i32
    %215 = arith.index_cast %214 : i32 to index
    %216 = memref.load %arg3[%215] : memref<24xf32, #tpu.memory_space<smem>>
    %c3_i32_87 = arith.constant 3 : i32
    %217 = arith.muli %c3_i32_87, %195 : i32
    %c2_i32_88 = arith.constant 2 : i32
    %218 = arith.addi %217, %c2_i32_88 : i32
    %219 = arith.index_cast %218 : i32 to index
    %220 = memref.load %arg3[%219] : memref<24xf32, #tpu.memory_space<smem>>
    %c2_89 = arith.constant 2 : index
    %c0_90 = arith.constant 0 : index
    %c0_91 = arith.constant 0 : index
    %c0_92 = arith.constant 0 : index
    %221 = vector.load %arg5[%c2_89, %c0_90, %c0_91, %c0_92] : memref<8x1x4x256xbf16, #tpu.memory_space<vmem>>, vector<1x1x4x256xbf16>
    %222 = vector.shape_cast %221 : vector<1x1x4x256xbf16> to vector<4x256xbf16>
    %223 = arith.extf %222 : vector<4x256xbf16> to vector<4x256xf32>
    %224 = vector.broadcast %212 : f32 to vector<4x256xf32>
    %225 = arith.mulf %224, %194 : vector<4x256xf32>
    %226 = vector.broadcast %216 : f32 to vector<4x256xf32>
    %227 = arith.mulf %226, %209 : vector<4x256xf32>
    %228 = arith.subf %225, %227 : vector<4x256xf32>
    %229 = vector.broadcast %220 : f32 to vector<4x256xf32>
    %230 = arith.mulf %229, %223 : vector<4x256xf32>
    %231 = arith.addf %228, %230 : vector<4x256xf32>
    %c6_i32 = arith.constant 6 : i32
    %232 = arith.subi %1, %c6_i32 : i32
    %cst_93 = arith.constant dense<0.000000e+00> : vector<32x256xf32>
    %233 = tpu.matmul %7, %231, %cst_93 {dimension_numbers = #tpu.dot_dimension_numbers<[1], [0], [0], [1], [0, 0, 1, 1], [], []>} : vector<32x4xf32>, vector<4x256xf32>, vector<32x256xf32> -> vector<32x256xf32>
    %c1 = arith.constant 1 : index
    %c0_94 = arith.constant 0 : index
    %c0_95 = arith.constant 0 : index
    %234 = vector.load %arg6[%c1, %c0_94, %c0_95] : memref<8x32x1xf32, #tpu.memory_space<vmem>>, vector<1x32x1xf32>
    %235 = vector.shape_cast %234 : vector<1x32x1xf32> to vector<32x1xf32>
    %236 = vector.broadcast %235 : vector<32x1xf32> to vector<32x256xf32>
    %237 = arith.addf %233, %236 : vector<32x256xf32>
    %238 = arith.negf %237 : vector<32x256xf32>
    %239 = math.exp %238 : vector<32x256xf32>
    %cst_96 = arith.constant 1.000000e+00 : f32
    %240 = vector.broadcast %cst_96 : f32 to vector<32x256xf32>
    %241 = arith.addf %240, %239 : vector<32x256xf32>
    %242 = arith.divf %240, %241 : vector<32x256xf32>
    %243 = arith.mulf %237, %242 : vector<32x256xf32>
    %cst_97 = arith.constant dense<0.000000e+00> : vector<4x256xf32>
    %244 = tpu.matmul %8, %243, %cst_97 {dimension_numbers = #tpu.dot_dimension_numbers<[1], [0], [0], [1], [0, 0, 1, 1], [], []>} : vector<4x32xf32>, vector<32x256xf32>, vector<4x256xf32> -> vector<4x256xf32>
    %245 = vector.broadcast %9 : vector<4x1xf32> to vector<4x256xf32>
    %246 = arith.addf %244, %245 : vector<4x256xf32>
    %c3_i32_98 = arith.constant 3 : i32
    %247 = arith.muli %c3_i32_98, %232 : i32
    %248 = arith.index_cast %247 : i32 to index
    %249 = memref.load %arg3[%248] : memref<24xf32, #tpu.memory_space<smem>>
    %c3_i32_99 = arith.constant 3 : i32
    %250 = arith.muli %c3_i32_99, %232 : i32
    %c1_i32_100 = arith.constant 1 : i32
    %251 = arith.addi %250, %c1_i32_100 : i32
    %252 = arith.index_cast %251 : i32 to index
    %253 = memref.load %arg3[%252] : memref<24xf32, #tpu.memory_space<smem>>
    %c3_i32_101 = arith.constant 3 : i32
    %254 = arith.muli %c3_i32_101, %232 : i32
    %c2_i32_102 = arith.constant 2 : i32
    %255 = arith.addi %254, %c2_i32_102 : i32
    %256 = arith.index_cast %255 : i32 to index
    %257 = memref.load %arg3[%256] : memref<24xf32, #tpu.memory_space<smem>>
    %c1_103 = arith.constant 1 : index
    %c0_104 = arith.constant 0 : index
    %c0_105 = arith.constant 0 : index
    %c0_106 = arith.constant 0 : index
    %258 = vector.load %arg5[%c1_103, %c0_104, %c0_105, %c0_106] : memref<8x1x4x256xbf16, #tpu.memory_space<vmem>>, vector<1x1x4x256xbf16>
    %259 = vector.shape_cast %258 : vector<1x1x4x256xbf16> to vector<4x256xbf16>
    %260 = arith.extf %259 : vector<4x256xbf16> to vector<4x256xf32>
    %261 = vector.broadcast %249 : f32 to vector<4x256xf32>
    %262 = arith.mulf %261, %231 : vector<4x256xf32>
    %263 = vector.broadcast %253 : f32 to vector<4x256xf32>
    %264 = arith.mulf %263, %246 : vector<4x256xf32>
    %265 = arith.subf %262, %264 : vector<4x256xf32>
    %266 = vector.broadcast %257 : f32 to vector<4x256xf32>
    %267 = arith.mulf %266, %260 : vector<4x256xf32>
    %268 = arith.addf %265, %267 : vector<4x256xf32>
    %c7_i32_107 = arith.constant 7 : i32
    %269 = arith.subi %1, %c7_i32_107 : i32
    %cst_108 = arith.constant dense<0.000000e+00> : vector<32x256xf32>
    %270 = tpu.matmul %7, %268, %cst_108 {dimension_numbers = #tpu.dot_dimension_numbers<[1], [0], [0], [1], [0, 0, 1, 1], [], []>} : vector<32x4xf32>, vector<4x256xf32>, vector<32x256xf32> -> vector<32x256xf32>
    %c0_109 = arith.constant 0 : index
    %c0_110 = arith.constant 0 : index
    %c0_111 = arith.constant 0 : index
    %271 = vector.load %arg6[%c0_109, %c0_110, %c0_111] : memref<8x32x1xf32, #tpu.memory_space<vmem>>, vector<1x32x1xf32>
    %272 = vector.shape_cast %271 : vector<1x32x1xf32> to vector<32x1xf32>
    %273 = vector.broadcast %272 : vector<32x1xf32> to vector<32x256xf32>
    %274 = arith.addf %270, %273 : vector<32x256xf32>
    %275 = arith.negf %274 : vector<32x256xf32>
    %276 = math.exp %275 : vector<32x256xf32>
    %cst_112 = arith.constant 1.000000e+00 : f32
    %277 = vector.broadcast %cst_112 : f32 to vector<32x256xf32>
    %278 = arith.addf %277, %276 : vector<32x256xf32>
    %279 = arith.divf %277, %278 : vector<32x256xf32>
    %280 = arith.mulf %274, %279 : vector<32x256xf32>
    %cst_113 = arith.constant dense<0.000000e+00> : vector<4x256xf32>
    %281 = tpu.matmul %8, %280, %cst_113 {dimension_numbers = #tpu.dot_dimension_numbers<[1], [0], [0], [1], [0, 0, 1, 1], [], []>} : vector<4x32xf32>, vector<32x256xf32>, vector<4x256xf32> -> vector<4x256xf32>
    %282 = vector.broadcast %9 : vector<4x1xf32> to vector<4x256xf32>
    %283 = arith.addf %281, %282 : vector<4x256xf32>
    %c3_i32_114 = arith.constant 3 : i32
    %284 = arith.muli %c3_i32_114, %269 : i32
    %285 = arith.index_cast %284 : i32 to index
    %286 = memref.load %arg3[%285] : memref<24xf32, #tpu.memory_space<smem>>
    %c3_i32_115 = arith.constant 3 : i32
    %287 = arith.muli %c3_i32_115, %269 : i32
    %c1_i32_116 = arith.constant 1 : i32
    %288 = arith.addi %287, %c1_i32_116 : i32
    %289 = arith.index_cast %288 : i32 to index
    %290 = memref.load %arg3[%289] : memref<24xf32, #tpu.memory_space<smem>>
    %c3_i32_117 = arith.constant 3 : i32
    %291 = arith.muli %c3_i32_117, %269 : i32
    %c2_i32_118 = arith.constant 2 : i32
    %292 = arith.addi %291, %c2_i32_118 : i32
    %293 = arith.index_cast %292 : i32 to index
    %294 = memref.load %arg3[%293] : memref<24xf32, #tpu.memory_space<smem>>
    %c0_119 = arith.constant 0 : index
    %c0_120 = arith.constant 0 : index
    %c0_121 = arith.constant 0 : index
    %c0_122 = arith.constant 0 : index
    %295 = vector.load %arg5[%c0_119, %c0_120, %c0_121, %c0_122] : memref<8x1x4x256xbf16, #tpu.memory_space<vmem>>, vector<1x1x4x256xbf16>
    %296 = vector.shape_cast %295 : vector<1x1x4x256xbf16> to vector<4x256xbf16>
    %297 = arith.extf %296 : vector<4x256xbf16> to vector<4x256xf32>
    %298 = vector.broadcast %286 : f32 to vector<4x256xf32>
    %299 = arith.mulf %298, %268 : vector<4x256xf32>
    %300 = vector.broadcast %290 : f32 to vector<4x256xf32>
    %301 = arith.mulf %300, %283 : vector<4x256xf32>
    %302 = arith.subf %299, %301 : vector<4x256xf32>
    %303 = vector.broadcast %294 : f32 to vector<4x256xf32>
    %304 = arith.mulf %303, %297 : vector<4x256xf32>
    %305 = arith.addf %302, %304 : vector<4x256xf32>
    %c0_i32_123 = arith.constant 0 : i32
    %306 = arith.cmpi slt, %arg2, %c0_i32_123 : i32
    %307 = arith.extui %306 : i1 to i32
    %c0_i32_124 = arith.constant 0 : i32
    %308 = arith.cmpi ne, %307, %c0_i32_124 : i32
    scf.if %308 {
      %c0_127 = arith.constant 0 : index
      %c0_128 = arith.constant 0 : index
      %c0_129 = arith.constant 0 : index
      %312 = vector.load %arg10[%c0_127, %c0_128, %c0_129] : memref<1x4x256xf32, #tpu.memory_space<vmem>>, vector<1x4x256xf32>
      %313 = vector.shape_cast %312 : vector<1x4x256xf32> to vector<4x256xf32>
      %314 = vector.shape_cast %305 : vector<4x256xf32> to vector<1x4x256xf32>
      tpu.vector_store %arg10[%c0_127, %c0_128, %c0_129], %314 {strides = array<i32>} : memref<1x4x256xf32, #tpu.memory_space<vmem>>, vector<1x4x256xf32>,
    } else {
    }
    %c0_i32_125 = arith.constant 0 : i32
    %309 = arith.cmpi eq, %arg2, %c0_i32_125 : i32
    %310 = arith.extui %309 : i1 to i32
    %c0_i32_126 = arith.constant 0 : i32
    %311 = arith.cmpi ne, %310, %c0_i32_126 : i32
    scf.if %311 {
      %cst_127 = arith.constant -1.000000e+00 : f32
      %cst_128 = arith.constant 1.000000e+00 : f32
      %312 = vector.broadcast %cst_127 : f32 to vector<4x256xf32>
      %313 = arith.maximumf %312, %305 : vector<4x256xf32>
      %314 = vector.broadcast %cst_128 : f32 to vector<4x256xf32>
      %315 = arith.minimumf %314, %313 : vector<4x256xf32>
      %cst_129 = arith.constant 5.000000e-01 : f32
      %316 = vector.broadcast %cst_129 : f32 to vector<4x256xf32>
      %317 = arith.mulf %315, %316 : vector<4x256xf32>
      %cst_130 = arith.constant 5.000000e-01 : f32
      %318 = vector.broadcast %cst_130 : f32 to vector<4x256xf32>
      %319 = arith.addf %317, %318 : vector<4x256xf32>
      %c0_131 = arith.constant 0 : index
      %c0_132 = arith.constant 0 : index
      %c0_133 = arith.constant 0 : index
      %320 = vector.load %arg10[%c0_131, %c0_132, %c0_133] : memref<1x4x256xf32, #tpu.memory_space<vmem>>, vector<1x4x256xf32>
      %321 = vector.shape_cast %320 : vector<1x4x256xf32> to vector<4x256xf32>
      %322 = vector.shape_cast %319 : vector<4x256xf32> to vector<1x4x256xf32>
      tpu.vector_store %arg10[%c0_131, %c0_132, %c0_133], %322 {strides = array<i32>} : memref<1x4x256xf32, #tpu.memory_space<vmem>>, vector<1x4x256xf32>,
    } else {
    }
    return
  }
  func.func @transform_0(%arg0: i32, %arg1: i32, %arg2: i32) -> i32 {
    %c0_i32 = arith.constant 0 : i32
    %c0_i32_0 = arith.constant 0 : i32
    return %c0_i32 : i32
  }
  func.func @transform_1(%arg0: i32, %arg1: i32, %arg2: i32) -> (i32, i32, i32) {
    %c0_i32 = arith.constant 0 : i32
    %c0_i32_0 = arith.constant 0 : i32
    return %arg0, %c0_i32, %arg1 : i32, i32, i32
  }
  func.func @transform_2(%arg0: i32, %arg1: i32, %arg2: i32) -> (i32, i32, i32, i32) {
    %c0_i32 = arith.constant 0 : i32
    %0 = arith.subi %c0_i32, %arg2 : i32
    %c0_i32_0 = arith.constant 0 : i32
    %c0_i32_1 = arith.constant 0 : i32
    return %0, %arg0, %c0_i32_0, %arg1 : i32, i32, i32, i32
  }
  func.func @transform_3(%arg0: i32, %arg1: i32, %arg2: i32) -> (i32, i32, i32) {
    %c0_i32 = arith.constant 0 : i32
    %0 = arith.subi %c0_i32, %arg2 : i32
    %c0_i32_0 = arith.constant 0 : i32
    %c0_i32_1 = arith.constant 0 : i32
    %c0_i32_2 = arith.constant 0 : i32
    return %0, %c0_i32_0, %c0_i32_1 : i32, i32, i32
  }
  func.func @transform_4(%arg0: i32, %arg1: i32, %arg2: i32) -> (i32, i32) {
    %c0_i32 = arith.constant 0 : i32
    %c0_i32_0 = arith.constant 0 : i32
    %c0_i32_1 = arith.constant 0 : i32
    return %c0_i32, %c0_i32_0 : i32, i32
  }
  func.func @transform_5(%arg0: i32, %arg1: i32, %arg2: i32) -> (i32, i32) {
    %c0_i32 = arith.constant 0 : i32
    %c0_i32_0 = arith.constant 0 : i32
    %c0_i32_1 = arith.constant 0 : i32
    return %c0_i32, %c0_i32_0 : i32, i32
  }
  func.func @transform_6(%arg0: i32, %arg1: i32, %arg2: i32) -> (i32, i32) {
    %c0_i32 = arith.constant 0 : i32
    %c0_i32_0 = arith.constant 0 : i32
    %c0_i32_1 = arith.constant 0 : i32
    return %c0_i32, %c0_i32_0 : i32, i32
  }
  func.func @transform_7(%arg0: i32, %arg1: i32, %arg2: i32) -> (i32, i32, i32) {
    %c0_i32 = arith.constant 0 : i32
    %c0_i32_0 = arith.constant 0 : i32
    return %arg0, %c0_i32, %arg1 : i32, i32, i32
  }
}

</mosaic_0001>

<llo_original>
// kernel: ddpm_sample.1
$region0: #{ddpm_sample.1}
  #allocation0 [shape = 'u32[]', space=smem, size = 0x4, offset = 0x4, fixed_abs, tag = 'smem constant byte address 0x4 - core index']
  #allocation1 [shape = 'u32[144,128]{1,0:T(1,128)}', space=vmem, size = 0x12000, scoped, tag = 'internal scratch']
  %s0 = inlined_call_operand.vmem [shape: f32[24], index: 0, kind: input, shape index: {}]
  %s1 = inlined_call_operand.vmem [shape: f32[2,4,256], index: 1, kind: input, shape index: {}]
  %s2 = inlined_call_operand.vmem [shape: bf16[8,2,4,256], index: 2, kind: input, shape index: {}]
  %s3 = inlined_call_operand.vmem [shape: f32[8,32,1], index: 3, kind: input, shape index: {}]
  %s4 = inlined_call_operand.vmem [shape: f32[32,4], index: 4, kind: input, shape index: {}]
  %s5 = inlined_call_operand.vmem [shape: f32[4,32], index: 5, kind: input, shape index: {}]
  %s6 = inlined_call_operand.vmem [shape: f32[4,1], index: 6, kind: input, shape index: {}]
  %s7 = inlined_call_operand.vmem [shape: f32[2,4,256], index: 7, kind: output, shape index: {}]
  %s8 = sld [smem:[#allocation0]]
  $region118: #{ddpm_sample.1} parent=0
    _
  %s10 = ssub.s32 1, %s8
  %s11 = scalar_select 0, %s10, %s8
  $region1: #{ddpm_sample.1} parent=0
    #allocation2 [shape = 'u8[512]{0}', space=smem, size = 0x200, scoped, tag = 'input window, operand 0, single buffered']
    #allocation3 [shape = 's32[2]{0}', space=sflag, size = 0x8, scoped, tag = 'scoped memory for ddpm_sample.1']
    #allocation4 [shape = 'u8[32768]{0}', space=vmem, size = 0x8000, scoped, tag = 'input window, operand 2']
    %12 = vsyncpa [#allocation3], 0
    loop: start=0, step=1, limit=4
    $region2: #{ddpm_sample.1} parent=1 // loop_pre_header
      _
    $region3: #{ddpm_sample.1} parent=1 // loop_header
      %s14 = sphi 0, %s18
      %p15 = scmp.ge.s32.totalorder %s14, 4
      %s21 = sphi 0, %s40
      %s22 = sphi 0, %s36
      %s23 = sphi 0, %s32
      %s24 = sphi 0, %s21
      %s25 = sphi 0, %s22
      %s26 = sphi 0, %s23
      %s27 = sphi 0, %s24
      %s28 = sphi 0, %s25
      %s29 = sphi 0, %s26
      %s41 = sphi 0, %s41
      %s43 = sphi 0, %s41
      %s44 = sphi 0, %s43
      %s58 = sphi 0, %s44
      %s66 = sphi 0, %s68
      %s69 = sphi 0, %s66
      %s70 = sphi 0, %s69
      %s86 = sphi 0, %s70
      %s98 = sphi 0, %s100
      %s101 = sphi 0, %s98
      %s102 = sphi 0, %s101
      %s118 = sphi 0, %s102
      %s126 = sphi 0, %s128
      %s129 = sphi 0, %s126
      %s130 = sphi 0, %s129
      %s146 = sphi 0, %s130
      %s150 = sphi 0, %s150
      %s152 = sphi 0, %s150
      %s153 = sphi 0, %s152
      %s167 = sphi 0, %s153
      %s171 = sphi 0, %s171
      %s173 = sphi 0, %s171
      %s174 = sphi 0, %s173
      %s188 = sphi 0, %s174
      %s192 = sphi 0, %s192
      %s194 = sphi 0, %s192
      %s195 = sphi 0, %s194
      %s209 = sphi 0, %s195
      %s217 = sphi 0, %s219
      %s220 = sphi 0, %s217
      %s221 = sphi 0, %s220
      %s237 = sphi 0, %s221
    $region4: #{ddpm_sample.1} parent=1 // loop_header_branch
      %17 = sbr.rel (%p15) target = $region8
    $region5: #{ddpm_sample.1} parent=1 // loop_body
      %s19 = ssub.s32 %s14, 1
      %s20 = ssub.s32 %s14, 2
      %s30 = sadd.s32 1, %s23
      %p31 = scmp.ge.s32.totalorder %s30, 1
      %s32 = scalar_select %p31, 0, %s30
      %s33 = sadd.s32 1, %s22
      %s34 = scalar_select %p31, %s33, %s22
      %p35 = scmp.ge.s32.totalorder %s34, 1
      %s36 = scalar_select %p35, 0, %s34
      %s37 = sadd.s32 1, %s21
      %s38 = scalar_select %p35, %s37, %s21
      %p39 = scmp.ge.s32.totalorder %s38, 2
      %s40 = scalar_select %p39, 0, %s38
      %s42 = sadd.s32 %s41, 1
      %p45 = scmp.eq.s32.totalorder %s14, 1
      %p46 = scmp.ne.s32.totalorder %s41, %s43
      %p47 = scmp.eq.s32.totalorder %s14, 0
      %p48 = por %p46, %p47
      %p49 = scmp.ne.s32.totalorder %s41, %s43
      %p50 = scmp.eq.s32.totalorder %s19, 1
      %p51 = por %p49, %p50
      %p52 = scmp.ne.s32.totalorder %s43, %s44
      %p53 = scmp.eq.s32.totalorder %s19, 0
      %p54 = por %p52, %p53
      %p55 = scmp.ne.s32.totalorder %s43, %s44
      %p56 = scmp.eq.s32.totalorder %s20, 1
      %p57 = por %p55, %p56
      %p59 = scmp.ne.s32.totalorder %s44, %s58
      %p60 = scmp.eq.s32.totalorder %s20, 0
      %p61 = por %p59, %p60
      %s62 = ssub.s32 %s21, %s40
      %s63 = ssub.s32 %s22, %s36
      %s64 = sor.u32 %s62, %s63
      %p65 = scmp.eq.s32.totalorder %s64, 0
      %s67 = sadd.s32 %s66, 1
      %s68 = scalar_select %p65, %s66, %s67
      %p71 = pneg %p65
      %p72 = scmp.eq.s32.totalorder %s14, 1
      %p73 = por %p71, %p72
      %p74 = scmp.ne.s32.totalorder %s66, %s69
      %p75 = scmp.eq.s32.totalorder %s14, 0
      %p76 = por %p74, %p75
      %p77 = scmp.ne.s32.totalorder %s66, %s69
      %p78 = scmp.eq.s32.totalorder %s19, 1
      %p79 = por %p77, %p78
      %p80 = scmp.ne.s32.totalorder %s69, %s70
      %p81 = scmp.eq.s32.totalorder %s19, 0
      %p82 = por %p80, %p81
      %p83 = scmp.ne.s32.totalorder %s69, %s70
      %p84 = scmp.eq.s32.totalorder %s20, 1
      %p85 = por %p83, %p84
      %p87 = scmp.ne.s32.totalorder %s70, %s86
      %p88 = scmp.eq.s32.totalorder %s20, 0
      %p89 = por %p87, %p88
      %s90 = ssub.s32 0, %s23
      %s91 = ssub.s32 0, %s32
      %s92 = ssub.s32 %s90, %s91
      %s93 = ssub.s32 %s21, %s40
      %s94 = sor.u32 %s92, %s93
      %s95 = ssub.s32 %s22, %s36
      %s96 = sor.u32 %s94, %s95
      %p97 = scmp.eq.s32.totalorder %s96, 0
      %s99 = sadd.s32 %s98, 1
      %s100 = scalar_select %p97, %s98, %s99
      %p103 = pneg %p97
      %p104 = scmp.eq.s32.totalorder %s14, 1
      %p105 = por %p103, %p104
      %p106 = scmp.ne.s32.totalorder %s98, %s101
      %p107 = scmp.eq.s32.totalorder %s14, 0
      %p108 = por %p106, %p107
      %p109 = scmp.ne.s32.totalorder %s98, %s101
      %p110 = scmp.eq.s32.totalorder %s19, 1
      %p111 = por %p109, %p110
      %p112 = scmp.ne.s32.totalorder %s101, %s102
      %p113 = scmp.eq.s32.totalorder %s19, 0
      %p114 = por %p112, %p113
      %p115 = scmp.ne.s32.totalorder %s101, %s102
      %p116 = scmp.eq.s32.totalorder %s20, 1
      %p117 = por %p115, %p116
      %p119 = scmp.ne.s32.totalorder %s102, %s118
      %p120 = scmp.eq.s32.totalorder %s20, 0
      %p121 = por %p119, %p120
      %s122 = ssub.s32 0, %s23
      %s123 = ssub.s32 0, %s32
      %s124 = ssub.s32 %s122, %s123
      %p125 = scmp.eq.s32.totalorder %s124, 0
      %s127 = sadd.s32 %s126, 1
      %s128 = scalar_select %p125, %s126, %s127
      %p131 = pneg %p125
      %p132 = scmp.eq.s32.totalorder %s14, 1
      %p133 = por %p131, %p132
      %p134 = scmp.ne.s32.totalorder %s126, %s129
      %p135 = scmp.eq.s32.totalorder %s14, 0
      %p136 = por %p134, %p135
      %p137 = scmp.ne.s32.totalorder %s126, %s129
      %p138 = scmp.eq.s32.totalorder %s19, 1
      %p139 = por %p137, %p138
      %p140 = scmp.ne.s32.totalorder %s129, %s130
      %p141 = scmp.eq.s32.totalorder %s19, 0
      %p142 = por %p140, %p141
      %p143 = scmp.ne.s32.totalorder %s129, %s130
      %p144 = scmp.eq.s32.totalorder %s20, 1
      %p145 = por %p143, %p144
      %p147 = scmp.ne.s32.totalorder %s130, %s146
      %p148 = scmp.eq.s32.totalorder %s20, 0
      %p149 = por %p147, %p148
      %s151 = sadd.s32 %s150, 1
      %p154 = scmp.eq.s32.totalorder %s14, 1
      %p155 = scmp.ne.s32.totalorder %s150, %s152
      %p156 = scmp.eq.s32.totalorder %s14, 0
      %p157 = por %p155, %p156
      %p158 = scmp.ne.s32.totalorder %s150, %s152
      %p159 = scmp.eq.s32.totalorder %s19, 1
      %p160 = por %p158, %p159
      %p161 = scmp.ne.s32.totalorder %s152, %s153
      %p162 = scmp.eq.s32.totalorder %s19, 0
      %p163 = por %p161, %p162
      %p164 = scmp.ne.s32.totalorder %s152, %s153
      %p165 = scmp.eq.s32.totalorder %s20, 1
      %p166 = por %p164, %p165
      %p168 = scmp.ne.s32.totalorder %s153, %s167
      %p169 = scmp.eq.s32.totalorder %s20, 0
      %p170 = por %p168, %p169
      %s172 = sadd.s32 %s171, 1
      %p175 = scmp.eq.s32.totalorder %s14, 1
      %p176 = scmp.ne.s32.totalorder %s171, %s173
      %p177 = scmp.eq.s32.totalorder %s14, 0
      %p178 = por %p176, %p177
      %p179 = scmp.ne.s32.totalorder %s171, %s173
      %p180 = scmp.eq.s32.totalorder %s19, 1
      %p181 = por %p179, %p180
      %p182 = scmp.ne.s32.totalorder %s173, %s174
      %p183 = scmp.eq.s32.totalorder %s19, 0
      %p184 = por %p182, %p183
      %p185 = scmp.ne.s32.totalorder %s173, %s174
      %p186 = scmp.eq.s32.totalorder %s20, 1
      %p187 = por %p185, %p186
      %p189 = scmp.ne.s32.totalorder %s174, %s188
      %p190 = scmp.eq.s32.totalorder %s20, 0
      %p191 = por %p189, %p190
      %s193 = sadd.s32 %s192, 1
      %p196 = scmp.eq.s32.totalorder %s14, 1
      %p197 = scmp.ne.s32.totalorder %s192, %s194
      %p198 = scmp.eq.s32.totalorder %s14, 0
      %p199 = por %p197, %p198
      %p200 = scmp.ne.s32.totalorder %s192, %s194
      %p201 = scmp.eq.s32.totalorder %s19, 1
      %p202 = por %p200, %p201
      %p203 = scmp.ne.s32.totalorder %s194, %s195
      %p204 = scmp.eq.s32.totalorder %s19, 0
      %p205 = por %p203, %p204
      %p206 = scmp.ne.s32.totalorder %s194, %s195
      %p207 = scmp.eq.s32.totalorder %s20, 1
      %p208 = por %p206, %p207
      %p210 = scmp.ne.s32.totalorder %s195, %s209
      %p211 = scmp.eq.s32.totalorder %s20, 0
      %p212 = por %p210, %p211
      %s213 = ssub.s32 %s21, %s40
      %s214 = ssub.s32 %s22, %s36
      %s215 = sor.u32 %s213, %s214
      %p216 = scmp.eq.s32.totalorder %s215, 0
      %s218 = sadd.s32 %s217, 1
      %s219 = scalar_select %p216, %s217, %s218
      %p222 = pneg %p216
      %p223 = scmp.eq.s32.totalorder %s14, 1
      %p224 = por %p222, %p223
      %p225 = scmp.ne.s32.totalorder %s217, %s220
      %p226 = scmp.eq.s32.totalorder %s14, 0
      %p227 = por %p225, %p226
      %p228 = scmp.ne.s32.totalorder %s217, %s220
      %p229 = scmp.eq.s32.totalorder %s19, 1
      %p230 = por %p228, %p229
      %p231 = scmp.ne.s32.totalorder %s220, %s221
      %p232 = scmp.eq.s32.totalorder %s19, 0
      %p233 = por %p231, %p232
      %p234 = scmp.ne.s32.totalorder %s220, %s221
      %p235 = scmp.eq.s32.totalorder %s20, 1
      %p236 = por %p234, %p235
      %p238 = scmp.ne.s32.totalorder %s221, %s237
      %p239 = scmp.eq.s32.totalorder %s20, 0
      %p240 = por %p238, %p239
      %p241 = scmp.le.s32.totalorder 1, %s14
      %p242 = scmp.lt.s32.totalorder %s14, 3
      %p243 = pnand %p241, %p242
      %p244 = pneg %p243
      // Predicated region
      $region9: #{ddpm_sample.1} parent=5 // pred_check
        _
      $region10: #{ddpm_sample.1} parent=5 // pred_check_branch
        %246 = sbr.rel (%p243) target = $region12
      $region11: #{ddpm_sample.1} parent=5 // pred_region
        %s247 = ssub.s32 %s14, 1
        // Predicated region
        $region13: #{ddpm_sample.1} parent=11 // pred_check
          %p248 = pneg %p54
        $region14: #{ddpm_sample.1} parent=11 // pred_check_branch
          %250 = sbr.rel (%p248) target = $region16
        $region15: #{ddpm_sample.1} parent=11 // pred_region
          %s252 = ssub.s32 16, 16
          %253 = vsyncadd [#allocation3], %s252
          %s255 = sshll.u32 %s0, 4
          %s256 = int_to_ptr.vmem [resolvable:$true] %s255
          %258 = dma.vmem_to_smem %s256, 16, [#allocation2], [#allocation3]
        $region16: #{ddpm_sample.1} parent=11 // pred_fallthru
          _
        // Predicated region
        $region17: #{ddpm_sample.1} parent=11 // pred_check
          %p259 = pneg %p142
        $region18: #{ddpm_sample.1} parent=11 // pred_check_branch
          %261 = sbr.rel (%p259) target = $region20
        $region19: #{ddpm_sample.1} parent=11 // pred_region
          %s262 = ssub.s32 0, %s26
          %s263 = smul.u32 8, %s262
          %p264 = scmp.lt.s32.totalorder %s263, 7
          %s265 = scalar_select %p264, %s263, 7
          %s266 = smul.addr %s265, 4
          %s267 = smul.addr %s266, 8
          %s268 = scalar_lea.vmem %s3, %s267
          %s269 = ssub.s32 0, %s26
          %s270 = smul.u32 8, %s269
        $region20: #{ddpm_sample.1} parent=11 // pred_fallthru
          _
        // Predicated region
        $region21: #{ddpm_sample.1} parent=11 // pred_check
          %p271 = pneg %p163
        $region22: #{ddpm_sample.1} parent=11 // pred_check_branch
          %273 = sbr.rel (%p271) target = $region24
        $region23: #{ddpm_sample.1} parent=11 // pred_region
          _
        $region24: #{ddpm_sample.1} parent=11 // pred_fallthru
          _
        // Predicated region
        $region25: #{ddpm_sample.1} parent=11 // pred_check
          %p274 = pneg %p184
        $region26: #{ddpm_sample.1} parent=11 // pred_check_branch
          %276 = sbr.rel (%p274) target = $region28
        $region27: #{ddpm_sample.1} parent=11 // pred_region
          _
        $region28: #{ddpm_sample.1} parent=11 // pred_fallthru
          _
        // Predicated region
        $region29: #{ddpm_sample.1} parent=11 // pred_check
          %p277 = pneg %p205
        $region30: #{ddpm_sample.1} parent=11 // pred_check_branch
          %279 = sbr.rel (%p277) target = $region32
        $region31: #{ddpm_sample.1} parent=11 // pred_region
          _
        $region32: #{ddpm_sample.1} parent=11 // pred_fallthru
          _
      $region12: #{ddpm_sample.1} parent=5 // pred_fallthru
        _
      %p280 = scmp.lt.s32.totalorder %s14, 2
      // Predicated region
      $region33: #{ddpm_sample.1} parent=5 // pred_check
        %p281 = pneg %p280
      $region34: #{ddpm_sample.1} parent=5 // pred_check_branch
        %283 = sbr.rel (%p281) target = $region36
      $region35: #{ddpm_sample.1} parent=5 // pred_region
        // Predicated region
        $region37: #{ddpm_sample.1} parent=35 // pred_check
          %p284 = pneg %p76
        $region38: #{ddpm_sample.1} parent=35 // pred_check_branch
          %286 = sbr.rel (%p284) target = $region40
        $region39: #{ddpm_sample.1} parent=35 // pred_region
          %s287 = smul.u32 2, %s22
          %p288 = scmp.lt.s32.totalorder %s21, 1
          %s289 = scalar_select %p288, %s21, 1
          %p290 = scmp.lt.s32.totalorder %s287, 1
          %s291 = scalar_select %p290, %s287, 1
          %s292 = smul.addr %s289, 2
          %s293 = sadd.s32 %s291, %s292
          %s294 = smul.addr %s293, 4
          %s295 = scalar_lea.vmem %s1, %s294
          %s296 = smul.u32 2, %s22
        $region40: #{ddpm_sample.1} parent=35 // pred_fallthru
          _
        // Predicated region
        $region41: #{ddpm_sample.1} parent=35 // pred_check
          %p297 = pneg %p108
        $region42: #{ddpm_sample.1} parent=35 // pred_check_branch
          %299 = sbr.rel (%p297) target = $region44
        $region43: #{ddpm_sample.1} parent=35 // pred_region
          %s300 = sand.u32 %s98, 1
          %s301 = sand.u32 %s98, 1
          %s302 = smul.addr %s301, 32
          %s303 = scalar_lea.vmem [#allocation4], %s302
          %s304 = ssub.s32 0, %s23
          %s305 = smul.u32 8, %s304
          %s306 = smul.u32 2, %s22
          %s307 = smul.addr %s21, 2
          %s308 = sadd.s32 %s306, %s307
          %s309 = smul.addr %s305, 4
          %s310 = sadd.s32 %s308, %s309
          %s311 = smul.addr %s310, 2
          %s312 = scalar_lea.vmem %s2, %s311
          // Predicated region
          $region45: #{ddpm_sample.1} parent=43 // pred_check
            _
          $region46: #{ddpm_sample.1} parent=43 // pred_check_branch
            %314 = sbr.rel (0) target = $region48
          $region47: #{ddpm_sample.1} parent=43 // pred_region
            // Predicated region
            $region49: #{ddpm_sample.1} parent=47 // pred_check
              _
            $region50: #{ddpm_sample.1} parent=47 // pred_check_branch
              %316 = sbr.rel target = $region52
            $region51: #{ddpm_sample.1} parent=47 // pred_region
              // Predicated region
              $region64: #{ddpm_sample.1} parent=51 // pred_check
                _
              $region65: #{ddpm_sample.1} parent=51 // pred_check_branch
                %346 = sbr.rel (0) target = $region67
              $region66: #{ddpm_sample.1} parent=51 // pred_region
                loop: start=0, step=1, limit=1
                $region68: #{ddpm_sample.1} parent=66 // loop_pre_header
                  _
                $region69: #{ddpm_sample.1} parent=66 // loop_header
                  %s348 = sphi 0, %s352
                  %p349 = scmp.ge.s32.totalorder %s348, 1
                  %s353 = sphi %s312, %s312
                  %s354 = sphi %s303, %s303
                $region70: #{ddpm_sample.1} parent=66 // loop_header_branch
                  %351 = sbr.rel (%p349) target = $region74
                $region71: #{ddpm_sample.1} parent=66 // loop_body
                  _
                $region72: #{ddpm_sample.1} parent=66 // loop_footer
                  %s352 = sadd.s32 1, %s348
                $region73: #{ddpm_sample.1} parent=66 // loop_footer_branch
                  %347 = sbr.rel target = $region69
                $region74: #{ddpm_sample.1} parent=66 // loop_exit
                  _
                %s356 = ssub.s32 16, 1
                loop: start=0, step=1, limit=1
                $region75: #{ddpm_sample.1} parent=66 // loop_pre_header
                  _
                $region76: #{ddpm_sample.1} parent=66 // loop_header
                  %s358 = sphi 0, %s362
                  %p359 = scmp.ge.s32.totalorder %s358, 1
                  %s363 = sphi %s312, %s312
                  %s364 = sphi %s303, %s303
                $region77: #{ddpm_sample.1} parent=66 // loop_header_branch
                  %361 = sbr.rel (%p359) target = $region81
                $region78: #{ddpm_sample.1} parent=66 // loop_body
                  %v365 = vld [vmem:[%s363] sm:%s356]
                  %366 = vst [vmem:[%s364] sm:%s356] %v365
                  %v367 = vld [vmem:[%s363 + $0x8] sm:%s356]
                  %368 = vst [vmem:[%s364 + $0x4] sm:%s356] %v367
                  %v369 = vld [vmem:[%s363 + $0x10] sm:%s356]
                  %370 = vst [vmem:[%s364 + $0x8] sm:%s356] %v369
                  %v371 = vld [vmem:[%s363 + $0x18] sm:%s356]
                  %372 = vst [vmem:[%s364 + $0xc] sm:%s356] %v371
                  %v373 = vld [vmem:[%s363 + $0x20] sm:%s356]
                  %374 = vst [vmem:[%s364 + $0x10] sm:%s356] %v373
                  %v375 = vld [vmem:[%s363 + $0x28] sm:%s356]
                  %376 = vst [vmem:[%s364 + $0x14] sm:%s356] %v375
                  %v377 = vld [vmem:[%s363 + $0x30] sm:%s356]
                  %378 = vst [vmem:[%s364 + $0x18] sm:%s356] %v377
                  %v379 = vld [vmem:[%s363 + $0x38] sm:%s356]
                  %380 = vst [vmem:[%s364 + $0x1c] sm:%s356] %v379
                $region79: #{ddpm_sample.1} parent=66 // loop_footer
                  %s362 = sadd.s32 1, %s358
                $region80: #{ddpm_sample.1} parent=66 // loop_footer_branch
                  %357 = sbr.rel target = $region76
                $region81: #{ddpm_sample.1} parent=66 // loop_exit
                  _
              $region67: #{ddpm_sample.1} parent=51 // pred_fallthru
                _
            $region52: #{ddpm_sample.1} parent=47 // pred_fallthru
              _
            // Predicated region
            $region53: #{ddpm_sample.1} parent=47 // pred_check
              _
            $region54: #{ddpm_sample.1} parent=47 // pred_check_branch
              %318 = sbr.rel (0) target = $region56
            $region55: #{ddpm_sample.1} parent=47 // pred_region
              %s320 = ssub.s32 16, 1
              loop: start=0, step=1, limit=1
              $region57: #{ddpm_sample.1} parent=55 // loop_pre_header
                _
              $region58: #{ddpm_sample.1} parent=55 // loop_header
                %s322 = sphi 0, %s326
                %p323 = scmp.ge.s32.totalorder %s322, 1
                %s327 = sphi %s312, %s312
                %s328 = sphi %s303, %s303
              $region59: #{ddpm_sample.1} parent=55 // loop_header_branch
                %325 = sbr.rel (%p323) target = $region63
              $region60: #{ddpm_sample.1} parent=55 // loop_body
                %v329 = vld [vmem:[%s327] sm:%s320]
                %330 = vst [vmem:[%s328] sm:%s320] %v329
                %v331 = vld [vmem:[%s327 + $0x8] sm:%s320]
                %332 = vst [vmem:[%s328 + $0x4] sm:%s320] %v331
                %v333 = vld [vmem:[%s327 + $0x10] sm:%s320]
                %334 = vst [vmem:[%s328 + $0x8] sm:%s320] %v333
                %v335 = vld [vmem:[%s327 + $0x18] sm:%s320]
                %336 = vst [vmem:[%s328 + $0xc] sm:%s320] %v335
                %v337 = vld [vmem:[%s327 + $0x20] sm:%s320]
                %338 = vst [vmem:[%s328 + $0x10] sm:%s320] %v337
                %v339 = vld [vmem:[%s327 + $0x28] sm:%s320]
                %340 = vst [vmem:[%s328 + $0x14] sm:%s320] %v339
                %v341 = vld [vmem:[%s327 + $0x30] sm:%s320]
                %342 = vst [vmem:[%s328 + $0x18] sm:%s320] %v341
                %v343 = vld [vmem:[%s327 + $0x38] sm:%s320]
                %344 = vst [vmem:[%s328 + $0x1c] sm:%s320] %v343
              $region61: #{ddpm_sample.1} parent=55 // loop_footer
                %s326 = sadd.s32 1, %s322
              $region62: #{ddpm_sample.1} parent=55 // loop_footer_branch
                %321 = sbr.rel target = $region58
              $region63: #{ddpm_sample.1} parent=55 // loop_exit
                _
            $region56: #{ddpm_sample.1} parent=47 // pred_fallthru
              _
          $region48: #{ddpm_sample.1} parent=43 // pred_fallthru
            _
          %381 = vnop
        $region44: #{ddpm_sample.1} parent=35 // pred_fallthru
          _
      $region36: #{ddpm_sample.1} parent=5 // pred_fallthru
        _
      %p382 = scmp.le.s32.totalorder 1, %s14
      %p383 = scmp.lt.s32.totalorder %s14, 3
      %p384 = pnand %p382, %p383
      %p385 = pneg %p384
      // Predicated region
      $region82: #{ddpm_sample.1} parent=5 // pred_check
        _
      $region83: #{ddpm_sample.1} parent=5 // pred_check_branch
        %387 = sbr.rel (%p384) target = $region85
      $region84: #{ddpm_sample.1} parent=5 // pred_region
        %s388 = ssub.s32 %s14, 1
        // Predicated region
        $region86: #{ddpm_sample.1} parent=84 // pred_check
          %p389 = pneg %p54
        $region87: #{ddpm_sample.1} parent=84 // pred_check_branch
          %391 = sbr.rel (%p389) target = $region89
        $region88: #{ddpm_sample.1} parent=84 // pred_region
          %392 = dma.done [#allocation3], 16
        $region89: #{ddpm_sample.1} parent=84 // pred_fallthru
          _
        %s393 = sand.u32 %s101, 1
        %s394 = sand.u32 %s101, 1
        %s395 = smul.addr %s394, 32
        %s396 = scalar_lea.vmem [#allocation4], %s395
        // Predicated region
        $region90: #{ddpm_sample.1} parent=84 // pred_check
          %p397 = pneg %p114
        $region91: #{ddpm_sample.1} parent=84 // pred_check_branch
          %399 = sbr.rel (%p397) target = $region93
        $region92: #{ddpm_sample.1} parent=84 // pred_region
          _
        $region93: #{ddpm_sample.1} parent=84 // pred_fallthru
          _
        %400 = sfence
        %p401 = pneg %p54
        %p402 = pneg %p51
        %s403 = smul.u32 2, %s25
        %p404 = scmp.lt.s32.totalorder %s24, 1
        %s405 = scalar_select %p404, %s24, 1
        %p406 = scmp.lt.s32.totalorder %s403, 1
        %s407 = scalar_select %p406, %s403, 1
        %s408 = smul.addr %s405, 2
        %s409 = sadd.s32 %s407, %s408
        %s410 = smul.addr %s409, 4
        %s411 = scalar_lea.vmem %s1, %s410
        %p412 = pneg %p82
        %p413 = pneg %p79
        %s414 = sand.u32 %s101, 1
        %s415 = sand.u32 %s101, 1
        %s416 = smul.addr %s415, 32
        %s417 = scalar_lea.vmem [#allocation4], %s416
        %p418 = pneg %p114
        %p419 = pneg %p111
        %s420 = ssub.s32 0, %s26
        %s421 = smul.u32 8, %s420
        %p422 = scmp.lt.s32.totalorder %s421, 7
        %s423 = scalar_select %p422, %s421, 7
        %s424 = smul.addr %s423, 4
        %s425 = smul.addr %s424, 8
        %s426 = scalar_lea.vmem %s3, %s425
        %p427 = pneg %p142
        %p428 = pneg %p139
        %p429 = pneg %p163
        %p430 = pneg %p160
        %p431 = pneg %p184
        %p432 = pneg %p181
        %p433 = pneg %p205
        %p434 = pneg %p202
        %p435 = pneg %p233
        %p436 = pneg %p230
        %s437 = smul.u32 2, %s25
        %p438 = scmp.lt.s32.totalorder %s24, 1
        %s439 = scalar_select %p438, %s24, 1
        %p440 = scmp.lt.s32.totalorder %s437, 1
        %s441 = scalar_select %p440, %s437, 1
        %s442 = smul.addr %s439, 2
        %s443 = sadd.s32 %s441, %s442
        %s444 = smul.addr %s443, 4
        %s445 = scalar_lea.vmem %s7, %s444
        %s446 = smul.u32 2, %s25
        %p447 = scmp.lt.s32.totalorder %s24, 1
        %s448 = scalar_select %p447, %s24, 1
        %p449 = scmp.lt.s32.totalorder %s446, 1
        %s450 = scalar_select %p449, %s446, 1
        %s451 = smul.addr %s448, 2
        %s452 = sadd.s32 %s450, %s451
        %s453 = smul.addr %s452, 4
        %s454 = scalar_lea.vmem %s1, %s453
        %s455 = smul.u32 2, %s25
        %s456 = ssub.s32 0, %s26
        %s457 = smul.u32 8, %s456
        %s458 = smul.u32 2, %s25
        %s459 = ssub.s32 0, %s26
        %s460 = smul.u32 8, %s459
        %p461 = scmp.lt.s32.totalorder %s460, 7
        %s462 = scalar_select %p461, %s460, 7
        %s463 = smul.addr %s462, 4
        %s464 = smul.addr %s463, 8
        %s465 = scalar_lea.vmem %s3, %s464
        %s466 = ssub.s32 0, %s26
        %s467 = smul.u32 8, %s466
        %s468 = smul.u32 2, %s25
        %p469 = scmp.lt.s32.totalorder %s24, 1
        %s470 = scalar_select %p469, %s24, 1
        %p471 = scmp.lt.s32.totalorder %s468, 1
        %s472 = scalar_select %p471, %s468, 1
        %s473 = smul.addr %s470, 2
        %s474 = sadd.s32 %s472, %s473
        %s475 = smul.addr %s474, 4
        %s476 = scalar_lea.vmem %s7, %s475
        %s477 = smul.u32 2, %s25
        %s478 = smul.u32 %s26, 8
        %s479 = ssub.s32 7, %s478
        %p480 = scmp.eq.s32.totalorder %s26, 0
        // Predicated region
        $region94: #{ddpm_sample.1} parent=84 // pred_check
          %p481 = pneg %p480
        $region95: #{ddpm_sample.1} parent=84 // pred_check_branch
          %483 = sbr.rel (%p481) target = $region97
        $region96: #{ddpm_sample.1} parent=84 // pred_region
          %v484 = vld [vmem:[%s454] sm:$0xff]
          %485 = vst [vmem:[%s476] sm:$0xff] %v484
        $region97: #{ddpm_sample.1} parent=84 // pred_fallthru
          _
        %v486 = vld [vmem:[%s476] sm:$0xff]
        %v487 = vld [vmem:[%s4] sm:$0xff]
        %v488 = vld [vmem:[%s4 + $0x8] sm:$0xff]
        %v489 = vld [vmem:[%s4 + $0x10] sm:$0xff]
        %v490 = vld [vmem:[%s4 + $0x18] sm:$0xff]
        %v491 = vld [vmem:[%s5] sm:$0xf]
        %v492 = vld [vmem:[%s6] sm:$0xf]
        %s493 = scalar_lea.vmem %s465, 224
        %v494 = vld [vmem:[%s493] sm:$0xff]
        %v495 = vld [vmem:[%s493 + $0x8] sm:$0xff]
        %v496 = vld [vmem:[%s493 + $0x10] sm:$0xff]
        %v497 = vld [vmem:[%s493 + $0x18] sm:$0xff]
        %499 = vset.pattern.permute.xlu0 0
        %500 = vperm.xlu0 %499, %v494
        %v501 = vpop.permute.xlu0 %500
        %504 = vset.pattern.permute.xlu0 0
        %505 = vperm.xlu0 %504, %v495
        %v506 = vpop.permute.xlu0 %505
        %509 = vset.pattern.permute.xlu0 0
        %510 = vperm.xlu0 %509, %v496
        %v511 = vpop.permute.xlu0 %510
        %514 = vset.pattern.permute.xlu0 0
        %515 = vperm.xlu0 %514, %v497
        %v516 = vpop.permute.xlu0 %515
        %v519 = vcombine.high %v486, %v486
        %vm520 = vcmask 31744
        %v522 = vsel %vm520, %v487, 0
        %v525 = vsel %vm520, %v488, 0
        %v528 = vsel %vm520, %v489, 0
        %v531 = vsel %vm520, %v490, 0
        %vm533 = vcmask 1043456
        %v534 = vsel %vm533, %v486, 0
        %v536 = vsel %vm533, %v519, 0
        %538 = vmatprep.subr.mxu0 0.0
        %539 = vmatpush1.msra.mxu0 0.0
        %540 = vmatprep.subr.mxu0 0.0
        %541 = vmatpush1.msra.mxu0 0.0
        %542 = vmatprep.subr.mxu0 0.0
        %543 = vmatpush1.msra.mxu0 0.0
        %544 = vmatprep.subr.mxu0 0.0
        %545 = vmatpush1.msra.mxu0 0.0
        %546 = vmatprep.subr.mxu0 0.0
        %547 = vmatpush1.msra.mxu0 0.0
        %548 = vmatprep.subr.mxu0 0.0
        %549 = vmatpush1.msra.mxu0 0.0
        %550 = vmatprep.subr.mxu0 0.0
        %551 = vmatpush1.msra.mxu0 0.0
        %552 = vmatprep.subr.mxu0 0.0
        %553 = vmatpush1.msra.mxu0 0.0
        %554 = vmatprep.subr.mxu0 0.0
        %555 = vmatpush1.msra.mxu0 0.0
        %556 = vmatprep.subr.mxu0 0.0
        %557 = vmatpush1.msra.mxu0 0.0
        %558 = vmatprep.subr.mxu0 0.0
        %559 = vmatpush1.msra.mxu0 0.0
        %560 = vmatprep.subr.mxu0 0.0
        %561 = vmatpush1.msra.mxu0 0.0
        %562 = vmatprep.subr.mxu0 0.0
        %563 = vmatpush1.msra.mxu0 0.0
        %564 = vmatprep.subr.mxu0 0.0
        %565 = vmatpush1.msra.mxu0 0.0
        %566 = vmatprep.subr.mxu0 0.0
        %567 = vmatpush1.msra.mxu0 0.0
        %568 = vmatprep.subr.mxu0 %v536
        %569 = vmatpush1.msra.mxu0 %v534
        %570 = vmatprep.subr.mxu0 0.0
        %571 = vmatpush2.msra.mxu0 0.0
        %572 = vmatprep.subr.mxu0 0.0
        %573 = vmatpush2.msra.mxu0 0.0
        %574 = vmatprep.subr.mxu0 0.0
        %575 = vmatpush2.msra.mxu0 0.0
        %576 = vmatprep.subr.mxu0 0.0
        %577 = vmatpush2.msra.mxu0 0.0
        %578 = vmatprep.subr.mxu0 0.0
        %579 = vmatpush2.msra.mxu0 0.0
        %580 = vmatprep.subr.mxu0 0.0
        %581 = vmatpush2.msra.mxu0 0.0
        %582 = vmatprep.subr.mxu0 0.0
        %583 = vmatpush2.msra.mxu0 0.0
        %584 = vmatprep.subr.mxu0 0.0
        %585 = vmatpush2.msra.mxu0 0.0
        %586 = vmatprep.subr.mxu0 0.0
        %587 = vmatpush2.msra.mxu0 0.0
        %588 = vmatprep.subr.mxu0 0.0
        %589 = vmatpush2.msra.mxu0 0.0
        %590 = vmatprep.subr.mxu0 0.0
        %591 = vmatpush2.msra.mxu0 0.0
        %592 = vmatprep.subr.mxu0 0.0
        %593 = vmatpush2.msra.mxu0 0.0
        %594 = vmatprep.subr.mxu0 0.0
        %595 = vmatpush2.msra.mxu0 0.0
        %596 = vmatprep.subr.mxu0 0.0
        %597 = vmatpush2.msra.mxu0 0.0
        %598 = vmatprep.subr.mxu0 0.0
        %599 = vmatpush2.msra.mxu0 0.0
        %600 = vmatprep.subr.mxu0 0.0
        %601 = vmatpush2.msra.mxu0 0.0
        %602 = vmatprep.mubr.f32.mxu0 0.0
        %603 = vmatmul.mubr.f32.gmra.mxu0 %v522
        %v604 = vpop.f32.mrf.mxu0
        %v605 = vadd.f32 %v501, %v604
        %v606 = vpop.f32.mrf.mxu0
        %v607 = vadd.f32 %v501, %v606
        %608 = vmatprep.mubr.f32.mxu0 0.0
        %609 = vmatmul.mubr.f32.gmra.mxu0 %v525
        %v610 = vpop.f32.mrf.mxu0
        %v611 = vadd.f32 %v506, %v610
        %v612 = vpop.f32.mrf.mxu0
        %v613 = vadd.f32 %v506, %v612
        %614 = vmatprep.mubr.f32.mxu0 0.0
        %615 = vmatmul.mubr.f32.gmra.mxu0 %v528
        %v616 = vpop.f32.mrf.mxu0
        %v617 = vadd.f32 %v511, %v616
        %v618 = vpop.f32.mrf.mxu0
        %v619 = vadd.f32 %v511, %v618
        %620 = vmatprep.mubr.f32.mxu0 0.0
        %621 = vmatmul.mubr.f32.gmra.mxu0 %v531
        %v622 = vpop.f32.mrf.mxu0
        %v623 = vadd.f32 %v516, %v622
        %v624 = vpop.f32.mrf.mxu0
        %v625 = vadd.f32 %v516, %v624
        %626 = vdwg.mxu0
        %v627 = vxor.u32 %v605, 2147483648
        %v628 = vxor.u32 %v607, 2147483648
        %v629 = vxor.u32 %v611, 2147483648
        %v630 = vxor.u32 %v613, 2147483648
        %v631 = vxor.u32 %v617, 2147483648
        %v632 = vxor.u32 %v619, 2147483648
        %v633 = vxor.u32 %v623, 2147483648
        %v634 = vxor.u32 %v625, 2147483648
        %v635 = vmul.f32 %v627, 1.442695
        %v636 = vpow.pop %v635
        %v637 = vmul.f32 %v628, 1.442695
        %v638 = vpow.pop %v637
        %v639 = vmul.f32 %v629, 1.442695
        %v640 = vpow.pop %v639
        %v641 = vmul.f32 %v630, 1.442695
        %v642 = vpow.pop %v641
        %v643 = vmul.f32 %v631, 1.442695
        %v644 = vpow.pop %v643
        %v645 = vmul.f32 %v632, 1.442695
        %v646 = vpow.pop %v645
        %v647 = vmul.f32 %v633, 1.442695
        %v648 = vpow.pop %v647
        %v649 = vmul.f32 %v634, 1.442695
        %v650 = vpow.pop %v649
        %v651 = vadd.f32 %v636, 1.0
        %v652 = vadd.f32 %v638, 1.0
        %v653 = vadd.f32 %v640, 1.0
        %v654 = vadd.f32 %v642, 1.0
        %v655 = vadd.f32 %v644, 1.0
        %v656 = vadd.f32 %v646, 1.0
        %v657 = vadd.f32 %v648, 1.0
        %v658 = vadd.f32 %v650, 1.0
        %v659 = vrcp.pop %v651
        %v660 = vmul.f32 1.0, %v659
        %v661 = vrcp.pop %v652
        %v662 = vmul.f32 1.0, %v661
        %v663 = vrcp.pop %v653
        %v664 = vmul.f32 1.0, %v663
        %v665 = vrcp.pop %v654
        %v666 = vmul.f32 1.0, %v665
        %v667 = vrcp.pop %v655
        %v668 = vmul.f32 1.0, %v667
        %v669 = vrcp.pop %v656
        %v670 = vmul.f32 1.0, %v669
        %v671 = vrcp.pop %v657
        %v672 = vmul.f32 1.0, %v671
        %v673 = vrcp.pop %v658
        %v674 = vmul.f32 1.0, %v673
        %v675 = vmul.f32 %v605, %v660
        %v676 = vmul.f32 %v607, %v662
        %v677 = vmul.f32 %v611, %v664
        %v678 = vmul.f32 %v613, %v666
        %v679 = vmul.f32 %v617, %v668
        %v680 = vmul.f32 %v619, %v670
        %v681 = vmul.f32 %v623, %v672
        %v682 = vmul.f32 %v625, %v674
        %684 = vset.pattern.permute.xlu0 0
        %685 = vperm.xlu0 %684, %v492
        %v686 = vpop.permute.xlu0 %685
        %vm688 = vcmask 261120
        %v690 = vsel %vm688, %v491, 0
        %692 = vmatprep.subr.mxu0 0.0
        %693 = vmatpush1.msra.mxu0 0.0
        %694 = vmatprep.subr.mxu0 0.0
        %695 = vmatpush1.msra.mxu0 0.0
        %696 = vmatprep.subr.mxu0 0.0
        %697 = vmatpush1.msra.mxu0 0.0
        %698 = vmatprep.subr.mxu0 0.0
        %699 = vmatpush1.msra.mxu0 0.0
        %700 = vmatprep.subr.mxu0 0.0
        %701 = vmatpush1.msra.mxu0 0.0
        %702 = vmatprep.subr.mxu0 0.0
        %703 = vmatpush1.msra.mxu0 0.0
        %704 = vmatprep.subr.mxu0 0.0
        %705 = vmatpush1.msra.mxu0 0.0
        %706 = vmatprep.subr.mxu0 0.0
        %707 = vmatpush1.msra.mxu0 0.0
        %708 = vmatprep.subr.mxu0 0.0
        %709 = vmatpush1.msra.mxu0 0.0
        %710 = vmatprep.subr.mxu0 0.0
        %711 = vmatpush1.msra.mxu0 0.0
        %712 = vmatprep.subr.mxu0 0.0
        %713 = vmatpush1.msra.mxu0 0.0
        %714 = vmatprep.subr.mxu0 0.0
        %715 = vmatpush1.msra.mxu0 0.0
        %716 = vmatprep.subr.mxu0 %v682
        %717 = vmatpush1.msra.mxu0 %v681
        %718 = vmatprep.subr.mxu0 %v680
        %719 = vmatpush1.msra.mxu0 %v679
        %720 = vmatprep.subr.mxu0 %v678
        %721 = vmatpush1.msra.mxu0 %v677
        %722 = vmatprep.subr.mxu0 %v676
        %723 = vmatpush1.msra.mxu0 %v675
        %724 = vmatprep.subr.mxu0 0.0
        %725 = vmatpush2.msra.mxu0 0.0
        %726 = vmatprep.subr.mxu0 0.0
        %727 = vmatpush2.msra.mxu0 0.0
        %728 = vmatprep.subr.mxu0 0.0
        %729 = vmatpush2.msra.mxu0 0.0
        %730 = vmatprep.subr.mxu0 0.0
        %731 = vmatpush2.msra.mxu0 0.0
        %732 = vmatprep.subr.mxu0 0.0
        %733 = vmatpush2.msra.mxu0 0.0
        %734 = vmatprep.subr.mxu0 0.0
        %735 = vmatpush2.msra.mxu0 0.0
        %736 = vmatprep.subr.mxu0 0.0
        %737 = vmatpush2.msra.mxu0 0.0
        %738 = vmatprep.subr.mxu0 0.0
        %739 = vmatpush2.msra.mxu0 0.0
        %740 = vmatprep.subr.mxu0 0.0
        %741 = vmatpush2.msra.mxu0 0.0
        %742 = vmatprep.subr.mxu0 0.0
        %743 = vmatpush2.msra.mxu0 0.0
        %744 = vmatprep.subr.mxu0 0.0
        %745 = vmatpush2.msra.mxu0 0.0
        %746 = vmatprep.subr.mxu0 0.0
        %747 = vmatpush2.msra.mxu0 0.0
        %748 = vmatprep.subr.mxu0 0.0
        %749 = vmatpush2.msra.mxu0 0.0
        %750 = vmatprep.subr.mxu0 0.0
        %751 = vmatpush2.msra.mxu0 0.0
        %752 = vmatprep.subr.mxu0 0.0
        %753 = vmatpush2.msra.mxu0 0.0
        %754 = vmatprep.subr.mxu0 0.0
        %755 = vmatpush2.msra.mxu0 0.0
        %756 = vmatprep.mubr.f32.mxu0 0.0
        %757 = vmatmul.mubr.f32.gmra.mxu0 %v690
        %v758 = vpop.f32.mrf.mxu0
        %v759 = vadd.f32 %v686, %v758
        %v760 = vpop.f32.mrf.mxu0
        %v761 = vadd.f32 %v686, %v760
        %762 = vdwg.mxu0
        %s763 = smul.u32 %s479, 3
        %s764 = sld [smem:[#allocation2 + %s763]]
        %s765 = sadd.s32 %s763, 1
        %s766 = sld [smem:[#allocation2 + %s765]]
        %s767 = sadd.s32 %s763, 2
        %s768 = sld [smem:[#allocation2 + %s767]]
        %s769 = scalar_lea.vmem %s396, 28 [#allocation4]
        %v770 = vld [vmem:[%s769] sm:$0xf]
        %v771 = vunpack.c.l.bf16 %v770
        %v772 = vstv %s764
        %v773 = vmul.f32 %v772, %v486
        %v774 = vstv %s766
        %v775 = vmul.f32 %v774, %v759
        %v776 = vmul.f32 %v774, %v761
        %v779 = vcombine.low %v775, %v776
        %v781 = vsub.f32 %v773, %v779
        %v782 = vstv %s768
        %v783 = vmul.f32 %v782, %v771
        %v784 = vadd.f32 %v781, %v783
        %s785 = ssub.s32 6, %s478
        %s786 = scalar_lea.vmem %s465, 192
        %v787 = vld [vmem:[%s786] sm:$0xff]
        %v788 = vld [vmem:[%s786 + $0x8] sm:$0xff]
        %v789 = vld [vmem:[%s786 + $0x10] sm:$0xff]
        %v790 = vld [vmem:[%s786 + $0x18] sm:$0xff]
        %792 = vset.pattern.permute.xlu0 0
        %793 = vperm.xlu0 %792, %v787
        %v794 = vpop.permute.xlu0 %793
        %797 = vset.pattern.permute.xlu0 0
        %798 = vperm.xlu0 %797, %v788
        %v799 = vpop.permute.xlu0 %798
        %802 = vset.pattern.permute.xlu0 0
        %803 = vperm.xlu0 %802, %v789
        %v804 = vpop.permute.xlu0 %803
        %807 = vset.pattern.permute.xlu0 0
        %808 = vperm.xlu0 %807, %v790
        %v809 = vpop.permute.xlu0 %808
        %v812 = vcombine.high %v784, %v784
        %v813 = vsel %vm533, %v784, 0
        %v815 = vsel %vm533, %v812, 0
        %817 = vmatprep.subr.mxu0 0.0
        %818 = vmatpush1.msra.mxu0 0.0
        %819 = vmatprep.subr.mxu0 0.0
        %820 = vmatpush1.msra.mxu0 0.0
        %821 = vmatprep.subr.mxu0 0.0
        %822 = vmatpush1.msra.mxu0 0.0
        %823 = vmatprep.subr.mxu0 0.0
        %824 = vmatpush1.msra.mxu0 0.0
        %825 = vmatprep.subr.mxu0 0.0
        %826 = vmatpush1.msra.mxu0 0.0
        %827 = vmatprep.subr.mxu0 0.0
        %828 = vmatpush1.msra.mxu0 0.0
        %829 = vmatprep.subr.mxu0 0.0
        %830 = vmatpush1.msra.mxu0 0.0
        %831 = vmatprep.subr.mxu0 0.0
        %832 = vmatpush1.msra.mxu0 0.0
        %833 = vmatprep.subr.mxu0 0.0
        %834 = vmatpush1.msra.mxu0 0.0
        %835 = vmatprep.subr.mxu0 0.0
        %836 = vmatpush1.msra.mxu0 0.0
        %837 = vmatprep.subr.mxu0 0.0
        %838 = vmatpush1.msra.mxu0 0.0
        %839 = vmatprep.subr.mxu0 0.0
        %840 = vmatpush1.msra.mxu0 0.0
        %841 = vmatprep.subr.mxu0 0.0
        %842 = vmatpush1.msra.mxu0 0.0
        %843 = vmatprep.subr.mxu0 0.0
        %844 = vmatpush1.msra.mxu0 0.0
        %845 = vmatprep.subr.mxu0 0.0
        %846 = vmatpush1.msra.mxu0 0.0
        %847 = vmatprep.subr.mxu0 %v815
        %848 = vmatpush1.msra.mxu0 %v813
        %849 = vmatprep.subr.mxu0 0.0
        %850 = vmatpush2.msra.mxu0 0.0
        %851 = vmatprep.subr.mxu0 0.0
        %852 = vmatpush2.msra.mxu0 0.0
        %853 = vmatprep.subr.mxu0 0.0
        %854 = vmatpush2.msra.mxu0 0.0
        %855 = vmatprep.subr.mxu0 0.0
        %856 = vmatpush2.msra.mxu0 0.0
        %857 = vmatprep.subr.mxu0 0.0
        %858 = vmatpush2.msra.mxu0 0.0
        %859 = vmatprep.subr.mxu0 0.0
        %860 = vmatpush2.msra.mxu0 0.0
        %861 = vmatprep.subr.mxu0 0.0
        %862 = vmatpush2.msra.mxu0 0.0
        %863 = vmatprep.subr.mxu0 0.0
        %864 = vmatpush2.msra.mxu0 0.0
        %865 = vmatprep.subr.mxu0 0.0
        %866 = vmatpush2.msra.mxu0 0.0
        %867 = vmatprep.subr.mxu0 0.0
        %868 = vmatpush2.msra.mxu0 0.0
        %869 = vmatprep.subr.mxu0 0.0
        %870 = vmatpush2.msra.mxu0 0.0
        %871 = vmatprep.subr.mxu0 0.0
        %872 = vmatpush2.msra.mxu0 0.0
        %873 = vmatprep.subr.mxu0 0.0
        %874 = vmatpush2.msra.mxu0 0.0
        %875 = vmatprep.subr.mxu0 0.0
        %876 = vmatpush2.msra.mxu0 0.0
        %877 = vmatprep.subr.mxu0 0.0
        %878 = vmatpush2.msra.mxu0 0.0
        %879 = vmatprep.subr.mxu0 0.0
        %880 = vmatpush2.msra.mxu0 0.0
        %881 = vmatprep.mubr.f32.mxu0 0.0
        %882 = vmatmul.mubr.f32.gmra.mxu0 %v522
        %v883 = vpop.f32.mrf.mxu0
        %v884 = vadd.f32 %v794, %v883
        %v885 = vpop.f32.mrf.mxu0
        %v886 = vadd.f32 %v794, %v885
        %887 = vmatprep.mubr.f32.mxu0 0.0
        %888 = vmatmul.mubr.f32.gmra.mxu0 %v525
        %v889 = vpop.f32.mrf.mxu0
        %v890 = vadd.f32 %v799, %v889
        %v891 = vpop.f32.mrf.mxu0
        %v892 = vadd.f32 %v799, %v891
        %893 = vmatprep.mubr.f32.mxu0 0.0
        %894 = vmatmul.mubr.f32.gmra.mxu0 %v528
        %v895 = vpop.f32.mrf.mxu0
        %v896 = vadd.f32 %v804, %v895
        %v897 = vpop.f32.mrf.mxu0
        %v898 = vadd.f32 %v804, %v897
        %899 = vmatprep.mubr.f32.mxu0 0.0
        %900 = vmatmul.mubr.f32.gmra.mxu0 %v531
        %v901 = vpop.f32.mrf.mxu0
        %v902 = vadd.f32 %v809, %v901
        %v903 = vpop.f32.mrf.mxu0
        %v904 = vadd.f32 %v809, %v903
        %905 = vdwg.mxu0
        %v906 = vxor.u32 %v884, 2147483648
        %v907 = vxor.u32 %v886, 2147483648
        %v908 = vxor.u32 %v890, 2147483648
        %v909 = vxor.u32 %v892, 2147483648
        %v910 = vxor.u32 %v896, 2147483648
        %v911 = vxor.u32 %v898, 2147483648
        %v912 = vxor.u32 %v902, 2147483648
        %v913 = vxor.u32 %v904, 2147483648
        %v914 = vmul.f32 %v906, 1.442695
        %v915 = vpow.pop %v914
        %v916 = vmul.f32 %v907, 1.442695
        %v917 = vpow.pop %v916
        %v918 = vmul.f32 %v908, 1.442695
        %v919 = vpow.pop %v918
        %v920 = vmul.f32 %v909, 1.442695
        %v921 = vpow.pop %v920
        %v922 = vmul.f32 %v910, 1.442695
        %v923 = vpow.pop %v922
        %v924 = vmul.f32 %v911, 1.442695
        %v925 = vpow.pop %v924
        %v926 = vmul.f32 %v912, 1.442695
        %v927 = vpow.pop %v926
        %v928 = vmul.f32 %v913, 1.442695
        %v929 = vpow.pop %v928
        %v930 = vadd.f32 %v915, 1.0
        %v931 = vadd.f32 %v917, 1.0
        %v932 = vadd.f32 %v919, 1.0
        %v933 = vadd.f32 %v921, 1.0
        %v934 = vadd.f32 %v923, 1.0
        %v935 = vadd.f32 %v925, 1.0
        %v936 = vadd.f32 %v927, 1.0
        %v937 = vadd.f32 %v929, 1.0
        %v938 = vrcp.pop %v930
        %v939 = vmul.f32 1.0, %v938
        %v940 = vrcp.pop %v931
        %v941 = vmul.f32 1.0, %v940
        %v942 = vrcp.pop %v932
        %v943 = vmul.f32 1.0, %v942
        %v944 = vrcp.pop %v933
        %v945 = vmul.f32 1.0, %v944
        %v946 = vrcp.pop %v934
        %v947 = vmul.f32 1.0, %v946
        %v948 = vrcp.pop %v935
        %v949 = vmul.f32 1.0, %v948
        %v950 = vrcp.pop %v936
        %v951 = vmul.f32 1.0, %v950
        %v952 = vrcp.pop %v937
        %v953 = vmul.f32 1.0, %v952
        %v954 = vmul.f32 %v884, %v939
        %v955 = vmul.f32 %v886, %v941
        %v956 = vmul.f32 %v890, %v943
        %v957 = vmul.f32 %v892, %v945
        %v958 = vmul.f32 %v896, %v947
        %v959 = vmul.f32 %v898, %v949
        %v960 = vmul.f32 %v902, %v951
        %v961 = vmul.f32 %v904, %v953
        %962 = vmatprep.subr.mxu0 0.0
        %963 = vmatpush1.msra.mxu0 0.0
        %964 = vmatprep.subr.mxu0 0.0
        %965 = vmatpush1.msra.mxu0 0.0
        %966 = vmatprep.subr.mxu0 0.0
        %967 = vmatpush1.msra.mxu0 0.0
        %968 = vmatprep.subr.mxu0 0.0
        %969 = vmatpush1.msra.mxu0 0.0
        %970 = vmatprep.subr.mxu0 0.0
        %971 = vmatpush1.msra.mxu0 0.0
        %972 = vmatprep.subr.mxu0 0.0
        %973 = vmatpush1.msra.mxu0 0.0
        %974 = vmatprep.subr.mxu0 0.0
        %975 = vmatpush1.msra.mxu0 0.0
        %976 = vmatprep.subr.mxu0 0.0
        %977 = vmatpush1.msra.mxu0 0.0
        %978 = vmatprep.subr.mxu0 0.0
        %979 = vmatpush1.msra.mxu0 0.0
        %980 = vmatprep.subr.mxu0 0.0
        %981 = vmatpush1.msra.mxu0 0.0
        %982 = vmatprep.subr.mxu0 0.0
        %983 = vmatpush1.msra.mxu0 0.0
        %984 = vmatprep.subr.mxu0 0.0
        %985 = vmatpush1.msra.mxu0 0.0
        %986 = vmatprep.subr.mxu0 %v961
        %987 = vmatpush1.msra.mxu0 %v960
        %988 = vmatprep.subr.mxu0 %v959
        %989 = vmatpush1.msra.mxu0 %v958
        %990 = vmatprep.subr.mxu0 %v957
        %991 = vmatpush1.msra.mxu0 %v956
        %992 = vmatprep.subr.mxu0 %v955
        %993 = vmatpush1.msra.mxu0 %v954
        %994 = vmatprep.subr.mxu0 0.0
        %995 = vmatpush2.msra.mxu0 0.0
        %996 = vmatprep.subr.mxu0 0.0
        %997 = vmatpush2.msra.mxu0 0.0
        %998 = vmatprep.subr.mxu0 0.0
        %999 = vmatpush2.msra.mxu0 0.0
        %1000 = vmatprep.subr.mxu0 0.0
        %1001 = vmatpush2.msra.mxu0 0.0
        %1002 = vmatprep.subr.mxu0 0.0
        %1003 = vmatpush2.msra.mxu0 0.0
        %1004 = vmatprep.subr.mxu0 0.0
        %1005 = vmatpush2.msra.mxu0 0.0
        %1006 = vmatprep.subr.mxu0 0.0
        %1007 = vmatpush2.msra.mxu0 0.0
        %1008 = vmatprep.subr.mxu0 0.0
        %1009 = vmatpush2.msra.mxu0 0.0
        %1010 = vmatprep.subr.mxu0 0.0
        %1011 = vmatpush2.msra.mxu0 0.0
        %1012 = vmatprep.subr.mxu0 0.0
        %1013 = vmatpush2.msra.mxu0 0.0
        %1014 = vmatprep.subr.mxu0 0.0
        %1015 = vmatpush2.msra.mxu0 0.0
        %1016 = vmatprep.subr.mxu0 0.0
        %1017 = vmatpush2.msra.mxu0 0.0
        %1018 = vmatprep.subr.mxu0 0.0
        %1019 = vmatpush2.msra.mxu0 0.0
        %1020 = vmatprep.subr.mxu0 0.0
        %1021 = vmatpush2.msra.mxu0 0.0
        %1022 = vmatprep.subr.mxu0 0.0
        %1023 = vmatpush2.msra.mxu0 0.0
        %1024 = vmatprep.subr.mxu0 0.0
        %1025 = vmatpush2.msra.mxu0 0.0
        %1026 = vmatprep.mubr.f32.mxu0 0.0
        %1027 = vmatmul.mubr.f32.gmra.mxu0 %v690
        %v1028 = vpop.f32.mrf.mxu0
        %v1029 = vadd.f32 %v686, %v1028
        %v1030 = vpop.f32.mrf.mxu0
        %v1031 = vadd.f32 %v686, %v1030
        %1032 = vdwg.mxu0
        %s1033 = smul.u32 %s785, 3
        %s1034 = sld [smem:[#allocation2 + %s1033]]
        %s1035 = sadd.s32 %s1033, 1
        %s1036 = sld [smem:[#allocation2 + %s1035]]
        %s1037 = sadd.s32 %s1033, 2
        %s1038 = sld [smem:[#allocation2 + %s1037]]
        %s1039 = scalar_lea.vmem %s396, 24 [#allocation4]
        %v1040 = vld [vmem:[%s1039] sm:$0xf]
        %v1041 = vunpack.c.l.bf16 %v1040
        %v1042 = vstv %s1034
        %v1043 = vmul.f32 %v1042, %v784
        %v1044 = vstv %s1036
        %v1045 = vmul.f32 %v1044, %v1029
        %v1046 = vmul.f32 %v1044, %v1031
        %v1049 = vcombine.low %v1045, %v1046
        %v1051 = vsub.f32 %v1043, %v1049
        %v1052 = vstv %s1038
        %v1053 = vmul.f32 %v1052, %v1041
        %v1054 = vadd.f32 %v1051, %v1053
        %s1055 = ssub.s32 5, %s478
        %s1056 = scalar_lea.vmem %s465, 160
        %v1057 = vld [vmem:[%s1056] sm:$0xff]
        %v1058 = vld [vmem:[%s1056 + $0x8] sm:$0xff]
        %v1059 = vld [vmem:[%s1056 + $0x10] sm:$0xff]
        %v1060 = vld [vmem:[%s1056 + $0x18] sm:$0xff]
        %1062 = vset.pattern.permute.xlu0 0
        %1063 = vperm.xlu0 %1062, %v1057
        %v1064 = vpop.permute.xlu0 %1063
        %1067 = vset.pattern.permute.xlu0 0
        %1068 = vperm.xlu0 %1067, %v1058
        %v1069 = vpop.permute.xlu0 %1068
        %1072 = vset.pattern.permute.xlu0 0
        %1073 = vperm.xlu0 %1072, %v1059
        %v1074 = vpop.permute.xlu0 %1073
        %1077 = vset.pattern.permute.xlu0 0
        %1078 = vperm.xlu0 %1077, %v1060
        %v1079 = vpop.permute.xlu0 %1078
        %v1082 = vcombine.high %v1054, %v1054
        %v1083 = vsel %vm533, %v1054, 0
        %v1085 = vsel %vm533, %v1082, 0
        %1087 = vmatprep.subr.mxu0 0.0
        %1088 = vmatpush1.msra.mxu0 0.0
        %1089 = vmatprep.subr.mxu0 0.0
        %1090 = vmatpush1.msra.mxu0 0.0
        %1091 = vmatprep.subr.mxu0 0.0
        %1092 = vmatpush1.msra.mxu0 0.0
        %1093 = vmatprep.subr.mxu0 0.0
        %1094 = vmatpush1.msra.mxu0 0.0
        %1095 = vmatprep.subr.mxu0 0.0
        %1096 = vmatpush1.msra.mxu0 0.0
        %1097 = vmatprep.subr.mxu0 0.0
        %1098 = vmatpush1.msra.mxu0 0.0
        %1099 = vmatprep.subr.mxu0 0.0
        %1100 = vmatpush1.msra.mxu0 0.0
        %1101 = vmatprep.subr.mxu0 0.0
        %1102 = vmatpush1.msra.mxu0 0.0
        %1103 = vmatprep.subr.mxu0 0.0
        %1104 = vmatpush1.msra.mxu0 0.0
        %1105 = vmatprep.subr.mxu0 0.0
        %1106 = vmatpush1.msra.mxu0 0.0
        %1107 = vmatprep.subr.mxu0 0.0
        %1108 = vmatpush1.msra.mxu0 0.0
        %1109 = vmatprep.subr.mxu0 0.0
        %1110 = vmatpush1.msra.mxu0 0.0
        %1111 = vmatprep.subr.mxu0 0.0
        %1112 = vmatpush1.msra.mxu0 0.0
        %1113 = vmatprep.subr.mxu0 0.0
        %1114 = vmatpush1.msra.mxu0 0.0
        %1115 = vmatprep.subr.mxu0 0.0
        %1116 = vmatpush1.msra.mxu0 0.0
        %1117 = vmatprep.subr.mxu0 %v1085
        %1118 = vmatpush1.msra.mxu0 %v1083
        %1119 = vmatprep.subr.mxu0 0.0
        %1120 = vmatpush2.msra.mxu0 0.0
        %1121 = vmatprep.subr.mxu0 0.0
        %1122 = vmatpush2.msra.mxu0 0.0
        %1123 = vmatprep.subr.mxu0 0.0
        %1124 = vmatpush2.msra.mxu0 0.0
        %1125 = vmatprep.subr.mxu0 0.0
        %1126 = vmatpush2.msra.mxu0 0.0
        %1127 = vmatprep.subr.mxu0 0.0
        %1128 = vmatpush2.msra.mxu0 0.0
        %1129 = vmatprep.subr.mxu0 0.0
        %1130 = vmatpush2.msra.mxu0 0.0
        %1131 = vmatprep.subr.mxu0 0.0
        %1132 = vmatpush2.msra.mxu0 0.0
        %1133 = vmatprep.subr.mxu0 0.0
        %1134 = vmatpush2.msra.mxu0 0.0
        %1135 = vmatprep.subr.mxu0 0.0
        %1136 = vmatpush2.msra.mxu0 0.0
        %1137 = vmatprep.subr.mxu0 0.0
        %1138 = vmatpush2.msra.mxu0 0.0
        %1139 = vmatprep.subr.mxu0 0.0
        %1140 = vmatpush2.msra.mxu0 0.0
        %1141 = vmatprep.subr.mxu0 0.0
        %1142 = vmatpush2.msra.mxu0 0.0
        %1143 = vmatprep.subr.mxu0 0.0
        %1144 = vmatpush2.msra.mxu0 0.0
        %1145 = vmatprep.subr.mxu0 0.0
        %1146 = vmatpush2.msra.mxu0 0.0
        %1147 = vmatprep.subr.mxu0 0.0
        %1148 = vmatpush2.msra.mxu0 0.0
        %1149 = vmatprep.subr.mxu0 0.0
        %1150 = vmatpush2.msra.mxu0 0.0
        %1151 = vmatprep.mubr.f32.mxu0 0.0
        %1152 = vmatmul.mubr.f32.gmra.mxu0 %v522
        %v1153 = vpop.f32.mrf.mxu0
        %v1154 = vadd.f32 %v1064, %v1153
        %v1155 = vpop.f32.mrf.mxu0
        %v1156 = vadd.f32 %v1064, %v1155
        %1157 = vmatprep.mubr.f32.mxu0 0.0
        %1158 = vmatmul.mubr.f32.gmra.mxu0 %v525
        %v1159 = vpop.f32.mrf.mxu0
        %v1160 = vadd.f32 %v1069, %v1159
        %v1161 = vpop.f32.mrf.mxu0
        %v1162 = vadd.f32 %v1069, %v1161
        %1163 = vmatprep.mubr.f32.mxu0 0.0
        %1164 = vmatmul.mubr.f32.gmra.mxu0 %v528
        %v1165 = vpop.f32.mrf.mxu0
        %v1166 = vadd.f32 %v1074, %v1165
        %v1167 = vpop.f32.mrf.mxu0
        %v1168 = vadd.f32 %v1074, %v1167
        %1169 = vmatprep.mubr.f32.mxu0 0.0
        %1170 = vmatmul.mubr.f32.gmra.mxu0 %v531
        %v1171 = vpop.f32.mrf.mxu0
        %v1172 = vadd.f32 %v1079, %v1171
        %v1173 = vpop.f32.mrf.mxu0
        %v1174 = vadd.f32 %v1079, %v1173
        %1175 = vdwg.mxu0
        %v1176 = vxor.u32 %v1154, 2147483648
        %v1177 = vxor.u32 %v1156, 2147483648
        %v1178 = vxor.u32 %v1160, 2147483648
        %v1179 = vxor.u32 %v1162, 2147483648
        %v1180 = vxor.u32 %v1166, 2147483648
        %v1181 = vxor.u32 %v1168, 2147483648
        %v1182 = vxor.u32 %v1172, 2147483648
        %v1183 = vxor.u32 %v1174, 2147483648
        %v1184 = vmul.f32 %v1176, 1.442695
        %v1185 = vpow.pop %v1184
        %v1186 = vmul.f32 %v1177, 1.442695
        %v1187 = vpow.pop %v1186
        %v1188 = vmul.f32 %v1178, 1.442695
        %v1189 = vpow.pop %v1188
        %v1190 = vmul.f32 %v1179, 1.442695
        %v1191 = vpow.pop %v1190
        %v1192 = vmul.f32 %v1180, 1.442695
        %v1193 = vpow.pop %v1192
        %v1194 = vmul.f32 %v1181, 1.442695
        %v1195 = vpow.pop %v1194
        %v1196 = vmul.f32 %v1182, 1.442695
        %v1197 = vpow.pop %v1196
        %v1198 = vmul.f32 %v1183, 1.442695
        %v1199 = vpow.pop %v1198
        %v1200 = vadd.f32 %v1185, 1.0
        %v1201 = vadd.f32 %v1187, 1.0
        %v1202 = vadd.f32 %v1189, 1.0
        %v1203 = vadd.f32 %v1191, 1.0
        %v1204 = vadd.f32 %v1193, 1.0
        %v1205 = vadd.f32 %v1195, 1.0
        %v1206 = vadd.f32 %v1197, 1.0
        %v1207 = vadd.f32 %v1199, 1.0
        %v1208 = vrcp.pop %v1200
        %v1209 = vmul.f32 1.0, %v1208
        %v1210 = vrcp.pop %v1201
        %v1211 = vmul.f32 1.0, %v1210
        %v1212 = vrcp.pop %v1202
        %v1213 = vmul.f32 1.0, %v1212
        %v1214 = vrcp.pop %v1203
        %v1215 = vmul.f32 1.0, %v1214
        %v1216 = vrcp.pop %v1204
        %v1217 = vmul.f32 1.0, %v1216
        %v1218 = vrcp.pop %v1205
        %v1219 = vmul.f32 1.0, %v1218
        %v1220 = vrcp.pop %v1206
        %v1221 = vmul.f32 1.0, %v1220
        %v1222 = vrcp.pop %v1207
        %v1223 = vmul.f32 1.0, %v1222
        %v1224 = vmul.f32 %v1154, %v1209
        %v1225 = vmul.f32 %v1156, %v1211
        %v1226 = vmul.f32 %v1160, %v1213
        %v1227 = vmul.f32 %v1162, %v1215
        %v1228 = vmul.f32 %v1166, %v1217
        %v1229 = vmul.f32 %v1168, %v1219
        %v1230 = vmul.f32 %v1172, %v1221
        %v1231 = vmul.f32 %v1174, %v1223
        %1232 = vmatprep.subr.mxu0 0.0
        %1233 = vmatpush1.msra.mxu0 0.0
        %1234 = vmatprep.subr.mxu0 0.0
        %1235 = vmatpush1.msra.mxu0 0.0
        %1236 = vmatprep.subr.mxu0 0.0
        %1237 = vmatpush1.msra.mxu0 0.0
        %1238 = vmatprep.subr.mxu0 0.0
        %1239 = vmatpush1.msra.mxu0 0.0
        %1240 = vmatprep.subr.mxu0 0.0
        %1241 = vmatpush1.msra.mxu0 0.0
        %1242 = vmatprep.subr.mxu0 0.0
        %1243 = vmatpush1.msra.mxu0 0.0
        %1244 = vmatprep.subr.mxu0 0.0
        %1245 = vmatpush1.msra.mxu0 0.0
        %1246 = vmatprep.subr.mxu0 0.0
        %1247 = vmatpush1.msra.mxu0 0.0
        %1248 = vmatprep.subr.mxu0 0.0
        %1249 = vmatpush1.msra.mxu0 0.0
        %1250 = vmatprep.subr.mxu0 0.0
        %1251 = vmatpush1.msra.mxu0 0.0
        %1252 = vmatprep.subr.mxu0 0.0
        %1253 = vmatpush1.msra.mxu0 0.0
        %1254 = vmatprep.subr.mxu0 0.0
        %1255 = vmatpush1.msra.mxu0 0.0
        %1256 = vmatprep.subr.mxu0 %v1231
        %1257 = vmatpush1.msra.mxu0 %v1230
        %1258 = vmatprep.subr.mxu0 %v1229
        %1259 = vmatpush1.msra.mxu0 %v1228
        %1260 = vmatprep.subr.mxu0 %v1227
        %1261 = vmatpush1.msra.mxu0 %v1226
        %1262 = vmatprep.subr.mxu0 %v1225
        %1263 = vmatpush1.msra.mxu0 %v1224
        %1264 = vmatprep.subr.mxu0 0.0
        %1265 = vmatpush2.msra.mxu0 0.0
        %1266 = vmatprep.subr.mxu0 0.0
        %1267 = vmatpush2.msra.mxu0 0.0
        %1268 = vmatprep.subr.mxu0 0.0
        %1269 = vmatpush2.msra.mxu0 0.0
        %1270 = vmatprep.subr.mxu0 0.0
        %1271 = vmatpush2.msra.mxu0 0.0
        %1272 = vmatprep.subr.mxu0 0.0
        %1273 = vmatpush2.msra.mxu0 0.0
        %1274 = vmatprep.subr.mxu0 0.0
        %1275 = vmatpush2.msra.mxu0 0.0
        %1276 = vmatprep.subr.mxu0 0.0
        %1277 = vmatpush2.msra.mxu0 0.0
        %1278 = vmatprep.subr.mxu0 0.0
        %1279 = vmatpush2.msra.mxu0 0.0
        %1280 = vmatprep.subr.mxu0 0.0
        %1281 = vmatpush2.msra.mxu0 0.0
        %1282 = vmatprep.subr.mxu0 0.0
        %1283 = vmatpush2.msra.mxu0 0.0
        %1284 = vmatprep.subr.mxu0 0.0
        %1285 = vmatpush2.msra.mxu0 0.0
        %1286 = vmatprep.subr.mxu0 0.0
        %1287 = vmatpush2.msra.mxu0 0.0
        %1288 = vmatprep.subr.mxu0 0.0
        %1289 = vmatpush2.msra.mxu0 0.0
        %1290 = vmatprep.subr.mxu0 0.0
        %1291 = vmatpush2.msra.mxu0 0.0
        %1292 = vmatprep.subr.mxu0 0.0
        %1293 = vmatpush2.msra.mxu0 0.0
        %1294 = vmatprep.subr.mxu0 0.0
        %1295 = vmatpush2.msra.mxu0 0.0
        %1296 = vmatprep.mubr.f32.mxu0 0.0
        %1297 = vmatmul.mubr.f32.gmra.mxu0 %v690
        %v1298 = vpop.f32.mrf.mxu0
        %v1299 = vadd.f32 %v686, %v1298
        %v1300 = vpop.f32.mrf.mxu0
        %v1301 = vadd.f32 %v686, %v1300
        %1302 = vdwg.mxu0
        %s1303 = smul.u32 %s1055, 3
        %s1304 = sld [smem:[#allocation2 + %s1303]]
        %s1305 = sadd.s32 %s1303, 1
        %s1306 = sld [smem:[#allocation2 + %s1305]]
        %s1307 = sadd.s32 %s1303, 2
        %s1308 = sld [smem:[#allocation2 + %s1307]]
        %s1309 = scalar_lea.vmem %s396, 20 [#allocation4]
        %v1310 = vld [vmem:[%s1309] sm:$0xf]
        %v1311 = vunpack.c.l.bf16 %v1310
        %v1312 = vstv %s1304
        %v1313 = vmul.f32 %v1312, %v1054
        %v1314 = vstv %s1306
        %v1315 = vmul.f32 %v1314, %v1299
        %v1316 = vmul.f32 %v1314, %v1301
        %v1319 = vcombine.low %v1315, %v1316
        %v1321 = vsub.f32 %v1313, %v1319
        %v1322 = vstv %s1308
        %v1323 = vmul.f32 %v1322, %v1311
        %v1324 = vadd.f32 %v1321, %v1323
        %s1325 = ssub.s32 4, %s478
        %s1326 = scalar_lea.vmem %s465, 128
        %v1327 = vld [vmem:[%s1326] sm:$0xff]
        %v1328 = vld [vmem:[%s1326 + $0x8] sm:$0xff]
        %v1329 = vld [vmem:[%s1326 + $0x10] sm:$0xff]
        %v1330 = vld [vmem:[%s1326 + $0x18] sm:$0xff]
        %1332 = vset.pattern.permute.xlu0 0
        %1333 = vperm.xlu0 %1332, %v1327
        %v1334 = vpop.permute.xlu0 %1333
        %1337 = vset.pattern.permute.xlu0 0
        %1338 = vperm.xlu0 %1337, %v1328
        %v1339 = vpop.permute.xlu0 %1338
        %1342 = vset.pattern.permute.xlu0 0
        %1343 = vperm.xlu0 %1342, %v1329
        %v1344 = vpop.permute.xlu0 %1343
        %1347 = vset.pattern.permute.xlu0 0
        %1348 = vperm.xlu0 %1347, %v1330
        %v1349 = vpop.permute.xlu0 %1348
        %v1352 = vcombine.high %v1324, %v1324
        %v1353 = vsel %vm533, %v1324, 0
        %v1355 = vsel %vm533, %v1352, 0
        %1357 = vmatprep.subr.mxu0 0.0
        %1358 = vmatpush1.msra.mxu0 0.0
        %1359 = vmatprep.subr.mxu0 0.0
        %1360 = vmatpush1.msra.mxu0 0.0
        %1361 = vmatprep.subr.mxu0 0.0
        %1362 = vmatpush1.msra.mxu0 0.0
        %1363 = vmatprep.subr.mxu0 0.0
        %1364 = vmatpush1.msra.mxu0 0.0
        %1365 = vmatprep.subr.mxu0 0.0
        %1366 = vmatpush1.msra.mxu0 0.0
        %1367 = vmatprep.subr.mxu0 0.0
        %1368 = vmatpush1.msra.mxu0 0.0
        %1369 = vmatprep.subr.mxu0 0.0
        %1370 = vmatpush1.msra.mxu0 0.0
        %1371 = vmatprep.subr.mxu0 0.0
        %1372 = vmatpush1.msra.mxu0 0.0
        %1373 = vmatprep.subr.mxu0 0.0
        %1374 = vmatpush1.msra.mxu0 0.0
        %1375 = vmatprep.subr.mxu0 0.0
        %1376 = vmatpush1.msra.mxu0 0.0
        %1377 = vmatprep.subr.mxu0 0.0
        %1378 = vmatpush1.msra.mxu0 0.0
        %1379 = vmatprep.subr.mxu0 0.0
        %1380 = vmatpush1.msra.mxu0 0.0
        %1381 = vmatprep.subr.mxu0 0.0
        %1382 = vmatpush1.msra.mxu0 0.0
        %1383 = vmatprep.subr.mxu0 0.0
        %1384 = vmatpush1.msra.mxu0 0.0
        %1385 = vmatprep.subr.mxu0 0.0
        %1386 = vmatpush1.msra.mxu0 0.0
        %1387 = vmatprep.subr.mxu0 %v1355
        %1388 = vmatpush1.msra.mxu0 %v1353
        %1389 = vmatprep.subr.mxu0 0.0
        %1390 = vmatpush2.msra.mxu0 0.0
        %1391 = vmatprep.subr.mxu0 0.0
        %1392 = vmatpush2.msra.mxu0 0.0
        %1393 = vmatprep.subr.mxu0 0.0
        %1394 = vmatpush2.msra.mxu0 0.0
        %1395 = vmatprep.subr.mxu0 0.0
        %1396 = vmatpush2.msra.mxu0 0.0
        %1397 = vmatprep.subr.mxu0 0.0
        %1398 = vmatpush2.msra.mxu0 0.0
        %1399 = vmatprep.subr.mxu0 0.0
        %1400 = vmatpush2.msra.mxu0 0.0
        %1401 = vmatprep.subr.mxu0 0.0
        %1402 = vmatpush2.msra.mxu0 0.0
        %1403 = vmatprep.subr.mxu0 0.0
        %1404 = vmatpush2.msra.mxu0 0.0
        %1405 = vmatprep.subr.mxu0 0.0
        %1406 = vmatpush2.msra.mxu0 0.0
        %1407 = vmatprep.subr.mxu0 0.0
        %1408 = vmatpush2.msra.mxu0 0.0
        %1409 = vmatprep.subr.mxu0 0.0
        %1410 = vmatpush2.msra.mxu0 0.0
        %1411 = vmatprep.subr.mxu0 0.0
        %1412 = vmatpush2.msra.mxu0 0.0
        %1413 = vmatprep.subr.mxu0 0.0
        %1414 = vmatpush2.msra.mxu0 0.0
        %1415 = vmatprep.subr.mxu0 0.0
        %1416 = vmatpush2.msra.mxu0 0.0
        %1417 = vmatprep.subr.mxu0 0.0
        %1418 = vmatpush2.msra.mxu0 0.0
        %1419 = vmatprep.subr.mxu0 0.0
        %1420 = vmatpush2.msra.mxu0 0.0
        %1421 = vmatprep.mubr.f32.mxu0 0.0
        %1422 = vmatmul.mubr.f32.gmra.mxu0 %v522
        %v1423 = vpop.f32.mrf.mxu0
        %v1424 = vadd.f32 %v1334, %v1423
        %v1425 = vpop.f32.mrf.mxu0
        %v1426 = vadd.f32 %v1334, %v1425
        %1427 = vmatprep.mubr.f32.mxu0 0.0
        %1428 = vmatmul.mubr.f32.gmra.mxu0 %v525
        %v1429 = vpop.f32.mrf.mxu0
        %v1430 = vadd.f32 %v1339, %v1429
        %v1431 = vpop.f32.mrf.mxu0
        %v1432 = vadd.f32 %v1339, %v1431
        %1433 = vmatprep.mubr.f32.mxu0 0.0
        %1434 = vmatmul.mubr.f32.gmra.mxu0 %v528
        %v1435 = vpop.f32.mrf.mxu0
        %v1436 = vadd.f32 %v1344, %v1435
        %v1437 = vpop.f32.mrf.mxu0
        %v1438 = vadd.f32 %v1344, %v1437
        %1439 = vmatprep.mubr.f32.mxu0 0.0
        %1440 = vmatmul.mubr.f32.gmra.mxu0 %v531
        %v1441 = vpop.f32.mrf.mxu0
        %v1442 = vadd.f32 %v1349, %v1441
        %v1443 = vpop.f32.mrf.mxu0
        %v1444 = vadd.f32 %v1349, %v1443
        %1445 = vdwg.mxu0
        %v1446 = vxor.u32 %v1424, 2147483648
        %v1447 = vxor.u32 %v1426, 2147483648
        %v1448 = vxor.u32 %v1430, 2147483648
        %v1449 = vxor.u32 %v1432, 2147483648
        %v1450 = vxor.u32 %v1436, 2147483648
        %v1451 = vxor.u32 %v1438, 2147483648
        %v1452 = vxor.u32 %v1442, 2147483648
        %v1453 = vxor.u32 %v1444, 2147483648
        %v1454 = vmul.f32 %v1446, 1.442695
        %v1455 = vpow.pop %v1454
        %v1456 = vmul.f32 %v1447, 1.442695
        %v1457 = vpow.pop %v1456
        %v1458 = vmul.f32 %v1448, 1.442695
        %v1459 = vpow.pop %v1458
        %v1460 = vmul.f32 %v1449, 1.442695
        %v1461 = vpow.pop %v1460
        %v1462 = vmul.f32 %v1450, 1.442695
        %v1463 = vpow.pop %v1462
        %v1464 = vmul.f32 %v1451, 1.442695
        %v1465 = vpow.pop %v1464
        %v1466 = vmul.f32 %v1452, 1.442695
        %v1467 = vpow.pop %v1466
        %v1468 = vmul.f32 %v1453, 1.442695
        %v1469 = vpow.pop %v1468
        %v1470 = vadd.f32 %v1455, 1.0
        %v1471 = vadd.f32 %v1457, 1.0
        %v1472 = vadd.f32 %v1459, 1.0
        %v1473 = vadd.f32 %v1461, 1.0
        %v1474 = vadd.f32 %v1463, 1.0
        %v1475 = vadd.f32 %v1465, 1.0
        %v1476 = vadd.f32 %v1467, 1.0
        %v1477 = vadd.f32 %v1469, 1.0
        %v1478 = vrcp.pop %v1470
        %v1479 = vmul.f32 1.0, %v1478
        %v1480 = vrcp.pop %v1471
        %v1481 = vmul.f32 1.0, %v1480
        %v1482 = vrcp.pop %v1472
        %v1483 = vmul.f32 1.0, %v1482
        %v1484 = vrcp.pop %v1473
        %v1485 = vmul.f32 1.0, %v1484
        %v1486 = vrcp.pop %v1474
        %v1487 = vmul.f32 1.0, %v1486
        %v1488 = vrcp.pop %v1475
        %v1489 = vmul.f32 1.0, %v1488
        %v1490 = vrcp.pop %v1476
        %v1491 = vmul.f32 1.0, %v1490
        %v1492 = vrcp.pop %v1477
        %v1493 = vmul.f32 1.0, %v1492
        %v1494 = vmul.f32 %v1424, %v1479
        %v1495 = vmul.f32 %v1426, %v1481
        %v1496 = vmul.f32 %v1430, %v1483
        %v1497 = vmul.f32 %v1432, %v1485
        %v1498 = vmul.f32 %v1436, %v1487
        %v1499 = vmul.f32 %v1438, %v1489
        %v1500 = vmul.f32 %v1442, %v1491
        %v1501 = vmul.f32 %v1444, %v1493
        %1502 = vmatprep.subr.mxu0 0.0
        %1503 = vmatpush1.msra.mxu0 0.0
        %1504 = vmatprep.subr.mxu0 0.0
        %1505 = vmatpush1.msra.mxu0 0.0
        %1506 = vmatprep.subr.mxu0 0.0
        %1507 = vmatpush1.msra.mxu0 0.0
        %1508 = vmatprep.subr.mxu0 0.0
        %1509 = vmatpush1.msra.mxu0 0.0
        %1510 = vmatprep.subr.mxu0 0.0
        %1511 = vmatpush1.msra.mxu0 0.0
        %1512 = vmatprep.subr.mxu0 0.0
        %1513 = vmatpush1.msra.mxu0 0.0
        %1514 = vmatprep.subr.mxu0 0.0
        %1515 = vmatpush1.msra.mxu0 0.0
        %1516 = vmatprep.subr.mxu0 0.0
        %1517 = vmatpush1.msra.mxu0 0.0
        %1518 = vmatprep.subr.mxu0 0.0
        %1519 = vmatpush1.msra.mxu0 0.0
        %1520 = vmatprep.subr.mxu0 0.0
        %1521 = vmatpush1.msra.mxu0 0.0
        %1522 = vmatprep.subr.mxu0 0.0
        %1523 = vmatpush1.msra.mxu0 0.0
        %1524 = vmatprep.subr.mxu0 0.0
        %1525 = vmatpush1.msra.mxu0 0.0
        %1526 = vmatprep.subr.mxu0 %v1501
        %1527 = vmatpush1.msra.mxu0 %v1500
        %1528 = vmatprep.subr.mxu0 %v1499
        %1529 = vmatpush1.msra.mxu0 %v1498
        %1530 = vmatprep.subr.mxu0 %v1497
        %1531 = vmatpush1.msra.mxu0 %v1496
        %1532 = vmatprep.subr.mxu0 %v1495
        %1533 = vmatpush1.msra.mxu0 %v1494
        %1534 = vmatprep.subr.mxu0 0.0
        %1535 = vmatpush2.msra.mxu0 0.0
        %1536 = vmatprep.subr.mxu0 0.0
        %1537 = vmatpush2.msra.mxu0 0.0
        %1538 = vmatprep.subr.mxu0 0.0
        %1539 = vmatpush2.msra.mxu0 0.0
        %1540 = vmatprep.subr.mxu0 0.0
        %1541 = vmatpush2.msra.mxu0 0.0
        %1542 = vmatprep.subr.mxu0 0.0
        %1543 = vmatpush2.msra.mxu0 0.0
        %1544 = vmatprep.subr.mxu0 0.0
        %1545 = vmatpush2.msra.mxu0 0.0
        %1546 = vmatprep.subr.mxu0 0.0
        %1547 = vmatpush2.msra.mxu0 0.0
        %1548 = vmatprep.subr.mxu0 0.0
        %1549 = vmatpush2.msra.mxu0 0.0
        %1550 = vmatprep.subr.mxu0 0.0
        %1551 = vmatpush2.msra.mxu0 0.0
        %1552 = vmatprep.subr.mxu0 0.0
        %1553 = vmatpush2.msra.mxu0 0.0
        %1554 = vmatprep.subr.mxu0 0.0
        %1555 = vmatpush2.msra.mxu0 0.0
        %1556 = vmatprep.subr.mxu0 0.0
        %1557 = vmatpush2.msra.mxu0 0.0
        %1558 = vmatprep.subr.mxu0 0.0
        %1559 = vmatpush2.msra.mxu0 0.0
        %1560 = vmatprep.subr.mxu0 0.0
        %1561 = vmatpush2.msra.mxu0 0.0
        %1562 = vmatprep.subr.mxu0 0.0
        %1563 = vmatpush2.msra.mxu0 0.0
        %1564 = vmatprep.subr.mxu0 0.0
        %1565 = vmatpush2.msra.mxu0 0.0
        %1566 = vmatprep.mubr.f32.mxu0 0.0
        %1567 = vmatmul.mubr.f32.gmra.mxu0 %v690
        %v1568 = vpop.f32.mrf.mxu0
        %v1569 = vadd.f32 %v686, %v1568
        %v1570 = vpop.f32.mrf.mxu0
        %v1571 = vadd.f32 %v686, %v1570
        %1572 = vdwg.mxu0
        %s1573 = smul.u32 %s1325, 3
        %s1574 = sld [smem:[#allocation2 + %s1573]]
        %s1575 = sadd.s32 %s1573, 1
        %s1576 = sld [smem:[#allocation2 + %s1575]]
        %s1577 = sadd.s32 %s1573, 2
        %s1578 = sld [smem:[#allocation2 + %s1577]]
        %s1579 = scalar_lea.vmem %s396, 16 [#allocation4]
        %v1580 = vld [vmem:[%s1579] sm:$0xf]
        %v1581 = vunpack.c.l.bf16 %v1580
        %v1582 = vstv %s1574
        %v1583 = vmul.f32 %v1582, %v1324
        %v1584 = vstv %s1576
        %v1585 = vmul.f32 %v1584, %v1569
        %v1586 = vmul.f32 %v1584, %v1571
        %v1589 = vcombine.low %v1585, %v1586
        %v1591 = vsub.f32 %v1583, %v1589
        %v1592 = vstv %s1578
        %v1593 = vmul.f32 %v1592, %v1581
        %v1594 = vadd.f32 %v1591, %v1593
        %s1595 = ssub.s32 3, %s478
        %s1596 = scalar_lea.vmem %s465, 96
        %v1597 = vld [vmem:[%s1596] sm:$0xff]
        %v1598 = vld [vmem:[%s1596 + $0x8] sm:$0xff]
        %v1599 = vld [vmem:[%s1596 + $0x10] sm:$0xff]
        %v1600 = vld [vmem:[%s1596 + $0x18] sm:$0xff]
        %1602 = vset.pattern.permute.xlu0 0
        %1603 = vperm.xlu0 %1602, %v1597
        %v1604 = vpop.permute.xlu0 %1603
        %1607 = vset.pattern.permute.xlu0 0
        %1608 = vperm.xlu0 %1607, %v1598
        %v1609 = vpop.permute.xlu0 %1608
        %1612 = vset.pattern.permute.xlu0 0
        %1613 = vperm.xlu0 %1612, %v1599
        %v1614 = vpop.permute.xlu0 %1613
        %1617 = vset.pattern.permute.xlu0 0
        %1618 = vperm.xlu0 %1617, %v1600
        %v1619 = vpop.permute.xlu0 %1618
        %v1622 = vcombine.high %v1594, %v1594
        %v1623 = vsel %vm533, %v1594, 0
        %v1625 = vsel %vm533, %v1622, 0
        %1627 = vmatprep.subr.mxu0 0.0
        %1628 = vmatpush1.msra.mxu0 0.0
        %1629 = vmatprep.subr.mxu0 0.0
        %1630 = vmatpush1.msra.mxu0 0.0
        %1631 = vmatprep.subr.mxu0 0.0
        %1632 = vmatpush1.msra.mxu0 0.0
        %1633 = vmatprep.subr.mxu0 0.0
        %1634 = vmatpush1.msra.mxu0 0.0
        %1635 = vmatprep.subr.mxu0 0.0
        %1636 = vmatpush1.msra.mxu0 0.0
        %1637 = vmatprep.subr.mxu0 0.0
        %1638 = vmatpush1.msra.mxu0 0.0
        %1639 = vmatprep.subr.mxu0 0.0
        %1640 = vmatpush1.msra.mxu0 0.0
        %1641 = vmatprep.subr.mxu0 0.0
        %1642 = vmatpush1.msra.mxu0 0.0
        %1643 = vmatprep.subr.mxu0 0.0
        %1644 = vmatpush1.msra.mxu0 0.0
        %1645 = vmatprep.subr.mxu0 0.0
        %1646 = vmatpush1.msra.mxu0 0.0
        %1647 = vmatprep.subr.mxu0 0.0
        %1648 = vmatpush1.msra.mxu0 0.0
        %1649 = vmatprep.subr.mxu0 0.0
        %1650 = vmatpush1.msra.mxu0 0.0
        %1651 = vmatprep.subr.mxu0 0.0
        %1652 = vmatpush1.msra.mxu0 0.0
        %1653 = vmatprep.subr.mxu0 0.0
        %1654 = vmatpush1.msra.mxu0 0.0
        %1655 = vmatprep.subr.mxu0 0.0
        %1656 = vmatpush1.msra.mxu0 0.0
        %1657 = vmatprep.subr.mxu0 %v1625
        %1658 = vmatpush1.msra.mxu0 %v1623
        %1659 = vmatprep.subr.mxu0 0.0
        %1660 = vmatpush2.msra.mxu0 0.0
        %1661 = vmatprep.subr.mxu0 0.0
        %1662 = vmatpush2.msra.mxu0 0.0
        %1663 = vmatprep.subr.mxu0 0.0
        %1664 = vmatpush2.msra.mxu0 0.0
        %1665 = vmatprep.subr.mxu0 0.0
        %1666 = vmatpush2.msra.mxu0 0.0
        %1667 = vmatprep.subr.mxu0 0.0
        %1668 = vmatpush2.msra.mxu0 0.0
        %1669 = vmatprep.subr.mxu0 0.0
        %1670 = vmatpush2.msra.mxu0 0.0
        %1671 = vmatprep.subr.mxu0 0.0
        %1672 = vmatpush2.msra.mxu0 0.0
        %1673 = vmatprep.subr.mxu0 0.0
        %1674 = vmatpush2.msra.mxu0 0.0
        %1675 = vmatprep.subr.mxu0 0.0
        %1676 = vmatpush2.msra.mxu0 0.0
        %1677 = vmatprep.subr.mxu0 0.0
        %1678 = vmatpush2.msra.mxu0 0.0
        %1679 = vmatprep.subr.mxu0 0.0
        %1680 = vmatpush2.msra.mxu0 0.0
        %1681 = vmatprep.subr.mxu0 0.0
        %1682 = vmatpush2.msra.mxu0 0.0
        %1683 = vmatprep.subr.mxu0 0.0
        %1684 = vmatpush2.msra.mxu0 0.0
        %1685 = vmatprep.subr.mxu0 0.0
        %1686 = vmatpush2.msra.mxu0 0.0
        %1687 = vmatprep.subr.mxu0 0.0
        %1688 = vmatpush2.msra.mxu0 0.0
        %1689 = vmatprep.subr.mxu0 0.0
        %1690 = vmatpush2.msra.mxu0 0.0
        %1691 = vmatprep.mubr.f32.mxu0 0.0
        %1692 = vmatmul.mubr.f32.gmra.mxu0 %v522
        %v1693 = vpop.f32.mrf.mxu0
        %v1694 = vadd.f32 %v1604, %v1693
        %v1695 = vpop.f32.mrf.mxu0
        %v1696 = vadd.f32 %v1604, %v1695
        %1697 = vmatprep.mubr.f32.mxu0 0.0
        %1698 = vmatmul.mubr.f32.gmra.mxu0 %v525
        %v1699 = vpop.f32.mrf.mxu0
        %v1700 = vadd.f32 %v1609, %v1699
        %v1701 = vpop.f32.mrf.mxu0
        %v1702 = vadd.f32 %v1609, %v1701
        %1703 = vmatprep.mubr.f32.mxu0 0.0
        %1704 = vmatmul.mubr.f32.gmra.mxu0 %v528
        %v1705 = vpop.f32.mrf.mxu0
        %v1706 = vadd.f32 %v1614, %v1705
        %v1707 = vpop.f32.mrf.mxu0
        %v1708 = vadd.f32 %v1614, %v1707
        %1709 = vmatprep.mubr.f32.mxu0 0.0
        %1710 = vmatmul.mubr.f32.gmra.mxu0 %v531
        %v1711 = vpop.f32.mrf.mxu0
        %v1712 = vadd.f32 %v1619, %v1711
        %v1713 = vpop.f32.mrf.mxu0
        %v1714 = vadd.f32 %v1619, %v1713
        %1715 = vdwg.mxu0
        %v1716 = vxor.u32 %v1694, 2147483648
        %v1717 = vxor.u32 %v1696, 2147483648
        %v1718 = vxor.u32 %v1700, 2147483648
        %v1719 = vxor.u32 %v1702, 2147483648
        %v1720 = vxor.u32 %v1706, 2147483648
        %v1721 = vxor.u32 %v1708, 2147483648
        %v1722 = vxor.u32 %v1712, 2147483648
        %v1723 = vxor.u32 %v1714, 2147483648
        %v1724 = vmul.f32 %v1716, 1.442695
        %v1725 = vpow.pop %v1724
        %v1726 = vmul.f32 %v1717, 1.442695
        %v1727 = vpow.pop %v1726
        %v1728 = vmul.f32 %v1718, 1.442695
        %v1729 = vpow.pop %v1728
        %v1730 = vmul.f32 %v1719, 1.442695
        %v1731 = vpow.pop %v1730
        %v1732 = vmul.f32 %v1720, 1.442695
        %v1733 = vpow.pop %v1732
        %v1734 = vmul.f32 %v1721, 1.442695
        %v1735 = vpow.pop %v1734
        %v1736 = vmul.f32 %v1722, 1.442695
        %v1737 = vpow.pop %v1736
        %v1738 = vmul.f32 %v1723, 1.442695
        %v1739 = vpow.pop %v1738
        %v1740 = vadd.f32 %v1725, 1.0
        %v1741 = vadd.f32 %v1727, 1.0
        %v1742 = vadd.f32 %v1729, 1.0
        %v1743 = vadd.f32 %v1731, 1.0
        %v1744 = vadd.f32 %v1733, 1.0
        %v1745 = vadd.f32 %v1735, 1.0
        %v1746 = vadd.f32 %v1737, 1.0
        %v1747 = vadd.f32 %v1739, 1.0
        %v1748 = vrcp.pop %v1740
        %v1749 = vmul.f32 1.0, %v1748
        %v1750 = vrcp.pop %v1741
        %v1751 = vmul.f32 1.0, %v1750
        %v1752 = vrcp.pop %v1742
        %v1753 = vmul.f32 1.0, %v1752
        %v1754 = vrcp.pop %v1743
        %v1755 = vmul.f32 1.0, %v1754
        %v1756 = vrcp.pop %v1744
        %v1757 = vmul.f32 1.0, %v1756
        %v1758 = vrcp.pop %v1745
        %v1759 = vmul.f32 1.0, %v1758
        %v1760 = vrcp.pop %v1746
        %v1761 = vmul.f32 1.0, %v1760
        %v1762 = vrcp.pop %v1747
        %v1763 = vmul.f32 1.0, %v1762
        %v1764 = vmul.f32 %v1694, %v1749
        %v1765 = vmul.f32 %v1696, %v1751
        %v1766 = vmul.f32 %v1700, %v1753
        %v1767 = vmul.f32 %v1702, %v1755
        %v1768 = vmul.f32 %v1706, %v1757
        %v1769 = vmul.f32 %v1708, %v1759
        %v1770 = vmul.f32 %v1712, %v1761
        %v1771 = vmul.f32 %v1714, %v1763
        %1772 = vmatprep.subr.mxu0 0.0
        %1773 = vmatpush1.msra.mxu0 0.0
        %1774 = vmatprep.subr.mxu0 0.0
        %1775 = vmatpush1.msra.mxu0 0.0
        %1776 = vmatprep.subr.mxu0 0.0
        %1777 = vmatpush1.msra.mxu0 0.0
        %1778 = vmatprep.subr.mxu0 0.0
        %1779 = vmatpush1.msra.mxu0 0.0
        %1780 = vmatprep.subr.mxu0 0.0
        %1781 = vmatpush1.msra.mxu0 0.0
        %1782 = vmatprep.subr.mxu0 0.0
        %1783 = vmatpush1.msra.mxu0 0.0
        %1784 = vmatprep.subr.mxu0 0.0
        %1785 = vmatpush1.msra.mxu0 0.0
        %1786 = vmatprep.subr.mxu0 0.0
        %1787 = vmatpush1.msra.mxu0 0.0
        %1788 = vmatprep.subr.mxu0 0.0
        %1789 = vmatpush1.msra.mxu0 0.0
        %1790 = vmatprep.subr.mxu0 0.0
        %1791 = vmatpush1.msra.mxu0 0.0
        %1792 = vmatprep.subr.mxu0 0.0
        %1793 = vmatpush1.msra.mxu0 0.0
        %1794 = vmatprep.subr.mxu0 0.0
        %1795 = vmatpush1.msra.mxu0 0.0
        %1796 = vmatprep.subr.mxu0 %v1771
        %1797 = vmatpush1.msra.mxu0 %v1770
        %1798 = vmatprep.subr.mxu0 %v1769
        %1799 = vmatpush1.msra.mxu0 %v1768
        %1800 = vmatprep.subr.mxu0 %v1767
        %1801 = vmatpush1.msra.mxu0 %v1766
        %1802 = vmatprep.subr.mxu0 %v1765
        %1803 = vmatpush1.msra.mxu0 %v1764
        %1804 = vmatprep.subr.mxu0 0.0
        %1805 = vmatpush2.msra.mxu0 0.0
        %1806 = vmatprep.subr.mxu0 0.0
        %1807 = vmatpush2.msra.mxu0 0.0
        %1808 = vmatprep.subr.mxu0 0.0
        %1809 = vmatpush2.msra.mxu0 0.0
        %1810 = vmatprep.subr.mxu0 0.0
        %1811 = vmatpush2.msra.mxu0 0.0
        %1812 = vmatprep.subr.mxu0 0.0
        %1813 = vmatpush2.msra.mxu0 0.0
        %1814 = vmatprep.subr.mxu0 0.0
        %1815 = vmatpush2.msra.mxu0 0.0
        %1816 = vmatprep.subr.mxu0 0.0
        %1817 = vmatpush2.msra.mxu0 0.0
        %1818 = vmatprep.subr.mxu0 0.0
        %1819 = vmatpush2.msra.mxu0 0.0
        %1820 = vmatprep.subr.mxu0 0.0
        %1821 = vmatpush2.msra.mxu0 0.0
        %1822 = vmatprep.subr.mxu0 0.0
        %1823 = vmatpush2.msra.mxu0 0.0
        %1824 = vmatprep.subr.mxu0 0.0
        %1825 = vmatpush2.msra.mxu0 0.0
        %1826 = vmatprep.subr.mxu0 0.0
        %1827 = vmatpush2.msra.mxu0 0.0
        %1828 = vmatprep.subr.mxu0 0.0
        %1829 = vmatpush2.msra.mxu0 0.0
        %1830 = vmatprep.subr.mxu0 0.0
        %1831 = vmatpush2.msra.mxu0 0.0
        %1832 = vmatprep.subr.mxu0 0.0
        %1833 = vmatpush2.msra.mxu0 0.0
        %1834 = vmatprep.subr.mxu0 0.0
        %1835 = vmatpush2.msra.mxu0 0.0
        %1836 = vmatprep.mubr.f32.mxu0 0.0
        %1837 = vmatmul.mubr.f32.gmra.mxu0 %v690
        %v1838 = vpop.f32.mrf.mxu0
        %v1839 = vadd.f32 %v686, %v1838
        %v1840 = vpop.f32.mrf.mxu0
        %v1841 = vadd.f32 %v686, %v1840
        %1842 = vdwg.mxu0
        %s1843 = smul.u32 %s1595, 3
        %s1844 = sld [smem:[#allocation2 + %s1843]]
        %s1845 = sadd.s32 %s1843, 1
        %s1846 = sld [smem:[#allocation2 + %s1845]]
        %s1847 = sadd.s32 %s1843, 2
        %s1848 = sld [smem:[#allocation2 + %s1847]]
        %s1849 = scalar_lea.vmem %s396, 12 [#allocation4]
        %v1850 = vld [vmem:[%s1849] sm:$0xf]
        %v1851 = vunpack.c.l.bf16 %v1850
        %v1852 = vstv %s1844
        %v1853 = vmul.f32 %v1852, %v1594
        %v1854 = vstv %s1846
        %v1855 = vmul.f32 %v1854, %v1839
        %v1856 = vmul.f32 %v1854, %v1841
        %v1859 = vcombine.low %v1855, %v1856
        %v1861 = vsub.f32 %v1853, %v1859
        %v1862 = vstv %s1848
        %v1863 = vmul.f32 %v1862, %v1851
        %v1864 = vadd.f32 %v1861, %v1863
        %s1865 = ssub.s32 2, %s478
        %s1866 = scalar_lea.vmem %s465, 64
        %v1867 = vld [vmem:[%s1866] sm:$0xff]
        %v1868 = vld [vmem:[%s1866 + $0x8] sm:$0xff]
        %v1869 = vld [vmem:[%s1866 + $0x10] sm:$0xff]
        %v1870 = vld [vmem:[%s1866 + $0x18] sm:$0xff]
        %1872 = vset.pattern.permute.xlu0 0
        %1873 = vperm.xlu0 %1872, %v1867
        %v1874 = vpop.permute.xlu0 %1873
        %1877 = vset.pattern.permute.xlu0 0
        %1878 = vperm.xlu0 %1877, %v1868
        %v1879 = vpop.permute.xlu0 %1878
        %1882 = vset.pattern.permute.xlu0 0
        %1883 = vperm.xlu0 %1882, %v1869
        %v1884 = vpop.permute.xlu0 %1883
        %1887 = vset.pattern.permute.xlu0 0
        %1888 = vperm.xlu0 %1887, %v1870
        %v1889 = vpop.permute.xlu0 %1888
        %v1892 = vcombine.high %v1864, %v1864
        %v1893 = vsel %vm533, %v1864, 0
        %v1895 = vsel %vm533, %v1892, 0
        %1897 = vmatprep.subr.mxu0 0.0
        %1898 = vmatpush1.msra.mxu0 0.0
        %1899 = vmatprep.subr.mxu0 0.0
        %1900 = vmatpush1.msra.mxu0 0.0
        %1901 = vmatprep.subr.mxu0 0.0
        %1902 = vmatpush1.msra.mxu0 0.0
        %1903 = vmatprep.subr.mxu0 0.0
        %1904 = vmatpush1.msra.mxu0 0.0
        %1905 = vmatprep.subr.mxu0 0.0
        %1906 = vmatpush1.msra.mxu0 0.0
        %1907 = vmatprep.subr.mxu0 0.0
        %1908 = vmatpush1.msra.mxu0 0.0
        %1909 = vmatprep.subr.mxu0 0.0
        %1910 = vmatpush1.msra.mxu0 0.0
        %1911 = vmatprep.subr.mxu0 0.0
        %1912 = vmatpush1.msra.mxu0 0.0
        %1913 = vmatprep.subr.mxu0 0.0
        %1914 = vmatpush1.msra.mxu0 0.0
        %1915 = vmatprep.subr.mxu0 0.0
        %1916 = vmatpush1.msra.mxu0 0.0
        %1917 = vmatprep.subr.mxu0 0.0
        %1918 = vmatpush1.msra.mxu0 0.0
        %1919 = vmatprep.subr.mxu0 0.0
        %1920 = vmatpush1.msra.mxu0 0.0
        %1921 = vmatprep.subr.mxu0 0.0
        %1922 = vmatpush1.msra.mxu0 0.0
        %1923 = vmatprep.subr.mxu0 0.0
        %1924 = vmatpush1.msra.mxu0 0.0
        %1925 = vmatprep.subr.mxu0 0.0
        %1926 = vmatpush1.msra.mxu0 0.0
        %1927 = vmatprep.subr.mxu0 %v1895
        %1928 = vmatpush1.msra.mxu0 %v1893
        %1929 = vmatprep.subr.mxu0 0.0
        %1930 = vmatpush2.msra.mxu0 0.0
        %1931 = vmatprep.subr.mxu0 0.0
        %1932 = vmatpush2.msra.mxu0 0.0
        %1933 = vmatprep.subr.mxu0 0.0
        %1934 = vmatpush2.msra.mxu0 0.0
        %1935 = vmatprep.subr.mxu0 0.0
        %1936 = vmatpush2.msra.mxu0 0.0
        %1937 = vmatprep.subr.mxu0 0.0
        %1938 = vmatpush2.msra.mxu0 0.0
        %1939 = vmatprep.subr.mxu0 0.0
        %1940 = vmatpush2.msra.mxu0 0.0
        %1941 = vmatprep.subr.mxu0 0.0
        %1942 = vmatpush2.msra.mxu0 0.0
        %1943 = vmatprep.subr.mxu0 0.0
        %1944 = vmatpush2.msra.mxu0 0.0
        %1945 = vmatprep.subr.mxu0 0.0
        %1946 = vmatpush2.msra.mxu0 0.0
        %1947 = vmatprep.subr.mxu0 0.0
        %1948 = vmatpush2.msra.mxu0 0.0
        %1949 = vmatprep.subr.mxu0 0.0
        %1950 = vmatpush2.msra.mxu0 0.0
        %1951 = vmatprep.subr.mxu0 0.0
        %1952 = vmatpush2.msra.mxu0 0.0
        %1953 = vmatprep.subr.mxu0 0.0
        %1954 = vmatpush2.msra.mxu0 0.0
        %1955 = vmatprep.subr.mxu0 0.0
        %1956 = vmatpush2.msra.mxu0 0.0
        %1957 = vmatprep.subr.mxu0 0.0
        %1958 = vmatpush2.msra.mxu0 0.0
        %1959 = vmatprep.subr.mxu0 0.0
        %1960 = vmatpush2.msra.mxu0 0.0
        %1961 = vmatprep.mubr.f32.mxu0 0.0
        %1962 = vmatmul.mubr.f32.gmra.mxu0 %v522
        %v1963 = vpop.f32.mrf.mxu0
        %v1964 = vadd.f32 %v1874, %v1963
        %v1965 = vpop.f32.mrf.mxu0
        %v1966 = vadd.f32 %v1874, %v1965
        %1967 = vmatprep.mubr.f32.mxu0 0.0
        %1968 = vmatmul.mubr.f32.gmra.mxu0 %v525
        %v1969 = vpop.f32.mrf.mxu0
        %v1970 = vadd.f32 %v1879, %v1969
        %v1971 = vpop.f32.mrf.mxu0
        %v1972 = vadd.f32 %v1879, %v1971
        %1973 = vmatprep.mubr.f32.mxu0 0.0
        %1974 = vmatmul.mubr.f32.gmra.mxu0 %v528
        %v1975 = vpop.f32.mrf.mxu0
        %v1976 = vadd.f32 %v1884, %v1975
        %v1977 = vpop.f32.mrf.mxu0
        %v1978 = vadd.f32 %v1884, %v1977
        %1979 = vmatprep.mubr.f32.mxu0 0.0
        %1980 = vmatmul.mubr.f32.gmra.mxu0 %v531
        %v1981 = vpop.f32.mrf.mxu0
        %v1982 = vadd.f32 %v1889, %v1981
        %v1983 = vpop.f32.mrf.mxu0
        %v1984 = vadd.f32 %v1889, %v1983
        %1985 = vdwg.mxu0
        %v1986 = vxor.u32 %v1964, 2147483648
        %v1987 = vxor.u32 %v1966, 2147483648
        %v1988 = vxor.u32 %v1970, 2147483648
        %v1989 = vxor.u32 %v1972, 2147483648
        %v1990 = vxor.u32 %v1976, 2147483648
        %v1991 = vxor.u32 %v1978, 2147483648
        %v1992 = vxor.u32 %v1982, 2147483648
        %v1993 = vxor.u32 %v1984, 2147483648
        %v1994 = vmul.f32 %v1986, 1.442695
        %v1995 = vpow.pop %v1994
        %v1996 = vmul.f32 %v1987, 1.442695
        %v1997 = vpow.pop %v1996
        %v1998 = vmul.f32 %v1988, 1.442695
        %v1999 = vpow.pop %v1998
        %v2000 = vmul.f32 %v1989, 1.442695
        %v2001 = vpow.pop %v2000
        %v2002 = vmul.f32 %v1990, 1.442695
        %v2003 = vpow.pop %v2002
        %v2004 = vmul.f32 %v1991, 1.442695
        %v2005 = vpow.pop %v2004
        %v2006 = vmul.f32 %v1992, 1.442695
        %v2007 = vpow.pop %v2006
        %v2008 = vmul.f32 %v1993, 1.442695
        %v2009 = vpow.pop %v2008
        %v2010 = vadd.f32 %v1995, 1.0
        %v2011 = vadd.f32 %v1997, 1.0
        %v2012 = vadd.f32 %v1999, 1.0
        %v2013 = vadd.f32 %v2001, 1.0
        %v2014 = vadd.f32 %v2003, 1.0
        %v2015 = vadd.f32 %v2005, 1.0
        %v2016 = vadd.f32 %v2007, 1.0
        %v2017 = vadd.f32 %v2009, 1.0
        %v2018 = vrcp.pop %v2010
        %v2019 = vmul.f32 1.0, %v2018
        %v2020 = vrcp.pop %v2011
        %v2021 = vmul.f32 1.0, %v2020
        %v2022 = vrcp.pop %v2012
        %v2023 = vmul.f32 1.0, %v2022
        %v2024 = vrcp.pop %v2013
        %v2025 = vmul.f32 1.0, %v2024
        %v2026 = vrcp.pop %v2014
        %v2027 = vmul.f32 1.0, %v2026
        %v2028 = vrcp.pop %v2015
        %v2029 = vmul.f32 1.0, %v2028
        %v2030 = vrcp.pop %v2016
        %v2031 = vmul.f32 1.0, %v2030
        %v2032 = vrcp.pop %v2017
        %v2033 = vmul.f32 1.0, %v2032
        %v2034 = vmul.f32 %v1964, %v2019
        %v2035 = vmul.f32 %v1966, %v2021
        %v2036 = vmul.f32 %v1970, %v2023
        %v2037 = vmul.f32 %v1972, %v2025
        %v2038 = vmul.f32 %v1976, %v2027
        %v2039 = vmul.f32 %v1978, %v2029
        %v2040 = vmul.f32 %v1982, %v2031
        %v2041 = vmul.f32 %v1984, %v2033
        %2042 = vmatprep.subr.mxu0 0.0
        %2043 = vmatpush1.msra.mxu0 0.0
        %2044 = vmatprep.subr.mxu0 0.0
        %2045 = vmatpush1.msra.mxu0 0.0
        %2046 = vmatprep.subr.mxu0 0.0
        %2047 = vmatpush1.msra.mxu0 0.0
        %2048 = vmatprep.subr.mxu0 0.0
        %2049 = vmatpush1.msra.mxu0 0.0
        %2050 = vmatprep.subr.mxu0 0.0
        %2051 = vmatpush1.msra.mxu0 0.0
        %2052 = vmatprep.subr.mxu0 0.0
        %2053 = vmatpush1.msra.mxu0 0.0
        %2054 = vmatprep.subr.mxu0 0.0
        %2055 = vmatpush1.msra.mxu0 0.0
        %2056 = vmatprep.subr.mxu0 0.0
        %2057 = vmatpush1.msra.mxu0 0.0
        %2058 = vmatprep.subr.mxu0 0.0
        %2059 = vmatpush1.msra.mxu0 0.0
        %2060 = vmatprep.subr.mxu0 0.0
        %2061 = vmatpush1.msra.mxu0 0.0
        %2062 = vmatprep.subr.mxu0 0.0
        %2063 = vmatpush1.msra.mxu0 0.0
        %2064 = vmatprep.subr.mxu0 0.0
        %2065 = vmatpush1.msra.mxu0 0.0
        %2066 = vmatprep.subr.mxu0 %v2041
        %2067 = vmatpush1.msra.mxu0 %v2040
        %2068 = vmatprep.subr.mxu0 %v2039
        %2069 = vmatpush1.msra.mxu0 %v2038
        %2070 = vmatprep.subr.mxu0 %v2037
        %2071 = vmatpush1.msra.mxu0 %v2036
        %2072 = vmatprep.subr.mxu0 %v2035
        %2073 = vmatpush1.msra.mxu0 %v2034
        %2074 = vmatprep.subr.mxu0 0.0
        %2075 = vmatpush2.msra.mxu0 0.0
        %2076 = vmatprep.subr.mxu0 0.0
        %2077 = vmatpush2.msra.mxu0 0.0
        %2078 = vmatprep.subr.mxu0 0.0
        %2079 = vmatpush2.msra.mxu0 0.0
        %2080 = vmatprep.subr.mxu0 0.0
        %2081 = vmatpush2.msra.mxu0 0.0
        %2082 = vmatprep.subr.mxu0 0.0
        %2083 = vmatpush2.msra.mxu0 0.0
        %2084 = vmatprep.subr.mxu0 0.0
        %2085 = vmatpush2.msra.mxu0 0.0
        %2086 = vmatprep.subr.mxu0 0.0
        %2087 = vmatpush2.msra.mxu0 0.0
        %2088 = vmatprep.subr.mxu0 0.0
        %2089 = vmatpush2.msra.mxu0 0.0
        %2090 = vmatprep.subr.mxu0 0.0
        %2091 = vmatpush2.msra.mxu0 0.0
        %2092 = vmatprep.subr.mxu0 0.0
        %2093 = vmatpush2.msra.mxu0 0.0
        %2094 = vmatprep.subr.mxu0 0.0
        %2095 = vmatpush2.msra.mxu0 0.0
        %2096 = vmatprep.subr.mxu0 0.0
        %2097 = vmatpush2.msra.mxu0 0.0
        %2098 = vmatprep.subr.mxu0 0.0
        %2099 = vmatpush2.msra.mxu0 0.0
        %2100 = vmatprep.subr.mxu0 0.0
        %2101 = vmatpush2.msra.mxu0 0.0
        %2102 = vmatprep.subr.mxu0 0.0
        %2103 = vmatpush2.msra.mxu0 0.0
        %2104 = vmatprep.subr.mxu0 0.0
        %2105 = vmatpush2.msra.mxu0 0.0
        %2106 = vmatprep.mubr.f32.mxu0 0.0
        %2107 = vmatmul.mubr.f32.gmra.mxu0 %v690
        %v2108 = vpop.f32.mrf.mxu0
        %v2109 = vadd.f32 %v686, %v2108
        %v2110 = vpop.f32.mrf.mxu0
        %v2111 = vadd.f32 %v686, %v2110
        %2112 = vdwg.mxu0
        %s2113 = smul.u32 %s1865, 3
        %s2114 = sld [smem:[#allocation2 + %s2113]]
        %s2115 = sadd.s32 %s2113, 1
        %s2116 = sld [smem:[#allocation2 + %s2115]]
        %s2117 = sadd.s32 %s2113, 2
        %s2118 = sld [smem:[#allocation2 + %s2117]]
        %s2119 = scalar_lea.vmem %s396, 8 [#allocation4]
        %v2120 = vld [vmem:[%s2119] sm:$0xf]
        %v2121 = vunpack.c.l.bf16 %v2120
        %v2122 = vstv %s2114
        %v2123 = vmul.f32 %v2122, %v1864
        %v2124 = vstv %s2116
        %v2125 = vmul.f32 %v2124, %v2109
        %v2126 = vmul.f32 %v2124, %v2111
        %v2129 = vcombine.low %v2125, %v2126
        %v2131 = vsub.f32 %v2123, %v2129
        %v2132 = vstv %s2118
        %v2133 = vmul.f32 %v2132, %v2121
        %v2134 = vadd.f32 %v2131, %v2133
        %s2135 = ssub.s32 1, %s478
        %s2136 = scalar_lea.vmem %s465, 32
        %v2137 = vld [vmem:[%s2136] sm:$0xff]
        %v2138 = vld [vmem:[%s2136 + $0x8] sm:$0xff]
        %v2139 = vld [vmem:[%s2136 + $0x10] sm:$0xff]
        %v2140 = vld [vmem:[%s2136 + $0x18] sm:$0xff]
        %2142 = vset.pattern.permute.xlu0 0
        %2143 = vperm.xlu0 %2142, %v2137
        %v2144 = vpop.permute.xlu0 %2143
        %2147 = vset.pattern.permute.xlu0 0
        %2148 = vperm.xlu0 %2147, %v2138
        %v2149 = vpop.permute.xlu0 %2148
        %2152 = vset.pattern.permute.xlu0 0
        %2153 = vperm.xlu0 %2152, %v2139
        %v2154 = vpop.permute.xlu0 %2153
        %2157 = vset.pattern.permute.xlu0 0
        %2158 = vperm.xlu0 %2157, %v2140
        %v2159 = vpop.permute.xlu0 %2158
        %v2162 = vcombine.high %v2134, %v2134
        %v2163 = vsel %vm533, %v2134, 0
        %v2165 = vsel %vm533, %v2162, 0
        %2167 = vmatprep.subr.mxu0 0.0
        %2168 = vmatpush1.msra.mxu0 0.0
        %2169 = vmatprep.subr.mxu0 0.0
        %2170 = vmatpush1.msra.mxu0 0.0
        %2171 = vmatprep.subr.mxu0 0.0
        %2172 = vmatpush1.msra.mxu0 0.0
        %2173 = vmatprep.subr.mxu0 0.0
        %2174 = vmatpush1.msra.mxu0 0.0
        %2175 = vmatprep.subr.mxu0 0.0
        %2176 = vmatpush1.msra.mxu0 0.0
        %2177 = vmatprep.subr.mxu0 0.0
        %2178 = vmatpush1.msra.mxu0 0.0
        %2179 = vmatprep.subr.mxu0 0.0
        %2180 = vmatpush1.msra.mxu0 0.0
        %2181 = vmatprep.subr.mxu0 0.0
        %2182 = vmatpush1.msra.mxu0 0.0
        %2183 = vmatprep.subr.mxu0 0.0
        %2184 = vmatpush1.msra.mxu0 0.0
        %2185 = vmatprep.subr.mxu0 0.0
        %2186 = vmatpush1.msra.mxu0 0.0
        %2187 = vmatprep.subr.mxu0 0.0
        %2188 = vmatpush1.msra.mxu0 0.0
        %2189 = vmatprep.subr.mxu0 0.0
        %2190 = vmatpush1.msra.mxu0 0.0
        %2191 = vmatprep.subr.mxu0 0.0
        %2192 = vmatpush1.msra.mxu0 0.0
        %2193 = vmatprep.subr.mxu0 0.0
        %2194 = vmatpush1.msra.mxu0 0.0
        %2195 = vmatprep.subr.mxu0 0.0
        %2196 = vmatpush1.msra.mxu0 0.0
        %2197 = vmatprep.subr.mxu0 %v2165
        %2198 = vmatpush1.msra.mxu0 %v2163
        %2199 = vmatprep.subr.mxu0 0.0
        %2200 = vmatpush2.msra.mxu0 0.0
        %2201 = vmatprep.subr.mxu0 0.0
        %2202 = vmatpush2.msra.mxu0 0.0
        %2203 = vmatprep.subr.mxu0 0.0
        %2204 = vmatpush2.msra.mxu0 0.0
        %2205 = vmatprep.subr.mxu0 0.0
        %2206 = vmatpush2.msra.mxu0 0.0
        %2207 = vmatprep.subr.mxu0 0.0
        %2208 = vmatpush2.msra.mxu0 0.0
        %2209 = vmatprep.subr.mxu0 0.0
        %2210 = vmatpush2.msra.mxu0 0.0
        %2211 = vmatprep.subr.mxu0 0.0
        %2212 = vmatpush2.msra.mxu0 0.0
        %2213 = vmatprep.subr.mxu0 0.0
        %2214 = vmatpush2.msra.mxu0 0.0
        %2215 = vmatprep.subr.mxu0 0.0
        %2216 = vmatpush2.msra.mxu0 0.0
        %2217 = vmatprep.subr.mxu0 0.0
        %2218 = vmatpush2.msra.mxu0 0.0
        %2219 = vmatprep.subr.mxu0 0.0
        %2220 = vmatpush2.msra.mxu0 0.0
        %2221 = vmatprep.subr.mxu0 0.0
        %2222 = vmatpush2.msra.mxu0 0.0
        %2223 = vmatprep.subr.mxu0 0.0
        %2224 = vmatpush2.msra.mxu0 0.0
        %2225 = vmatprep.subr.mxu0 0.0
        %2226 = vmatpush2.msra.mxu0 0.0
        %2227 = vmatprep.subr.mxu0 0.0
        %2228 = vmatpush2.msra.mxu0 0.0
        %2229 = vmatprep.subr.mxu0 0.0
        %2230 = vmatpush2.msra.mxu0 0.0
        %2231 = vmatprep.mubr.f32.mxu0 0.0
        %2232 = vmatmul.mubr.f32.gmra.mxu0 %v522
        %v2233 = vpop.f32.mrf.mxu0
        %v2234 = vadd.f32 %v2144, %v2233
        %v2235 = vpop.f32.mrf.mxu0
        %v2236 = vadd.f32 %v2144, %v2235
        %2237 = vmatprep.mubr.f32.mxu0 0.0
        %2238 = vmatmul.mubr.f32.gmra.mxu0 %v525
        %v2239 = vpop.f32.mrf.mxu0
        %v2240 = vadd.f32 %v2149, %v2239
        %v2241 = vpop.f32.mrf.mxu0
        %v2242 = vadd.f32 %v2149, %v2241
        %2243 = vmatprep.mubr.f32.mxu0 0.0
        %2244 = vmatmul.mubr.f32.gmra.mxu0 %v528
        %v2245 = vpop.f32.mrf.mxu0
        %v2246 = vadd.f32 %v2154, %v2245
        %v2247 = vpop.f32.mrf.mxu0
        %v2248 = vadd.f32 %v2154, %v2247
        %2249 = vmatprep.mubr.f32.mxu0 0.0
        %2250 = vmatmul.mubr.f32.gmra.mxu0 %v531
        %v2251 = vpop.f32.mrf.mxu0
        %v2252 = vadd.f32 %v2159, %v2251
        %v2253 = vpop.f32.mrf.mxu0
        %v2254 = vadd.f32 %v2159, %v2253
        %2255 = vdwg.mxu0
        %v2256 = vxor.u32 %v2234, 2147483648
        %v2257 = vxor.u32 %v2236, 2147483648
        %v2258 = vxor.u32 %v2240, 2147483648
        %v2259 = vxor.u32 %v2242, 2147483648
        %v2260 = vxor.u32 %v2246, 2147483648
        %v2261 = vxor.u32 %v2248, 2147483648
        %v2262 = vxor.u32 %v2252, 2147483648
        %v2263 = vxor.u32 %v2254, 2147483648
        %v2264 = vmul.f32 %v2256, 1.442695
        %v2265 = vpow.pop %v2264
        %v2266 = vmul.f32 %v2257, 1.442695
        %v2267 = vpow.pop %v2266
        %v2268 = vmul.f32 %v2258, 1.442695
        %v2269 = vpow.pop %v2268
        %v2270 = vmul.f32 %v2259, 1.442695
        %v2271 = vpow.pop %v2270
        %v2272 = vmul.f32 %v2260, 1.442695
        %v2273 = vpow.pop %v2272
        %v2274 = vmul.f32 %v2261, 1.442695
        %v2275 = vpow.pop %v2274
        %v2276 = vmul.f32 %v2262, 1.442695
        %v2277 = vpow.pop %v2276
        %v2278 = vmul.f32 %v2263, 1.442695
        %v2279 = vpow.pop %v2278
        %v2280 = vadd.f32 %v2265, 1.0
        %v2281 = vadd.f32 %v2267, 1.0
        %v2282 = vadd.f32 %v2269, 1.0
        %v2283 = vadd.f32 %v2271, 1.0
        %v2284 = vadd.f32 %v2273, 1.0
        %v2285 = vadd.f32 %v2275, 1.0
        %v2286 = vadd.f32 %v2277, 1.0
        %v2287 = vadd.f32 %v2279, 1.0
        %v2288 = vrcp.pop %v2280
        %v2289 = vmul.f32 1.0, %v2288
        %v2290 = vrcp.pop %v2281
        %v2291 = vmul.f32 1.0, %v2290
        %v2292 = vrcp.pop %v2282
        %v2293 = vmul.f32 1.0, %v2292
        %v2294 = vrcp.pop %v2283
        %v2295 = vmul.f32 1.0, %v2294
        %v2296 = vrcp.pop %v2284
        %v2297 = vmul.f32 1.0, %v2296
        %v2298 = vrcp.pop %v2285
        %v2299 = vmul.f32 1.0, %v2298
        %v2300 = vrcp.pop %v2286
        %v2301 = vmul.f32 1.0, %v2300
        %v2302 = vrcp.pop %v2287
        %v2303 = vmul.f32 1.0, %v2302
        %v2304 = vmul.f32 %v2234, %v2289
        %v2305 = vmul.f32 %v2236, %v2291
        %v2306 = vmul.f32 %v2240, %v2293
        %v2307 = vmul.f32 %v2242, %v2295
        %v2308 = vmul.f32 %v2246, %v2297
        %v2309 = vmul.f32 %v2248, %v2299
        %v2310 = vmul.f32 %v2252, %v2301
        %v2311 = vmul.f32 %v2254, %v2303
        %2312 = vmatprep.subr.mxu0 0.0
        %2313 = vmatpush1.msra.mxu0 0.0
        %2314 = vmatprep.subr.mxu0 0.0
        %2315 = vmatpush1.msra.mxu0 0.0
        %2316 = vmatprep.subr.mxu0 0.0
        %2317 = vmatpush1.msra.mxu0 0.0
        %2318 = vmatprep.subr.mxu0 0.0
        %2319 = vmatpush1.msra.mxu0 0.0
        %2320 = vmatprep.subr.mxu0 0.0
        %2321 = vmatpush1.msra.mxu0 0.0
        %2322 = vmatprep.subr.mxu0 0.0
        %2323 = vmatpush1.msra.mxu0 0.0
        %2324 = vmatprep.subr.mxu0 0.0
        %2325 = vmatpush1.msra.mxu0 0.0
        %2326 = vmatprep.subr.mxu0 0.0
        %2327 = vmatpush1.msra.mxu0 0.0
        %2328 = vmatprep.subr.mxu0 0.0
        %2329 = vmatpush1.msra.mxu0 0.0
        %2330 = vmatprep.subr.mxu0 0.0
        %2331 = vmatpush1.msra.mxu0 0.0
        %2332 = vmatprep.subr.mxu0 0.0
        %2333 = vmatpush1.msra.mxu0 0.0
        %2334 = vmatprep.subr.mxu0 0.0
        %2335 = vmatpush1.msra.mxu0 0.0
        %2336 = vmatprep.subr.mxu0 %v2311
        %2337 = vmatpush1.msra.mxu0 %v2310
        %2338 = vmatprep.subr.mxu0 %v2309
        %2339 = vmatpush1.msra.mxu0 %v2308
        %2340 = vmatprep.subr.mxu0 %v2307
        %2341 = vmatpush1.msra.mxu0 %v2306
        %2342 = vmatprep.subr.mxu0 %v2305
        %2343 = vmatpush1.msra.mxu0 %v2304
        %2344 = vmatprep.subr.mxu0 0.0
        %2345 = vmatpush2.msra.mxu0 0.0
        %2346 = vmatprep.subr.mxu0 0.0
        %2347 = vmatpush2.msra.mxu0 0.0
        %2348 = vmatprep.subr.mxu0 0.0
        %2349 = vmatpush2.msra.mxu0 0.0
        %2350 = vmatprep.subr.mxu0 0.0
        %2351 = vmatpush2.msra.mxu0 0.0
        %2352 = vmatprep.subr.mxu0 0.0
        %2353 = vmatpush2.msra.mxu0 0.0
        %2354 = vmatprep.subr.mxu0 0.0
        %2355 = vmatpush2.msra.mxu0 0.0
        %2356 = vmatprep.subr.mxu0 0.0
        %2357 = vmatpush2.msra.mxu0 0.0
        %2358 = vmatprep.subr.mxu0 0.0
        %2359 = vmatpush2.msra.mxu0 0.0
        %2360 = vmatprep.subr.mxu0 0.0
        %2361 = vmatpush2.msra.mxu0 0.0
        %2362 = vmatprep.subr.mxu0 0.0
        %2363 = vmatpush2.msra.mxu0 0.0
        %2364 = vmatprep.subr.mxu0 0.0
        %2365 = vmatpush2.msra.mxu0 0.0
        %2366 = vmatprep.subr.mxu0 0.0
        %2367 = vmatpush2.msra.mxu0 0.0
        %2368 = vmatprep.subr.mxu0 0.0
        %2369 = vmatpush2.msra.mxu0 0.0
        %2370 = vmatprep.subr.mxu0 0.0
        %2371 = vmatpush2.msra.mxu0 0.0
        %2372 = vmatprep.subr.mxu0 0.0
        %2373 = vmatpush2.msra.mxu0 0.0
        %2374 = vmatprep.subr.mxu0 0.0
        %2375 = vmatpush2.msra.mxu0 0.0
        %2376 = vmatprep.mubr.f32.mxu0 0.0
        %2377 = vmatmul.mubr.f32.gmra.mxu0 %v690
        %v2378 = vpop.f32.mrf.mxu0
        %v2379 = vadd.f32 %v686, %v2378
        %v2380 = vpop.f32.mrf.mxu0
        %v2381 = vadd.f32 %v686, %v2380
        %2382 = vdwg.mxu0
        %s2383 = smul.u32 %s2135, 3
        %s2384 = sld [smem:[#allocation2 + %s2383]]
        %s2385 = sadd.s32 %s2383, 1
        %s2386 = sld [smem:[#allocation2 + %s2385]]
        %s2387 = sadd.s32 %s2383, 2
        %s2388 = sld [smem:[#allocation2 + %s2387]]
        %s2389 = scalar_lea.vmem %s396, 4 [#allocation4]
        %v2390 = vld [vmem:[%s2389] sm:$0xf]
        %v2391 = vunpack.c.l.bf16 %v2390
        %v2392 = vstv %s2384
        %v2393 = vmul.f32 %v2392, %v2134
        %v2394 = vstv %s2386
        %v2395 = vmul.f32 %v2394, %v2379
        %v2396 = vmul.f32 %v2394, %v2381
        %v2399 = vcombine.low %v2395, %v2396
        %v2401 = vsub.f32 %v2393, %v2399
        %v2402 = vstv %s2388
        %v2403 = vmul.f32 %v2402, %v2391
        %v2404 = vadd.f32 %v2401, %v2403
        %s2405 = ssub.s32 0, %s478
        %v2406 = vld [vmem:[%s465] sm:$0xff]
        %v2407 = vld [vmem:[%s465 + $0x8] sm:$0xff]
        %v2408 = vld [vmem:[%s465 + $0x10] sm:$0xff]
        %v2409 = vld [vmem:[%s465 + $0x18] sm:$0xff]
        %2411 = vset.pattern.permute.xlu0 0
        %2412 = vperm.xlu0 %2411, %v2406
        %v2413 = vpop.permute.xlu0 %2412
        %2416 = vset.pattern.permute.xlu0 0
        %2417 = vperm.xlu0 %2416, %v2407
        %v2418 = vpop.permute.xlu0 %2417
        %2421 = vset.pattern.permute.xlu0 0
        %2422 = vperm.xlu0 %2421, %v2408
        %v2423 = vpop.permute.xlu0 %2422
        %2426 = vset.pattern.permute.xlu0 0
        %2427 = vperm.xlu0 %2426, %v2409
        %v2428 = vpop.permute.xlu0 %2427
        %v2431 = vcombine.high %v2404, %v2404
        %v2432 = vsel %vm533, %v2404, 0
        %v2434 = vsel %vm533, %v2431, 0
        %2436 = vmatprep.subr.mxu0 0.0
        %2437 = vmatpush1.msra.mxu0 0.0
        %2438 = vmatprep.subr.mxu0 0.0
        %2439 = vmatpush1.msra.mxu0 0.0
        %2440 = vmatprep.subr.mxu0 0.0
        %2441 = vmatpush1.msra.mxu0 0.0
        %2442 = vmatprep.subr.mxu0 0.0
        %2443 = vmatpush1.msra.mxu0 0.0
        %2444 = vmatprep.subr.mxu0 0.0
        %2445 = vmatpush1.msra.mxu0 0.0
        %2446 = vmatprep.subr.mxu0 0.0
        %2447 = vmatpush1.msra.mxu0 0.0
        %2448 = vmatprep.subr.mxu0 0.0
        %2449 = vmatpush1.msra.mxu0 0.0
        %2450 = vmatprep.subr.mxu0 0.0
        %2451 = vmatpush1.msra.mxu0 0.0
        %2452 = vmatprep.subr.mxu0 0.0
        %2453 = vmatpush1.msra.mxu0 0.0
        %2454 = vmatprep.subr.mxu0 0.0
        %2455 = vmatpush1.msra.mxu0 0.0
        %2456 = vmatprep.subr.mxu0 0.0
        %2457 = vmatpush1.msra.mxu0 0.0
        %2458 = vmatprep.subr.mxu0 0.0
        %2459 = vmatpush1.msra.mxu0 0.0
        %2460 = vmatprep.subr.mxu0 0.0
        %2461 = vmatpush1.msra.mxu0 0.0
        %2462 = vmatprep.subr.mxu0 0.0
        %2463 = vmatpush1.msra.mxu0 0.0
        %2464 = vmatprep.subr.mxu0 0.0
        %2465 = vmatpush1.msra.mxu0 0.0
        %2466 = vmatprep.subr.mxu0 %v2434
        %2467 = vmatpush1.msra.mxu0 %v2432
        %2468 = vmatprep.subr.mxu0 0.0
        %2469 = vmatpush2.msra.mxu0 0.0
        %2470 = vmatprep.subr.mxu0 0.0
        %2471 = vmatpush2.msra.mxu0 0.0
        %2472 = vmatprep.subr.mxu0 0.0
        %2473 = vmatpush2.msra.mxu0 0.0
        %2474 = vmatprep.subr.mxu0 0.0
        %2475 = vmatpush2.msra.mxu0 0.0
        %2476 = vmatprep.subr.mxu0 0.0
        %2477 = vmatpush2.msra.mxu0 0.0
        %2478 = vmatprep.subr.mxu0 0.0
        %2479 = vmatpush2.msra.mxu0 0.0
        %2480 = vmatprep.subr.mxu0 0.0
        %2481 = vmatpush2.msra.mxu0 0.0
        %2482 = vmatprep.subr.mxu0 0.0
        %2483 = vmatpush2.msra.mxu0 0.0
        %2484 = vmatprep.subr.mxu0 0.0
        %2485 = vmatpush2.msra.mxu0 0.0
        %2486 = vmatprep.subr.mxu0 0.0
        %2487 = vmatpush2.msra.mxu0 0.0
        %2488 = vmatprep.subr.mxu0 0.0
        %2489 = vmatpush2.msra.mxu0 0.0
        %2490 = vmatprep.subr.mxu0 0.0
        %2491 = vmatpush2.msra.mxu0 0.0
        %2492 = vmatprep.subr.mxu0 0.0
        %2493 = vmatpush2.msra.mxu0 0.0
        %2494 = vmatprep.subr.mxu0 0.0
        %2495 = vmatpush2.msra.mxu0 0.0
        %2496 = vmatprep.subr.mxu0 0.0
        %2497 = vmatpush2.msra.mxu0 0.0
        %2498 = vmatprep.subr.mxu0 0.0
        %2499 = vmatpush2.msra.mxu0 0.0
        %2500 = vmatprep.mubr.f32.mxu0 0.0
        %2501 = vmatmul.mubr.f32.gmra.mxu0 %v522
        %v2502 = vpop.f32.mrf.mxu0
        %v2503 = vadd.f32 %v2413, %v2502
        %v2504 = vpop.f32.mrf.mxu0
        %v2505 = vadd.f32 %v2413, %v2504
        %2506 = vmatprep.mubr.f32.mxu0 0.0
        %2507 = vmatmul.mubr.f32.gmra.mxu0 %v525
        %v2508 = vpop.f32.mrf.mxu0
        %v2509 = vadd.f32 %v2418, %v2508
        %v2510 = vpop.f32.mrf.mxu0
        %v2511 = vadd.f32 %v2418, %v2510
        %2512 = vmatprep.mubr.f32.mxu0 0.0
        %2513 = vmatmul.mubr.f32.gmra.mxu0 %v528
        %v2514 = vpop.f32.mrf.mxu0
        %v2515 = vadd.f32 %v2423, %v2514
        %v2516 = vpop.f32.mrf.mxu0
        %v2517 = vadd.f32 %v2423, %v2516
        %2518 = vmatprep.mubr.f32.mxu0 0.0
        %2519 = vmatmul.mubr.f32.gmra.mxu0 %v531
        %v2520 = vpop.f32.mrf.mxu0
        %v2521 = vadd.f32 %v2428, %v2520
        %v2522 = vpop.f32.mrf.mxu0
        %v2523 = vadd.f32 %v2428, %v2522
        %2524 = vdwg.mxu0
        %v2525 = vxor.u32 %v2503, 2147483648
        %v2526 = vxor.u32 %v2505, 2147483648
        %v2527 = vxor.u32 %v2509, 2147483648
        %v2528 = vxor.u32 %v2511, 2147483648
        %v2529 = vxor.u32 %v2515, 2147483648
        %v2530 = vxor.u32 %v2517, 2147483648
        %v2531 = vxor.u32 %v2521, 2147483648
        %v2532 = vxor.u32 %v2523, 2147483648
        %v2533 = vmul.f32 %v2525, 1.442695
        %v2534 = vpow.pop %v2533
        %v2535 = vmul.f32 %v2526, 1.442695
        %v2536 = vpow.pop %v2535
        %v2537 = vmul.f32 %v2527, 1.442695
        %v2538 = vpow.pop %v2537
        %v2539 = vmul.f32 %v2528, 1.442695
        %v2540 = vpow.pop %v2539
        %v2541 = vmul.f32 %v2529, 1.442695
        %v2542 = vpow.pop %v2541
        %v2543 = vmul.f32 %v2530, 1.442695
        %v2544 = vpow.pop %v2543
        %v2545 = vmul.f32 %v2531, 1.442695
        %v2546 = vpow.pop %v2545
        %v2547 = vmul.f32 %v2532, 1.442695
        %v2548 = vpow.pop %v2547
        %v2549 = vadd.f32 %v2534, 1.0
        %v2550 = vadd.f32 %v2536, 1.0
        %v2551 = vadd.f32 %v2538, 1.0
        %v2552 = vadd.f32 %v2540, 1.0
        %v2553 = vadd.f32 %v2542, 1.0
        %v2554 = vadd.f32 %v2544, 1.0
        %v2555 = vadd.f32 %v2546, 1.0
        %v2556 = vadd.f32 %v2548, 1.0
        %v2557 = vrcp.pop %v2549
        %v2558 = vmul.f32 1.0, %v2557
        %v2559 = vrcp.pop %v2550
        %v2560 = vmul.f32 1.0, %v2559
        %v2561 = vrcp.pop %v2551
        %v2562 = vmul.f32 1.0, %v2561
        %v2563 = vrcp.pop %v2552
        %v2564 = vmul.f32 1.0, %v2563
        %v2565 = vrcp.pop %v2553
        %v2566 = vmul.f32 1.0, %v2565
        %v2567 = vrcp.pop %v2554
        %v2568 = vmul.f32 1.0, %v2567
        %v2569 = vrcp.pop %v2555
        %v2570 = vmul.f32 1.0, %v2569
        %v2571 = vrcp.pop %v2556
        %v2572 = vmul.f32 1.0, %v2571
        %v2573 = vmul.f32 %v2503, %v2558
        %v2574 = vmul.f32 %v2505, %v2560
        %v2575 = vmul.f32 %v2509, %v2562
        %v2576 = vmul.f32 %v2511, %v2564
        %v2577 = vmul.f32 %v2515, %v2566
        %v2578 = vmul.f32 %v2517, %v2568
        %v2579 = vmul.f32 %v2521, %v2570
        %v2580 = vmul.f32 %v2523, %v2572
        %2581 = vmatprep.subr.mxu0 0.0
        %2582 = vmatpush1.msra.mxu0 0.0
        %2583 = vmatprep.subr.mxu0 0.0
        %2584 = vmatpush1.msra.mxu0 0.0
        %2585 = vmatprep.subr.mxu0 0.0
        %2586 = vmatpush1.msra.mxu0 0.0
        %2587 = vmatprep.subr.mxu0 0.0
        %2588 = vmatpush1.msra.mxu0 0.0
        %2589 = vmatprep.subr.mxu0 0.0
        %2590 = vmatpush1.msra.mxu0 0.0
        %2591 = vmatprep.subr.mxu0 0.0
        %2592 = vmatpush1.msra.mxu0 0.0
        %2593 = vmatprep.subr.mxu0 0.0
        %2594 = vmatpush1.msra.mxu0 0.0
        %2595 = vmatprep.subr.mxu0 0.0
        %2596 = vmatpush1.msra.mxu0 0.0
        %2597 = vmatprep.subr.mxu0 0.0
        %2598 = vmatpush1.msra.mxu0 0.0
        %2599 = vmatprep.subr.mxu0 0.0
        %2600 = vmatpush1.msra.mxu0 0.0
        %2601 = vmatprep.subr.mxu0 0.0
        %2602 = vmatpush1.msra.mxu0 0.0
        %2603 = vmatprep.subr.mxu0 0.0
        %2604 = vmatpush1.msra.mxu0 0.0
        %2605 = vmatprep.subr.mxu0 %v2580
        %2606 = vmatpush1.msra.mxu0 %v2579
        %2607 = vmatprep.subr.mxu0 %v2578
        %2608 = vmatpush1.msra.mxu0 %v2577
        %2609 = vmatprep.subr.mxu0 %v2576
        %2610 = vmatpush1.msra.mxu0 %v2575
        %2611 = vmatprep.subr.mxu0 %v2574
        %2612 = vmatpush1.msra.mxu0 %v2573
        %2613 = vmatprep.subr.mxu0 0.0
        %2614 = vmatpush2.msra.mxu0 0.0
        %2615 = vmatprep.subr.mxu0 0.0
        %2616 = vmatpush2.msra.mxu0 0.0
        %2617 = vmatprep.subr.mxu0 0.0
        %2618 = vmatpush2.msra.mxu0 0.0
        %2619 = vmatprep.subr.mxu0 0.0
        %2620 = vmatpush2.msra.mxu0 0.0
        %2621 = vmatprep.subr.mxu0 0.0
        %2622 = vmatpush2.msra.mxu0 0.0
        %2623 = vmatprep.subr.mxu0 0.0
        %2624 = vmatpush2.msra.mxu0 0.0
        %2625 = vmatprep.subr.mxu0 0.0
        %2626 = vmatpush2.msra.mxu0 0.0
        %2627 = vmatprep.subr.mxu0 0.0
        %2628 = vmatpush2.msra.mxu0 0.0
        %2629 = vmatprep.subr.mxu0 0.0
        %2630 = vmatpush2.msra.mxu0 0.0
        %2631 = vmatprep.subr.mxu0 0.0
        %2632 = vmatpush2.msra.mxu0 0.0
        %2633 = vmatprep.subr.mxu0 0.0
        %2634 = vmatpush2.msra.mxu0 0.0
        %2635 = vmatprep.subr.mxu0 0.0
        %2636 = vmatpush2.msra.mxu0 0.0
        %2637 = vmatprep.subr.mxu0 0.0
        %2638 = vmatpush2.msra.mxu0 0.0
        %2639 = vmatprep.subr.mxu0 0.0
        %2640 = vmatpush2.msra.mxu0 0.0
        %2641 = vmatprep.subr.mxu0 0.0
        %2642 = vmatpush2.msra.mxu0 0.0
        %2643 = vmatprep.subr.mxu0 0.0
        %2644 = vmatpush2.msra.mxu0 0.0
        %2645 = vmatprep.mubr.f32.mxu0 0.0
        %2646 = vmatmul.mubr.f32.gmra.mxu0 %v690
        %v2647 = vpop.f32.mrf.mxu0
        %v2648 = vadd.f32 %v686, %v2647
        %v2649 = vpop.f32.mrf.mxu0
        %v2650 = vadd.f32 %v686, %v2649
        %2651 = vdwg.mxu0
        %s2652 = smul.u32 %s2405, 3
        %s2653 = sld [smem:[#allocation2 + %s2652]]
        %s2654 = sadd.s32 %s2652, 1
        %s2655 = sld [smem:[#allocation2 + %s2654]]
        %s2656 = sadd.s32 %s2652, 2
        %s2657 = sld [smem:[#allocation2 + %s2656]]
        %v2658 = vld [vmem:[%s396] sm:$0xf]
        %v2659 = vunpack.c.l.bf16 %v2658
        %v2660 = vstv %s2653
        %v2661 = vmul.f32 %v2660, %v2404
        %v2662 = vstv %s2655
        %v2663 = vmul.f32 %v2662, %v2648
        %v2664 = vmul.f32 %v2662, %v2650
        %v2667 = vcombine.low %v2663, %v2664
        %v2669 = vsub.f32 %v2661, %v2667
        %v2670 = vstv %s2657
        %v2671 = vmul.f32 %v2670, %v2659
        %v2672 = vadd.f32 %v2669, %v2671
        %p2673 = scmp.lt.s32.totalorder %s26, 0
        // Predicated region
        $region98: #{ddpm_sample.1} parent=84 // pred_check
          %p2674 = pneg %p2673
        $region99: #{ddpm_sample.1} parent=84 // pred_check_branch
          %2676 = sbr.rel (%p2674) target = $region101
        $region100: #{ddpm_sample.1} parent=84 // pred_region
          %2677 = vst [vmem:[%s476] sm:$0xff] %v2672
        $region101: #{ddpm_sample.1} parent=84 // pred_fallthru
          _
        // Predicated region
        $region102: #{ddpm_sample.1} parent=84 // pred_check
          %p2678 = pneg %p480
        $region103: #{ddpm_sample.1} parent=84 // pred_check_branch
          %2680 = sbr.rel (%p2678) target = $region105
        $region104: #{ddpm_sample.1} parent=84 // pred_region
          %v2681 = vmax.f32 %v2672, -1.0
          %v2682 = vmin.f32 %v2681, 1.0
          %v2683 = vmul.f32 %v2682, 0.5
          %v2684 = vadd.f32 %v2683, 0.5
          %2685 = vst [vmem:[%s476] sm:$0xff] %v2684
        $region105: #{ddpm_sample.1} parent=84 // pred_fallthru
          _
        %s2686 = smul.u32 2, %s25
        %p2687 = scmp.lt.s32.totalorder %s24, 1
        %s2688 = scalar_select %p2687, %s24, 1
        %p2689 = scmp.lt.s32.totalorder %s2686, 1
        %s2690 = scalar_select %p2689, %s2686, 1
        %s2691 = smul.addr %s2688, 2
        %s2692 = sadd.s32 %s2690, %s2691
        %s2693 = smul.addr %s2692, 4
        %s2694 = scalar_lea.vmem %s7, %s2693
        // Predicated region
        $region106: #{ddpm_sample.1} parent=84 // pred_check
          %p2695 = pneg %p230
        $region107: #{ddpm_sample.1} parent=84 // pred_check_branch
          %2697 = sbr.rel (%p2695) target = $region109
        $region108: #{ddpm_sample.1} parent=84 // pred_region
          %s2698 = smul.u32 2, %s25
        $region109: #{ddpm_sample.1} parent=84 // pred_fallthru
          _
      $region85: #{ddpm_sample.1} parent=5 // pred_fallthru
        _
      %p2699 = scmp.le.s32.totalorder 2, %s14
      // Predicated region
      $region110: #{ddpm_sample.1} parent=5 // pred_check
        %p2700 = pneg %p2699
      $region111: #{ddpm_sample.1} parent=5 // pred_check_branch
        %2702 = sbr.rel (%p2700) target = $region113
      $region112: #{ddpm_sample.1} parent=5 // pred_region
        %s2703 = ssub.s32 %s14, 2
        // Predicated region
        $region114: #{ddpm_sample.1} parent=112 // pred_check
          %p2704 = pneg %p236
        $region115: #{ddpm_sample.1} parent=112 // pred_check_branch
          %2706 = sbr.rel (%p2704) target = $region117
        $region116: #{ddpm_sample.1} parent=112 // pred_region
          %s2707 = smul.u32 2, %s28
          %p2708 = scmp.lt.s32.totalorder %s27, 1
          %s2709 = scalar_select %p2708, %s27, 1
          %p2710 = scmp.lt.s32.totalorder %s2707, 1
          %s2711 = scalar_select %p2710, %s2707, 1
          %s2712 = smul.addr %s2709, 2
          %s2713 = sadd.s32 %s2711, %s2712
          %s2714 = smul.addr %s2713, 4
          %s2715 = scalar_lea.vmem %s7, %s2714
        $region117: #{ddpm_sample.1} parent=112 // pred_fallthru
          _
      $region113: #{ddpm_sample.1} parent=5 // pred_fallthru
        _
    $region6: #{ddpm_sample.1} parent=1 // loop_footer
      %s18 = sadd.s32 1, %s14
    $region7: #{ddpm_sample.1} parent=1 // loop_footer_branch
      %13 = sbr.rel target = $region3
    $region8: #{ddpm_sample.1} parent=1 // loop_exit
      _
    %2716 = vsyncpa [#allocation3], 1
    %s2717 = scalar_lea.sflag [#allocation3], 1
    %2718 = vsyncpa %s2717, 1

</llo_original>
